<compile_context>
chip_gen: v5e
topology: v5e:2x2
jax: 0.10.0
libtpu: 0.0.40
codegen_flags: <defaults>
</compile_context>

<pallas_src>
import math
import jax
import jax.numpy as jnp
from jax import lax
from jax.experimental import pallas as pl
from jax.experimental.pallas import tpu as pltpu

# ParamsJR('WWD'): every variance is 0 -> all parameters are deterministic constants.
WWD_PARAMS = dict(
    std_in=0.02, std_out=0.02, W_E=1.0, tau_E=100.0, gamma_E=0.641 / 1000.0,
    W_I=0.7, tau_I=10.0, gamma_I=1.0 / 1000.0, I_0=0.32, I_external=0.0,
    g=20.0, g_EE=0.1, g_IE=0.1, g_EI=0.1,
    aE=310.0, bE=125.0, dE=0.16, aI=615.0, bI=177.0, dI=0.087,
    alpha=0.32, rho=0.34, k1=2.38, k2=2.0, k3=0.48, V=0.02, E0=0.34,
    tau_s=0.65, tau_f=0.41, tau_0=0.98, mu=0.5,
)

CHUNK = 8  # Euler steps per unrolled inner chunk (== sublane alignment)


def _relu_const(x):
    return max(float(x), 0.0)


def _h_tf(a, b, d, z):
    # matches the reference h_tf exactly; a*z - b computed once
    azb = a * z - b
    num = 1e-05 + jnp.abs(azb)
    den = 1e-05 * d + jnp.abs(1.0 - jnp.exp(-d * azb))
    return num / den


def _make_kernel(hidden_size, dt, p):
    sqrt_dt = math.sqrt(dt)
    inv_tau_E = 1.0 / p['tau_E']
    inv_tau_I = 1.0 / p['tau_I']
    inv_tau_s = 1.0 / p['tau_s']
    inv_tau_f = 1.0 / p['tau_f']
    inv_tau_0 = 1.0 / p['tau_0']
    inv_alpha = 1.0 / p['alpha']
    inv_rho = 1.0 / p['rho']
    gEE = 0.001 + _relu_const(p['g_EE'])
    gIE = 0.001 + _relu_const(p['g_IE'])
    gEI = 0.001 + _relu_const(p['g_EI'])
    std_in = 0.02 + _relu_const(p['std_in'])
    std_out = 0.001 + _relu_const(p['std_out'])
    WE_I0 = p['W_E'] * p['I_0']
    WI_I0 = p['W_I'] * p['I_0']
    gamma_E, gamma_I = p['gamma_E'], p['gamma_I']
    aE, bE, dE = p['aE'], p['bE'], p['dE']
    aI, bI, dI = p['aI'], p['bI'], p['dI']
    log_one_minus_rho = math.log(1.0 - p['rho'])
    bold_scale = 100.0 * p['V'] * (1.0 / p['E0'])
    k1, k2, k3 = p['k1'], p['k2'], p['k3']
    noise_scale = sqrt_dt * std_in

    num_full = hidden_size // CHUNK
    rem = hidden_size % CHUNK

    def kernel(wT_ref, hx_ref, nb_ref, nE_ref, nI_ref, u_ref,
               cur_ref, bold_ref, xb_ref, fb_ref, vb_ref, qb_ref, Eb_ref, Ib_ref):
        b = pl.program_id(0)

        # first batch: seed the resident state block from hx
        @pl.when(b == 0)
        def _():
            cur_ref[...] = hx_ref[...]

        # hoist the (N, N) weight load out of the time loop (g already folded in)
        wg = wT_ref[...]

        # state lives in vregs (loop carry) inside a batch; VMEM only once per batch
        st0 = cur_ref[...]
        carry0 = (st0[0:1, :], st0[1:2, :], st0[2:3, :],
                  st0[3:4, :], st0[4:5, :], st0[5:6, :])

        def euler_step(carry, nEs, nIs, u):
            E, I, x, f, v, q = carry
            # coupling = g * (w_n + dg) @ E  as row-vector x pre-scaled transposed matrix
            coupling = jnp.dot(E, wg, preferred_element_type=jnp.float32)

            IE = jnp.maximum(WE_I0 + gEE * E + coupling - gIE * I, 0.0) + u
            II = jnp.maximum(WI_I0 + gEI * E - I, 0.0)
            rE = _h_tf(aE, bE, dE, IE)
            rI = _h_tf(aI, bI, dI, II)

            ddE = E + dt * (-E * inv_tau_E + gamma_E * (1.0 - E) * rE) + nEs
            ddI = I + dt * (-I * inv_tau_I + gamma_I * rI) + nIs
            dx = x + dt * (E - inv_tau_s * x - inv_tau_f * (f - 1.0))
            df = f + dt * x

            # v**(1/alpha) and v**(1/alpha - 1) share one log (== torch.pow for v > 0)
            logv = jnp.log(v)
            v_pow = jnp.exp(inv_alpha * logv)
            v_pow_m1 = jnp.exp((inv_alpha - 1.0) * logv)
            # (1 - rho) ** (1/f)
            pow_rho = jnp.exp(log_one_minus_rho / f)

            dv = v + dt * (f - v_pow) * inv_tau_0
            dq = q + dt * (f * (1.0 - pow_rho) * inv_rho - q * v_pow_m1) * inv_tau_0

            E2 = jnp.tanh(jnp.maximum(ddE, 0.0))
            I2 = jnp.tanh(jnp.maximum(ddI, 0.0))
            return (E2, I2, dx, df, dv, dq)

        def run_chunk(t0, n_steps, carry):
            # one aligned (CHUNK, N) load per slab per chunk; noise pre-scaled as a block
            nE_blk = nE_ref[pl.ds(t0, CHUNK), :] * noise_scale
            nI_blk = nI_ref[pl.ds(t0, CHUNK), :] * noise_scale
            u_blk = u_ref[pl.ds(t0, CHUNK), :]
            rowsE, rowsI = [], []
            for k in range(n_steps):       # unrolled: overlaps EUP / MXU / VPU work
                carry = euler_step(carry,
                                   nE_blk[k:k + 1, :],
                                   nI_blk[k:k + 1, :],
                                   u_blk[k:k + 1, :])
                rowsE.append(carry[0])
                rowsI.append(carry[1])
            # aligned multi-row flush instead of per-step 1-sublane stores
            Eb_ref[pl.ds(t0, n_steps), :] = jnp.concatenate(rowsE, axis=0)
            Ib_ref[pl.ds(t0, n_steps), :] = jnp.concatenate(rowsI, axis=0)
            return carry

        carry = carry0
        if num_full > 0:
            def chunk_body(c, carry):
                t0 = pl.multiple_of(c * CHUNK, CHUNK)
                return run_chunk(t0, CHUNK, carry)
            carry = lax.fori_loop(0, num_full, chunk_body, carry)
        if rem > 0:
            # statically-unrolled remainder (slab is padded to a multiple of CHUNK,
            # so the full-chunk load stays in bounds; only `rem` steps are applied)
            carry = run_chunk(num_full * CHUNK, rem, carry)

        E, I, x, f, v, q = carry

        # write the state back once per batch (also carries it to the next grid step)
        cur_ref[...] = jnp.concatenate([E, I, x, f, v, q], axis=0)
        xb_ref[pl.ds(b, 1), :] = x
        fb_ref[pl.ds(b, 1), :] = f
        vb_ref[pl.ds(b, 1), :] = v
        qb_ref[pl.ds(b, 1), :] = q
        nb = nb_ref[pl.ds(b, 1), :]
        bold_ref[pl.ds(b, 1), :] = (
            std_out * nb
            + bold_scale * (k1 * (1.0 - q) + k2 * (1.0 - q / v) + k3 * (1.0 - v)))

    return kernel


def rnn_wwd_forward(external, inp, noise_out, hx, hE, sc, w_bb,
                    step_size, tr, params=WWD_PARAMS):
    """Pallas implementation of RNNWWD.forward.

    external : (N, H, B)      hx : (N, 6)
    inp      : (N, H, B, 2)   hE : (N, L)  (returned unchanged)
    noise_out: (N, B)         sc, w_bb : (N, N)
    """
    f32 = jnp.float32
    external = external.astype(f32)
    inp = inp.astype(f32)
    noise_out = noise_out.astype(f32)
    hx = hx.astype(f32)
    sc = sc.astype(f32)
    w_bb = w_bb.astype(f32)

    N = hx.shape[0]
    H = int(tr / step_size)
    B = noise_out.shape[1]
    H_pad = ((H + CHUNK - 1) // CHUNK) * CHUNK   # sublane-aligned per-batch slab height

    # --- plain-JAX glue: connectivity normalization (sc.shape[0] > 1 branch) ---
    w = jnp.exp(w_bb) * sc
    lw = jnp.log1p(0.5 * (w + w.T))
    w_n = lw / jnp.linalg.norm(lw)
    w_eff = w_n - jnp.diag(jnp.sum(w_n, axis=1))     # w_n + dg
    # fold the scalar coupling gain g into the matrix and pre-transpose:
    # (1,N) @ (g*w_eff).T  ==  (g * (w_eff @ col)).T
    wT_g = (params['g'] * w_eff).T

    # TODO(synk): the hE delay-gather (Ed -> LEd) of the reference is skipped: its
    # contribution enters the dynamics as exactly 0 * LEd, and hE is returned unchanged.

    # per-batch time-major slabs: step h of batch b lives at row b*H_pad + h
    noiseE = jnp.transpose(inp[..., 0], (2, 1, 0))   # (B, H, N)
    noiseI = jnp.transpose(inp[..., 1], (2, 1, 0))
    u_all = jnp.transpose(external, (2, 1, 0))
    if H_pad != H:
        pad = ((0, 0), (0, H_pad - H), (0, 0))
        noiseE = jnp.pad(noiseE, pad)
        noiseI = jnp.pad(noiseI, pad)
        u_all = jnp.pad(u_all, pad)
    noiseE = noiseE.reshape(B * H_pad, N)
    noiseI = noiseI.reshape(B * H_pad, N)
    u_all = u_all.reshape(B * H_pad, N)
    nb_all = noise_out.T      # (B, N)
    hx_t = hx.T               # (6, N)

    kernel = _make_kernel(H, float(step_size), params)

    out_shapes = (
        jax.ShapeDtypeStruct((6, N), f32),          # current_state (state, node)
        jax.ShapeDtypeStruct((B, N), f32),          # bold_batch
        jax.ShapeDtypeStruct((B, N), f32),          # x_batch
        jax.ShapeDtypeStruct((B, N), f32),          # f_batch
        jax.ShapeDtypeStruct((B, N), f32),          # v_batch
        jax.ShapeDtypeStruct((B, N), f32),          # q_batch
        jax.ShapeDtypeStruct((B * H_pad, N), f32),  # E_batch (padded)
        jax.ShapeDtypeStruct((B * H_pad, N), f32),  # I_batch (padded)
    )

    def _const2d(shape):
        # resident block (same block index for every grid step)
        return pl.BlockSpec(shape, lambda b: (0, 0))

    slab_in = pl.BlockSpec((H_pad, N), lambda b: (b, 0))
    slab_out = pl.BlockSpec((H_pad, N), lambda b: (b, 0))

    in_specs = [
        _const2d((N, N)),     # wT (g folded in)
        _const2d((6, N)),     # hx
        _const2d((B, N)),     # BOLD noise
        slab_in,              # noiseE  (streamed per batch)
        slab_in,              # noiseI
        slab_in,              # external drive u
    ]
    out_specs = (
        _const2d((6, N)),     # current_state (also carries state between batches)
        _const2d((B, N)),     # bold
        _const2d((B, N)), _const2d((B, N)), _const2d((B, N)), _const2d((B, N)),
        slab_out,             # E_batch (streamed per batch)
        slab_out,             # I_batch
    )

    # size the scoped VMEM explicitly (v5e default is small); streamed blocks are
    # double-buffered, resident blocks counted once.  Cap at 64 MiB (v7x physical).
    slab_bytes = H_pad * N * 4
    resident_bytes = (N * N + 6 * N + 6 * B * N + 2 * 6 * N) * 4
    vmem_needed = resident_bytes + 2 * 5 * slab_bytes
    vmem_limit = int(min(max(2 * vmem_needed, 32 * 1024 * 1024), 64 * 1024 * 1024))

    cur, bold, xb, fb, vb, qb, Eb, Ib = pl.pallas_call(
        kernel,
        out_shape=out_shapes,
        grid=(B,),
        in_specs=in_specs,
        out_specs=out_specs,
        compiler_params=pltpu.CompilerParams(
            dimension_semantics=("arbitrary",),   # state carries across batches
            vmem_limit_bytes=vmem_limit),
    )(wT_g, hx_t, nb_all, noiseE, noiseI, u_all)

    # strip sublane padding, restore PyTorch (node, steps) convention
    Eb = Eb.reshape(B, H_pad, N)[:, :H, :].reshape(B * H, N)
    Ib = Ib.reshape(B, H_pad, N)[:, :H, :].reshape(B * H, N)

    next_state = {
        'current_state': cur.T,   # (N, 6)
        'bold_batch': bold.T,     # (N, B)
        'E_batch': Eb.T,          # (N, B*H)
        'I_batch': Ib.T,          # (N, B*H)
        'x_batch': xb.T,          # (N, B)
        'f_batch': fb.T,          # (N, B)
        'v_batch': vb.T,          # (N, B)
        'q_batch': qb.T,          # (N, B)
    }
    return next_state, hE


if __name__ == "__main__":
    key = jax.random.PRNGKey(0)
    ks = jax.random.split(key, 8)

    node_size = 16
    batch_size = 2
    input_size = 2
    step_size = 0.05
    tr = 0.4
    hidden_size = int(tr / step_size)   # 8

    sc = jnp.abs(jax.random.normal(ks[0], (node_size, node_size), jnp.float32)) * 0.5
    dist = jnp.abs(jax.random.normal(ks[1], (node_size, node_size), jnp.float32))  # unused (delays * 0)
    external = 0.1 * jax.random.normal(ks[2], (node_size, hidden_size, batch_size), jnp.float32)
    inp = jax.random.normal(ks[3], (node_size, hidden_size, batch_size, input_size), jnp.float32)
    noise_out = jax.random.normal(ks[4], (node_size, batch_size), jnp.float32)

    base_state = jnp.array([0.2, 0.1, 0.0, 1.0, 1.0, 1.0], jnp.float32)
    hx = base_state[None, :] + 0.01 * jax.random.normal(ks[5], (node_size, 6), jnp.float32)
    hE = jnp.zeros((node_size, node_size), jnp.float32)

    # fit_gains_flat=True deterministic init: w_bb = 0.05 everywhere
    w_bb = jnp.zeros((node_size, node_size), jnp.float32) + 0.05

    next_state, hE_out = rnn_wwd_forward(
        external, inp, noise_out, hx, hE, sc, w_bb, step_size, tr)
    jax.block_until_ready(next_state)

    assert next_state['current_state'].shape == (node_size, 6)
    assert next_state['bold_batch'].shape == (node_size, batch_size)
    assert next_state['E_batch'].shape == (node_size, batch_size * hidden_size)
    assert next_state['I_batch'].shape == (node_size, batch_size * hidden_size)
    assert next_state['x_batch'].shape == (node_size, batch_size)
    assert bool(jnp.all(jnp.isfinite(next_state['bold_batch'])))
    assert bool(jnp.all(jnp.isfinite(next_state['current_state'])))
    assert bool(jnp.all(jnp.isfinite(next_state['E_batch'])))

    print("KERNEL_OK")
</pallas_src>

<mosaic_0001>
module attributes {stable_mosaic.version = 11 : i64} {
  func.func @kernel(%arg0: i32, %arg1: memref<16x16xf32, #tpu.memory_space<vmem>>, %arg2: memref<6x16xf32, #tpu.memory_space<vmem>>, %arg3: memref<2x16xf32, #tpu.memory_space<vmem>>, %arg4: memref<8x16xf32, #tpu.memory_space<vmem>>, %arg5: memref<8x16xf32, #tpu.memory_space<vmem>>, %arg6: memref<8x16xf32, #tpu.memory_space<vmem>>, %arg7: memref<6x16xf32, #tpu.memory_space<vmem>>, %arg8: memref<2x16xf32, #tpu.memory_space<vmem>>, %arg9: memref<2x16xf32, #tpu.memory_space<vmem>>, %arg10: memref<2x16xf32, #tpu.memory_space<vmem>>, %arg11: memref<2x16xf32, #tpu.memory_space<vmem>>, %arg12: memref<2x16xf32, #tpu.memory_space<vmem>>, %arg13: memref<8x16xf32, #tpu.memory_space<vmem>>, %arg14: memref<8x16xf32, #tpu.memory_space<vmem>>) attributes {dimension_semantics = [#tpu.dimension_semantics<arbitrary>], iteration_bounds = array<i64: 2>, scalar_prefetch = 0 : i64, scratch_operands = 0 : i64, tpu.core_type = #tpu.core_type<tc>, window_params = [{pipeline_mode = #tpu.pipeline_mode<synchronous>, transform_indices = @transform_0, window_bounds = array<i64: 16, 16>}, {pipeline_mode = #tpu.pipeline_mode<synchronous>, transform_indices = @transform_1, window_bounds = array<i64: 6, 16>}, {pipeline_mode = #tpu.pipeline_mode<synchronous>, transform_indices = @transform_2, window_bounds = array<i64: 2, 16>}, {transform_indices = @transform_3, window_bounds = array<i64: 8, 16>}, {transform_indices = @transform_4, window_bounds = array<i64: 8, 16>}, {transform_indices = @transform_5, window_bounds = array<i64: 8, 16>}, {pipeline_mode = #tpu.pipeline_mode<synchronous>, transform_indices = @transform_6, window_bounds = array<i64: 6, 16>}, {pipeline_mode = #tpu.pipeline_mode<synchronous>, transform_indices = @transform_7, window_bounds = array<i64: 2, 16>}, {pipeline_mode = #tpu.pipeline_mode<synchronous>, transform_indices = @transform_8, window_bounds = array<i64: 2, 16>}, {pipeline_mode = #tpu.pipeline_mode<synchronous>, transform_indices = @transform_9, window_bounds = array<i64: 2, 16>}, {pipeline_mode = #tpu.pipeline_mode<synchronous>, transform_indices = @transform_10, window_bounds = array<i64: 2, 16>}, {pipeline_mode = #tpu.pipeline_mode<synchronous>, transform_indices = @transform_11, window_bounds = array<i64: 2, 16>}, {transform_indices = @transform_12, window_bounds = array<i64: 8, 16>}, {transform_indices = @transform_13, window_bounds = array<i64: 8, 16>}]} {
    %c0_i32 = arith.constant 0 : i32
    %0 = arith.cmpi eq, %arg0, %c0_i32 : i32
    %1 = arith.extui %0 : i1 to i32
    %c0_i32_0 = arith.constant 0 : i32
    %2 = arith.cmpi ne, %1, %c0_i32_0 : i32
    scf.if %2 {
      %c0_387 = arith.constant 0 : index
      %c0_388 = arith.constant 0 : index
      %1079 = vector.load %arg2[%c0_387, %c0_388] : memref<6x16xf32, #tpu.memory_space<vmem>>, vector<6x16xf32>
      %c0_389 = arith.constant 0 : index
      %c0_390 = arith.constant 0 : index
      %1080 = vector.load %arg7[%c0_389, %c0_390] : memref<6x16xf32, #tpu.memory_space<vmem>>, vector<6x16xf32>
      tpu.vector_store %arg7[%c0_389, %c0_390], %1079 {strides = array<i32>} : memref<6x16xf32, #tpu.memory_space<vmem>>, vector<6x16xf32>,
    } else {
    }
    %c0 = arith.constant 0 : index
    %c0_1 = arith.constant 0 : index
    %3 = vector.load %arg1[%c0, %c0_1] : memref<16x16xf32, #tpu.memory_space<vmem>>, vector<16x16xf32>
    %c0_2 = arith.constant 0 : index
    %c0_3 = arith.constant 0 : index
    %4 = vector.load %arg7[%c0_2, %c0_3] : memref<6x16xf32, #tpu.memory_space<vmem>>, vector<6x16xf32>
    %5 = vector.extract_strided_slice %4 {offsets = [0, 0], sizes = [1, 16], strides = [1, 1]} : vector<6x16xf32> to vector<1x16xf32>
    %6 = vector.extract_strided_slice %4 {offsets = [1, 0], sizes = [1, 16], strides = [1, 1]} : vector<6x16xf32> to vector<1x16xf32>
    %7 = vector.extract_strided_slice %4 {offsets = [2, 0], sizes = [1, 16], strides = [1, 1]} : vector<6x16xf32> to vector<1x16xf32>
    %8 = vector.extract_strided_slice %4 {offsets = [3, 0], sizes = [1, 16], strides = [1, 1]} : vector<6x16xf32> to vector<1x16xf32>
    %9 = vector.extract_strided_slice %4 {offsets = [4, 0], sizes = [1, 16], strides = [1, 1]} : vector<6x16xf32> to vector<1x16xf32>
    %10 = vector.extract_strided_slice %4 {offsets = [5, 0], sizes = [1, 16], strides = [1, 1]} : vector<6x16xf32> to vector<1x16xf32>
    %c0_i32_4 = arith.constant 0 : i32
    %c8_i32 = arith.constant 8 : i32
    %11 = arith.muli %c0_i32_4, %c8_i32 : i32
    %12 = tpu.assume_multiple %11, 8 : i32
    %13 = arith.index_cast %12 : i32 to index
    %c0_5 = arith.constant 0 : index
    %14 = vector.load %arg4[%13, %c0_5] : memref<8x16xf32, #tpu.memory_space<vmem>>, vector<8x16xf32>
    %cst = arith.constant 0.00894427206 : f32
    %15 = vector.broadcast %cst : f32 to vector<8x16xf32>
    %16 = arith.mulf %14, %15 : vector<8x16xf32>
    %17 = arith.index_cast %12 : i32 to index
    %c0_6 = arith.constant 0 : index
    %18 = vector.load %arg5[%17, %c0_6] : memref<8x16xf32, #tpu.memory_space<vmem>>, vector<8x16xf32>
    %cst_7 = arith.constant 0.00894427206 : f32
    %19 = vector.broadcast %cst_7 : f32 to vector<8x16xf32>
    %20 = arith.mulf %18, %19 : vector<8x16xf32>
    %21 = arith.index_cast %12 : i32 to index
    %c0_8 = arith.constant 0 : index
    %22 = vector.load %arg6[%21, %c0_8] : memref<8x16xf32, #tpu.memory_space<vmem>>, vector<8x16xf32>
    %23 = vector.extract_strided_slice %16 {offsets = [0, 0], sizes = [1, 16], strides = [1, 1]} : vector<8x16xf32> to vector<1x16xf32>
    %24 = vector.extract_strided_slice %20 {offsets = [0, 0], sizes = [1, 16], strides = [1, 1]} : vector<8x16xf32> to vector<1x16xf32>
    %25 = vector.extract_strided_slice %22 {offsets = [0, 0], sizes = [1, 16], strides = [1, 1]} : vector<8x16xf32> to vector<1x16xf32>
    %cst_9 = arith.constant dense<0.000000e+00> : vector<1x16xf32>
    %26 = tpu.matmul %5, %3, %cst_9 {dimension_numbers = #tpu.dot_dimension_numbers<[1], [0], [0], [1], [0, 0, 1, 1], [], []>} : vector<1x16xf32>, vector<16x16xf32>, vector<1x16xf32> -> vector<1x16xf32>
    %cst_10 = arith.constant 1.010000e-01 : f32
    %27 = vector.broadcast %cst_10 : f32 to vector<1x16xf32>
    %28 = arith.mulf %27, %5 : vector<1x16xf32>
    %cst_11 = arith.constant 3.200000e-01 : f32
    %29 = vector.broadcast %cst_11 : f32 to vector<1x16xf32>
    %30 = arith.addf %29, %28 : vector<1x16xf32>
    %31 = arith.addf %30, %26 : vector<1x16xf32>
    %cst_12 = arith.constant 1.010000e-01 : f32
    %32 = vector.broadcast %cst_12 : f32 to vector<1x16xf32>
    %33 = arith.mulf %32, %6 : vector<1x16xf32>
    %34 = arith.subf %31, %33 : vector<1x16xf32>
    %cst_13 = arith.constant 0.000000e+00 : f32
    %35 = vector.broadcast %cst_13 : f32 to vector<1x16xf32>
    %36 = arith.maximumf %34, %35 : vector<1x16xf32>
    %37 = arith.addf %36, %25 : vector<1x16xf32>
    %cst_14 = arith.constant 1.010000e-01 : f32
    %38 = vector.broadcast %cst_14 : f32 to vector<1x16xf32>
    %39 = arith.mulf %38, %5 : vector<1x16xf32>
    %cst_15 = arith.constant 2.240000e-01 : f32
    %40 = vector.broadcast %cst_15 : f32 to vector<1x16xf32>
    %41 = arith.addf %40, %39 : vector<1x16xf32>
    %42 = arith.subf %41, %6 : vector<1x16xf32>
    %cst_16 = arith.constant 0.000000e+00 : f32
    %43 = vector.broadcast %cst_16 : f32 to vector<1x16xf32>
    %44 = arith.maximumf %42, %43 : vector<1x16xf32>
    %cst_17 = arith.constant 3.100000e+02 : f32
    %45 = vector.broadcast %cst_17 : f32 to vector<1x16xf32>
    %46 = arith.mulf %45, %37 : vector<1x16xf32>
    %cst_18 = arith.constant 1.250000e+02 : f32
    %47 = vector.broadcast %cst_18 : f32 to vector<1x16xf32>
    %48 = arith.subf %46, %47 : vector<1x16xf32>
    %49 = math.absf %48 : vector<1x16xf32>
    %cst_19 = arith.constant 9.99999974E-6 : f32
    %50 = vector.broadcast %cst_19 : f32 to vector<1x16xf32>
    %51 = arith.addf %50, %49 : vector<1x16xf32>
    %cst_20 = arith.constant -1.600000e-01 : f32
    %52 = vector.broadcast %cst_20 : f32 to vector<1x16xf32>
    %53 = arith.mulf %52, %48 : vector<1x16xf32>
    %54 = math.exp %53 : vector<1x16xf32>
    %cst_21 = arith.constant 1.000000e+00 : f32
    %55 = vector.broadcast %cst_21 : f32 to vector<1x16xf32>
    %56 = arith.subf %55, %54 : vector<1x16xf32>
    %57 = math.absf %56 : vector<1x16xf32>
    %cst_22 = arith.constant 1.600000e-06 : f32
    %58 = vector.broadcast %cst_22 : f32 to vector<1x16xf32>
    %59 = arith.addf %58, %57 : vector<1x16xf32>
    %60 = arith.divf %51, %59 : vector<1x16xf32>
    %cst_23 = arith.constant 6.150000e+02 : f32
    %61 = vector.broadcast %cst_23 : f32 to vector<1x16xf32>
    %62 = arith.mulf %61, %44 : vector<1x16xf32>
    %cst_24 = arith.constant 1.770000e+02 : f32
    %63 = vector.broadcast %cst_24 : f32 to vector<1x16xf32>
    %64 = arith.subf %62, %63 : vector<1x16xf32>
    %65 = math.absf %64 : vector<1x16xf32>
    %cst_25 = arith.constant 9.99999974E-6 : f32
    %66 = vector.broadcast %cst_25 : f32 to vector<1x16xf32>
    %67 = arith.addf %66, %65 : vector<1x16xf32>
    %cst_26 = arith.constant -8.700000e-02 : f32
    %68 = vector.broadcast %cst_26 : f32 to vector<1x16xf32>
    %69 = arith.mulf %68, %64 : vector<1x16xf32>
    %70 = math.exp %69 : vector<1x16xf32>
    %cst_27 = arith.constant 1.000000e+00 : f32
    %71 = vector.broadcast %cst_27 : f32 to vector<1x16xf32>
    %72 = arith.subf %71, %70 : vector<1x16xf32>
    %73 = math.absf %72 : vector<1x16xf32>
    %cst_28 = arith.constant 8.700000e-07 : f32
    %74 = vector.broadcast %cst_28 : f32 to vector<1x16xf32>
    %75 = arith.addf %74, %73 : vector<1x16xf32>
    %76 = arith.divf %67, %75 : vector<1x16xf32>
    %cst_29 = arith.constant 0.000000e+00 : f32
    %77 = vector.broadcast %cst_29 : f32 to vector<1x16xf32>
    %78 = arith.subf %77, %5 : vector<1x16xf32>
    %cst_30 = arith.constant 0.00999999977 : f32
    %79 = vector.broadcast %cst_30 : f32 to vector<1x16xf32>
    %80 = arith.mulf %78, %79 : vector<1x16xf32>
    %cst_31 = arith.constant 1.000000e+00 : f32
    %81 = vector.broadcast %cst_31 : f32 to vector<1x16xf32>
    %82 = arith.subf %81, %5 : vector<1x16xf32>
    %cst_32 = arith.constant 6.410000e-04 : f32
    %83 = vector.broadcast %cst_32 : f32 to vector<1x16xf32>
    %84 = arith.mulf %83, %82 : vector<1x16xf32>
    %85 = arith.mulf %84, %60 : vector<1x16xf32>
    %86 = arith.addf %80, %85 : vector<1x16xf32>
    %cst_33 = arith.constant 5.000000e-02 : f32
    %87 = vector.broadcast %cst_33 : f32 to vector<1x16xf32>
    %88 = arith.mulf %87, %86 : vector<1x16xf32>
    %89 = arith.addf %5, %88 : vector<1x16xf32>
    %90 = arith.addf %89, %23 : vector<1x16xf32>
    %cst_34 = arith.constant 0.000000e+00 : f32
    %91 = vector.broadcast %cst_34 : f32 to vector<1x16xf32>
    %92 = arith.subf %91, %6 : vector<1x16xf32>
    %cst_35 = arith.constant 1.000000e-01 : f32
    %93 = vector.broadcast %cst_35 : f32 to vector<1x16xf32>
    %94 = arith.mulf %92, %93 : vector<1x16xf32>
    %cst_36 = arith.constant 1.000000e-03 : f32
    %95 = vector.broadcast %cst_36 : f32 to vector<1x16xf32>
    %96 = arith.mulf %95, %76 : vector<1x16xf32>
    %97 = arith.addf %94, %96 : vector<1x16xf32>
    %cst_37 = arith.constant 5.000000e-02 : f32
    %98 = vector.broadcast %cst_37 : f32 to vector<1x16xf32>
    %99 = arith.mulf %98, %97 : vector<1x16xf32>
    %100 = arith.addf %6, %99 : vector<1x16xf32>
    %101 = arith.addf %100, %24 : vector<1x16xf32>
    %cst_38 = arith.constant 1.53846157 : f32
    %102 = vector.broadcast %cst_38 : f32 to vector<1x16xf32>
    %103 = arith.mulf %102, %7 : vector<1x16xf32>
    %104 = arith.subf %5, %103 : vector<1x16xf32>
    %cst_39 = arith.constant 1.000000e+00 : f32
    %105 = vector.broadcast %cst_39 : f32 to vector<1x16xf32>
    %106 = arith.subf %8, %105 : vector<1x16xf32>
    %cst_40 = arith.constant 2.43902445 : f32
    %107 = vector.broadcast %cst_40 : f32 to vector<1x16xf32>
    %108 = arith.mulf %107, %106 : vector<1x16xf32>
    %109 = arith.subf %104, %108 : vector<1x16xf32>
    %cst_41 = arith.constant 5.000000e-02 : f32
    %110 = vector.broadcast %cst_41 : f32 to vector<1x16xf32>
    %111 = arith.mulf %110, %109 : vector<1x16xf32>
    %112 = arith.addf %7, %111 : vector<1x16xf32>
    %cst_42 = arith.constant 5.000000e-02 : f32
    %113 = vector.broadcast %cst_42 : f32 to vector<1x16xf32>
    %114 = arith.mulf %113, %7 : vector<1x16xf32>
    %115 = arith.addf %8, %114 : vector<1x16xf32>
    %116 = math.log %9 : vector<1x16xf32>
    %cst_43 = arith.constant 3.125000e+00 : f32
    %117 = vector.broadcast %cst_43 : f32 to vector<1x16xf32>
    %118 = arith.mulf %117, %116 : vector<1x16xf32>
    %119 = math.exp %118 : vector<1x16xf32>
    %cst_44 = arith.constant 2.125000e+00 : f32
    %120 = vector.broadcast %cst_44 : f32 to vector<1x16xf32>
    %121 = arith.mulf %120, %116 : vector<1x16xf32>
    %122 = math.exp %121 : vector<1x16xf32>
    %cst_45 = arith.constant -0.415515453 : f32
    %123 = vector.broadcast %cst_45 : f32 to vector<1x16xf32>
    %124 = arith.divf %123, %8 : vector<1x16xf32>
    %125 = math.exp %124 : vector<1x16xf32>
    %126 = arith.subf %8, %119 : vector<1x16xf32>
    %cst_46 = arith.constant 5.000000e-02 : f32
    %127 = vector.broadcast %cst_46 : f32 to vector<1x16xf32>
    %128 = arith.mulf %127, %126 : vector<1x16xf32>
    %cst_47 = arith.constant 1.02040815 : f32
    %129 = vector.broadcast %cst_47 : f32 to vector<1x16xf32>
    %130 = arith.mulf %128, %129 : vector<1x16xf32>
    %131 = arith.addf %9, %130 : vector<1x16xf32>
    %cst_48 = arith.constant 1.000000e+00 : f32
    %132 = vector.broadcast %cst_48 : f32 to vector<1x16xf32>
    %133 = arith.subf %132, %125 : vector<1x16xf32>
    %134 = arith.mulf %8, %133 : vector<1x16xf32>
    %cst_49 = arith.constant 2.94117641 : f32
    %135 = vector.broadcast %cst_49 : f32 to vector<1x16xf32>
    %136 = arith.mulf %134, %135 : vector<1x16xf32>
    %137 = arith.mulf %10, %122 : vector<1x16xf32>
    %138 = arith.subf %136, %137 : vector<1x16xf32>
    %cst_50 = arith.constant 5.000000e-02 : f32
    %139 = vector.broadcast %cst_50 : f32 to vector<1x16xf32>
    %140 = arith.mulf %139, %138 : vector<1x16xf32>
    %cst_51 = arith.constant 1.02040815 : f32
    %141 = vector.broadcast %cst_51 : f32 to vector<1x16xf32>
    %142 = arith.mulf %140, %141 : vector<1x16xf32>
    %143 = arith.addf %10, %142 : vector<1x16xf32>
    %cst_52 = arith.constant 0.000000e+00 : f32
    %144 = vector.broadcast %cst_52 : f32 to vector<1x16xf32>
    %145 = arith.maximumf %90, %144 : vector<1x16xf32>
    %146 = math.tanh %145 : vector<1x16xf32>
    %cst_53 = arith.constant 0.000000e+00 : f32
    %147 = vector.broadcast %cst_53 : f32 to vector<1x16xf32>
    %148 = arith.maximumf %101, %147 : vector<1x16xf32>
    %149 = math.tanh %148 : vector<1x16xf32>
    %150 = vector.extract_strided_slice %16 {offsets = [1, 0], sizes = [1, 16], strides = [1, 1]} : vector<8x16xf32> to vector<1x16xf32>
    %151 = vector.extract_strided_slice %20 {offsets = [1, 0], sizes = [1, 16], strides = [1, 1]} : vector<8x16xf32> to vector<1x16xf32>
    %152 = vector.extract_strided_slice %22 {offsets = [1, 0], sizes = [1, 16], strides = [1, 1]} : vector<8x16xf32> to vector<1x16xf32>
    %cst_54 = arith.constant dense<0.000000e+00> : vector<1x16xf32>
    %153 = tpu.matmul %146, %3, %cst_54 {dimension_numbers = #tpu.dot_dimension_numbers<[1], [0], [0], [1], [0, 0, 1, 1], [], []>} : vector<1x16xf32>, vector<16x16xf32>, vector<1x16xf32> -> vector<1x16xf32>
    %cst_55 = arith.constant 1.010000e-01 : f32
    %154 = vector.broadcast %cst_55 : f32 to vector<1x16xf32>
    %155 = arith.mulf %154, %146 : vector<1x16xf32>
    %cst_56 = arith.constant 3.200000e-01 : f32
    %156 = vector.broadcast %cst_56 : f32 to vector<1x16xf32>
    %157 = arith.addf %156, %155 : vector<1x16xf32>
    %158 = arith.addf %157, %153 : vector<1x16xf32>
    %cst_57 = arith.constant 1.010000e-01 : f32
    %159 = vector.broadcast %cst_57 : f32 to vector<1x16xf32>
    %160 = arith.mulf %159, %149 : vector<1x16xf32>
    %161 = arith.subf %158, %160 : vector<1x16xf32>
    %cst_58 = arith.constant 0.000000e+00 : f32
    %162 = vector.broadcast %cst_58 : f32 to vector<1x16xf32>
    %163 = arith.maximumf %161, %162 : vector<1x16xf32>
    %164 = arith.addf %163, %152 : vector<1x16xf32>
    %cst_59 = arith.constant 1.010000e-01 : f32
    %165 = vector.broadcast %cst_59 : f32 to vector<1x16xf32>
    %166 = arith.mulf %165, %146 : vector<1x16xf32>
    %cst_60 = arith.constant 2.240000e-01 : f32
    %167 = vector.broadcast %cst_60 : f32 to vector<1x16xf32>
    %168 = arith.addf %167, %166 : vector<1x16xf32>
    %169 = arith.subf %168, %149 : vector<1x16xf32>
    %cst_61 = arith.constant 0.000000e+00 : f32
    %170 = vector.broadcast %cst_61 : f32 to vector<1x16xf32>
    %171 = arith.maximumf %169, %170 : vector<1x16xf32>
    %cst_62 = arith.constant 3.100000e+02 : f32
    %172 = vector.broadcast %cst_62 : f32 to vector<1x16xf32>
    %173 = arith.mulf %172, %164 : vector<1x16xf32>
    %cst_63 = arith.constant 1.250000e+02 : f32
    %174 = vector.broadcast %cst_63 : f32 to vector<1x16xf32>
    %175 = arith.subf %173, %174 : vector<1x16xf32>
    %176 = math.absf %175 : vector<1x16xf32>
    %cst_64 = arith.constant 9.99999974E-6 : f32
    %177 = vector.broadcast %cst_64 : f32 to vector<1x16xf32>
    %178 = arith.addf %177, %176 : vector<1x16xf32>
    %cst_65 = arith.constant -1.600000e-01 : f32
    %179 = vector.broadcast %cst_65 : f32 to vector<1x16xf32>
    %180 = arith.mulf %179, %175 : vector<1x16xf32>
    %181 = math.exp %180 : vector<1x16xf32>
    %cst_66 = arith.constant 1.000000e+00 : f32
    %182 = vector.broadcast %cst_66 : f32 to vector<1x16xf32>
    %183 = arith.subf %182, %181 : vector<1x16xf32>
    %184 = math.absf %183 : vector<1x16xf32>
    %cst_67 = arith.constant 1.600000e-06 : f32
    %185 = vector.broadcast %cst_67 : f32 to vector<1x16xf32>
    %186 = arith.addf %185, %184 : vector<1x16xf32>
    %187 = arith.divf %178, %186 : vector<1x16xf32>
    %cst_68 = arith.constant 6.150000e+02 : f32
    %188 = vector.broadcast %cst_68 : f32 to vector<1x16xf32>
    %189 = arith.mulf %188, %171 : vector<1x16xf32>
    %cst_69 = arith.constant 1.770000e+02 : f32
    %190 = vector.broadcast %cst_69 : f32 to vector<1x16xf32>
    %191 = arith.subf %189, %190 : vector<1x16xf32>
    %192 = math.absf %191 : vector<1x16xf32>
    %cst_70 = arith.constant 9.99999974E-6 : f32
    %193 = vector.broadcast %cst_70 : f32 to vector<1x16xf32>
    %194 = arith.addf %193, %192 : vector<1x16xf32>
    %cst_71 = arith.constant -8.700000e-02 : f32
    %195 = vector.broadcast %cst_71 : f32 to vector<1x16xf32>
    %196 = arith.mulf %195, %191 : vector<1x16xf32>
    %197 = math.exp %196 : vector<1x16xf32>
    %cst_72 = arith.constant 1.000000e+00 : f32
    %198 = vector.broadcast %cst_72 : f32 to vector<1x16xf32>
    %199 = arith.subf %198, %197 : vector<1x16xf32>
    %200 = math.absf %199 : vector<1x16xf32>
    %cst_73 = arith.constant 8.700000e-07 : f32
    %201 = vector.broadcast %cst_73 : f32 to vector<1x16xf32>
    %202 = arith.addf %201, %200 : vector<1x16xf32>
    %203 = arith.divf %194, %202 : vector<1x16xf32>
    %cst_74 = arith.constant 0.000000e+00 : f32
    %204 = vector.broadcast %cst_74 : f32 to vector<1x16xf32>
    %205 = arith.subf %204, %146 : vector<1x16xf32>
    %cst_75 = arith.constant 0.00999999977 : f32
    %206 = vector.broadcast %cst_75 : f32 to vector<1x16xf32>
    %207 = arith.mulf %205, %206 : vector<1x16xf32>
    %cst_76 = arith.constant 1.000000e+00 : f32
    %208 = vector.broadcast %cst_76 : f32 to vector<1x16xf32>
    %209 = arith.subf %208, %146 : vector<1x16xf32>
    %cst_77 = arith.constant 6.410000e-04 : f32
    %210 = vector.broadcast %cst_77 : f32 to vector<1x16xf32>
    %211 = arith.mulf %210, %209 : vector<1x16xf32>
    %212 = arith.mulf %211, %187 : vector<1x16xf32>
    %213 = arith.addf %207, %212 : vector<1x16xf32>
    %cst_78 = arith.constant 5.000000e-02 : f32
    %214 = vector.broadcast %cst_78 : f32 to vector<1x16xf32>
    %215 = arith.mulf %214, %213 : vector<1x16xf32>
    %216 = arith.addf %146, %215 : vector<1x16xf32>
    %217 = arith.addf %216, %150 : vector<1x16xf32>
    %cst_79 = arith.constant 0.000000e+00 : f32
    %218 = vector.broadcast %cst_79 : f32 to vector<1x16xf32>
    %219 = arith.subf %218, %149 : vector<1x16xf32>
    %cst_80 = arith.constant 1.000000e-01 : f32
    %220 = vector.broadcast %cst_80 : f32 to vector<1x16xf32>
    %221 = arith.mulf %219, %220 : vector<1x16xf32>
    %cst_81 = arith.constant 1.000000e-03 : f32
    %222 = vector.broadcast %cst_81 : f32 to vector<1x16xf32>
    %223 = arith.mulf %222, %203 : vector<1x16xf32>
    %224 = arith.addf %221, %223 : vector<1x16xf32>
    %cst_82 = arith.constant 5.000000e-02 : f32
    %225 = vector.broadcast %cst_82 : f32 to vector<1x16xf32>
    %226 = arith.mulf %225, %224 : vector<1x16xf32>
    %227 = arith.addf %149, %226 : vector<1x16xf32>
    %228 = arith.addf %227, %151 : vector<1x16xf32>
    %cst_83 = arith.constant 1.53846157 : f32
    %229 = vector.broadcast %cst_83 : f32 to vector<1x16xf32>
    %230 = arith.mulf %229, %112 : vector<1x16xf32>
    %231 = arith.subf %146, %230 : vector<1x16xf32>
    %cst_84 = arith.constant 1.000000e+00 : f32
    %232 = vector.broadcast %cst_84 : f32 to vector<1x16xf32>
    %233 = arith.subf %115, %232 : vector<1x16xf32>
    %cst_85 = arith.constant 2.43902445 : f32
    %234 = vector.broadcast %cst_85 : f32 to vector<1x16xf32>
    %235 = arith.mulf %234, %233 : vector<1x16xf32>
    %236 = arith.subf %231, %235 : vector<1x16xf32>
    %cst_86 = arith.constant 5.000000e-02 : f32
    %237 = vector.broadcast %cst_86 : f32 to vector<1x16xf32>
    %238 = arith.mulf %237, %236 : vector<1x16xf32>
    %239 = arith.addf %112, %238 : vector<1x16xf32>
    %cst_87 = arith.constant 5.000000e-02 : f32
    %240 = vector.broadcast %cst_87 : f32 to vector<1x16xf32>
    %241 = arith.mulf %240, %112 : vector<1x16xf32>
    %242 = arith.addf %115, %241 : vector<1x16xf32>
    %243 = math.log %131 : vector<1x16xf32>
    %cst_88 = arith.constant 3.125000e+00 : f32
    %244 = vector.broadcast %cst_88 : f32 to vector<1x16xf32>
    %245 = arith.mulf %244, %243 : vector<1x16xf32>
    %246 = math.exp %245 : vector<1x16xf32>
    %cst_89 = arith.constant 2.125000e+00 : f32
    %247 = vector.broadcast %cst_89 : f32 to vector<1x16xf32>
    %248 = arith.mulf %247, %243 : vector<1x16xf32>
    %249 = math.exp %248 : vector<1x16xf32>
    %cst_90 = arith.constant -0.415515453 : f32
    %250 = vector.broadcast %cst_90 : f32 to vector<1x16xf32>
    %251 = arith.divf %250, %115 : vector<1x16xf32>
    %252 = math.exp %251 : vector<1x16xf32>
    %253 = arith.subf %115, %246 : vector<1x16xf32>
    %cst_91 = arith.constant 5.000000e-02 : f32
    %254 = vector.broadcast %cst_91 : f32 to vector<1x16xf32>
    %255 = arith.mulf %254, %253 : vector<1x16xf32>
    %cst_92 = arith.constant 1.02040815 : f32
    %256 = vector.broadcast %cst_92 : f32 to vector<1x16xf32>
    %257 = arith.mulf %255, %256 : vector<1x16xf32>
    %258 = arith.addf %131, %257 : vector<1x16xf32>
    %cst_93 = arith.constant 1.000000e+00 : f32
    %259 = vector.broadcast %cst_93 : f32 to vector<1x16xf32>
    %260 = arith.subf %259, %252 : vector<1x16xf32>
    %261 = arith.mulf %115, %260 : vector<1x16xf32>
    %cst_94 = arith.constant 2.94117641 : f32
    %262 = vector.broadcast %cst_94 : f32 to vector<1x16xf32>
    %263 = arith.mulf %261, %262 : vector<1x16xf32>
    %264 = arith.mulf %143, %249 : vector<1x16xf32>
    %265 = arith.subf %263, %264 : vector<1x16xf32>
    %cst_95 = arith.constant 5.000000e-02 : f32
    %266 = vector.broadcast %cst_95 : f32 to vector<1x16xf32>
    %267 = arith.mulf %266, %265 : vector<1x16xf32>
    %cst_96 = arith.constant 1.02040815 : f32
    %268 = vector.broadcast %cst_96 : f32 to vector<1x16xf32>
    %269 = arith.mulf %267, %268 : vector<1x16xf32>
    %270 = arith.addf %143, %269 : vector<1x16xf32>
    %cst_97 = arith.constant 0.000000e+00 : f32
    %271 = vector.broadcast %cst_97 : f32 to vector<1x16xf32>
    %272 = arith.maximumf %217, %271 : vector<1x16xf32>
    %273 = math.tanh %272 : vector<1x16xf32>
    %cst_98 = arith.constant 0.000000e+00 : f32
    %274 = vector.broadcast %cst_98 : f32 to vector<1x16xf32>
    %275 = arith.maximumf %228, %274 : vector<1x16xf32>
    %276 = math.tanh %275 : vector<1x16xf32>
    %277 = vector.extract_strided_slice %16 {offsets = [2, 0], sizes = [1, 16], strides = [1, 1]} : vector<8x16xf32> to vector<1x16xf32>
    %278 = vector.extract_strided_slice %20 {offsets = [2, 0], sizes = [1, 16], strides = [1, 1]} : vector<8x16xf32> to vector<1x16xf32>
    %279 = vector.extract_strided_slice %22 {offsets = [2, 0], sizes = [1, 16], strides = [1, 1]} : vector<8x16xf32> to vector<1x16xf32>
    %cst_99 = arith.constant dense<0.000000e+00> : vector<1x16xf32>
    %280 = tpu.matmul %273, %3, %cst_99 {dimension_numbers = #tpu.dot_dimension_numbers<[1], [0], [0], [1], [0, 0, 1, 1], [], []>} : vector<1x16xf32>, vector<16x16xf32>, vector<1x16xf32> -> vector<1x16xf32>
    %cst_100 = arith.constant 1.010000e-01 : f32
    %281 = vector.broadcast %cst_100 : f32 to vector<1x16xf32>
    %282 = arith.mulf %281, %273 : vector<1x16xf32>
    %cst_101 = arith.constant 3.200000e-01 : f32
    %283 = vector.broadcast %cst_101 : f32 to vector<1x16xf32>
    %284 = arith.addf %283, %282 : vector<1x16xf32>
    %285 = arith.addf %284, %280 : vector<1x16xf32>
    %cst_102 = arith.constant 1.010000e-01 : f32
    %286 = vector.broadcast %cst_102 : f32 to vector<1x16xf32>
    %287 = arith.mulf %286, %276 : vector<1x16xf32>
    %288 = arith.subf %285, %287 : vector<1x16xf32>
    %cst_103 = arith.constant 0.000000e+00 : f32
    %289 = vector.broadcast %cst_103 : f32 to vector<1x16xf32>
    %290 = arith.maximumf %288, %289 : vector<1x16xf32>
    %291 = arith.addf %290, %279 : vector<1x16xf32>
    %cst_104 = arith.constant 1.010000e-01 : f32
    %292 = vector.broadcast %cst_104 : f32 to vector<1x16xf32>
    %293 = arith.mulf %292, %273 : vector<1x16xf32>
    %cst_105 = arith.constant 2.240000e-01 : f32
    %294 = vector.broadcast %cst_105 : f32 to vector<1x16xf32>
    %295 = arith.addf %294, %293 : vector<1x16xf32>
    %296 = arith.subf %295, %276 : vector<1x16xf32>
    %cst_106 = arith.constant 0.000000e+00 : f32
    %297 = vector.broadcast %cst_106 : f32 to vector<1x16xf32>
    %298 = arith.maximumf %296, %297 : vector<1x16xf32>
    %cst_107 = arith.constant 3.100000e+02 : f32
    %299 = vector.broadcast %cst_107 : f32 to vector<1x16xf32>
    %300 = arith.mulf %299, %291 : vector<1x16xf32>
    %cst_108 = arith.constant 1.250000e+02 : f32
    %301 = vector.broadcast %cst_108 : f32 to vector<1x16xf32>
    %302 = arith.subf %300, %301 : vector<1x16xf32>
    %303 = math.absf %302 : vector<1x16xf32>
    %cst_109 = arith.constant 9.99999974E-6 : f32
    %304 = vector.broadcast %cst_109 : f32 to vector<1x16xf32>
    %305 = arith.addf %304, %303 : vector<1x16xf32>
    %cst_110 = arith.constant -1.600000e-01 : f32
    %306 = vector.broadcast %cst_110 : f32 to vector<1x16xf32>
    %307 = arith.mulf %306, %302 : vector<1x16xf32>
    %308 = math.exp %307 : vector<1x16xf32>
    %cst_111 = arith.constant 1.000000e+00 : f32
    %309 = vector.broadcast %cst_111 : f32 to vector<1x16xf32>
    %310 = arith.subf %309, %308 : vector<1x16xf32>
    %311 = math.absf %310 : vector<1x16xf32>
    %cst_112 = arith.constant 1.600000e-06 : f32
    %312 = vector.broadcast %cst_112 : f32 to vector<1x16xf32>
    %313 = arith.addf %312, %311 : vector<1x16xf32>
    %314 = arith.divf %305, %313 : vector<1x16xf32>
    %cst_113 = arith.constant 6.150000e+02 : f32
    %315 = vector.broadcast %cst_113 : f32 to vector<1x16xf32>
    %316 = arith.mulf %315, %298 : vector<1x16xf32>
    %cst_114 = arith.constant 1.770000e+02 : f32
    %317 = vector.broadcast %cst_114 : f32 to vector<1x16xf32>
    %318 = arith.subf %316, %317 : vector<1x16xf32>
    %319 = math.absf %318 : vector<1x16xf32>
    %cst_115 = arith.constant 9.99999974E-6 : f32
    %320 = vector.broadcast %cst_115 : f32 to vector<1x16xf32>
    %321 = arith.addf %320, %319 : vector<1x16xf32>
    %cst_116 = arith.constant -8.700000e-02 : f32
    %322 = vector.broadcast %cst_116 : f32 to vector<1x16xf32>
    %323 = arith.mulf %322, %318 : vector<1x16xf32>
    %324 = math.exp %323 : vector<1x16xf32>
    %cst_117 = arith.constant 1.000000e+00 : f32
    %325 = vector.broadcast %cst_117 : f32 to vector<1x16xf32>
    %326 = arith.subf %325, %324 : vector<1x16xf32>
    %327 = math.absf %326 : vector<1x16xf32>
    %cst_118 = arith.constant 8.700000e-07 : f32
    %328 = vector.broadcast %cst_118 : f32 to vector<1x16xf32>
    %329 = arith.addf %328, %327 : vector<1x16xf32>
    %330 = arith.divf %321, %329 : vector<1x16xf32>
    %cst_119 = arith.constant 0.000000e+00 : f32
    %331 = vector.broadcast %cst_119 : f32 to vector<1x16xf32>
    %332 = arith.subf %331, %273 : vector<1x16xf32>
    %cst_120 = arith.constant 0.00999999977 : f32
    %333 = vector.broadcast %cst_120 : f32 to vector<1x16xf32>
    %334 = arith.mulf %332, %333 : vector<1x16xf32>
    %cst_121 = arith.constant 1.000000e+00 : f32
    %335 = vector.broadcast %cst_121 : f32 to vector<1x16xf32>
    %336 = arith.subf %335, %273 : vector<1x16xf32>
    %cst_122 = arith.constant 6.410000e-04 : f32
    %337 = vector.broadcast %cst_122 : f32 to vector<1x16xf32>
    %338 = arith.mulf %337, %336 : vector<1x16xf32>
    %339 = arith.mulf %338, %314 : vector<1x16xf32>
    %340 = arith.addf %334, %339 : vector<1x16xf32>
    %cst_123 = arith.constant 5.000000e-02 : f32
    %341 = vector.broadcast %cst_123 : f32 to vector<1x16xf32>
    %342 = arith.mulf %341, %340 : vector<1x16xf32>
    %343 = arith.addf %273, %342 : vector<1x16xf32>
    %344 = arith.addf %343, %277 : vector<1x16xf32>
    %cst_124 = arith.constant 0.000000e+00 : f32
    %345 = vector.broadcast %cst_124 : f32 to vector<1x16xf32>
    %346 = arith.subf %345, %276 : vector<1x16xf32>
    %cst_125 = arith.constant 1.000000e-01 : f32
    %347 = vector.broadcast %cst_125 : f32 to vector<1x16xf32>
    %348 = arith.mulf %346, %347 : vector<1x16xf32>
    %cst_126 = arith.constant 1.000000e-03 : f32
    %349 = vector.broadcast %cst_126 : f32 to vector<1x16xf32>
    %350 = arith.mulf %349, %330 : vector<1x16xf32>
    %351 = arith.addf %348, %350 : vector<1x16xf32>
    %cst_127 = arith.constant 5.000000e-02 : f32
    %352 = vector.broadcast %cst_127 : f32 to vector<1x16xf32>
    %353 = arith.mulf %352, %351 : vector<1x16xf32>
    %354 = arith.addf %276, %353 : vector<1x16xf32>
    %355 = arith.addf %354, %278 : vector<1x16xf32>
    %cst_128 = arith.constant 1.53846157 : f32
    %356 = vector.broadcast %cst_128 : f32 to vector<1x16xf32>
    %357 = arith.mulf %356, %239 : vector<1x16xf32>
    %358 = arith.subf %273, %357 : vector<1x16xf32>
    %cst_129 = arith.constant 1.000000e+00 : f32
    %359 = vector.broadcast %cst_129 : f32 to vector<1x16xf32>
    %360 = arith.subf %242, %359 : vector<1x16xf32>
    %cst_130 = arith.constant 2.43902445 : f32
    %361 = vector.broadcast %cst_130 : f32 to vector<1x16xf32>
    %362 = arith.mulf %361, %360 : vector<1x16xf32>
    %363 = arith.subf %358, %362 : vector<1x16xf32>
    %cst_131 = arith.constant 5.000000e-02 : f32
    %364 = vector.broadcast %cst_131 : f32 to vector<1x16xf32>
    %365 = arith.mulf %364, %363 : vector<1x16xf32>
    %366 = arith.addf %239, %365 : vector<1x16xf32>
    %cst_132 = arith.constant 5.000000e-02 : f32
    %367 = vector.broadcast %cst_132 : f32 to vector<1x16xf32>
    %368 = arith.mulf %367, %239 : vector<1x16xf32>
    %369 = arith.addf %242, %368 : vector<1x16xf32>
    %370 = math.log %258 : vector<1x16xf32>
    %cst_133 = arith.constant 3.125000e+00 : f32
    %371 = vector.broadcast %cst_133 : f32 to vector<1x16xf32>
    %372 = arith.mulf %371, %370 : vector<1x16xf32>
    %373 = math.exp %372 : vector<1x16xf32>
    %cst_134 = arith.constant 2.125000e+00 : f32
    %374 = vector.broadcast %cst_134 : f32 to vector<1x16xf32>
    %375 = arith.mulf %374, %370 : vector<1x16xf32>
    %376 = math.exp %375 : vector<1x16xf32>
    %cst_135 = arith.constant -0.415515453 : f32
    %377 = vector.broadcast %cst_135 : f32 to vector<1x16xf32>
    %378 = arith.divf %377, %242 : vector<1x16xf32>
    %379 = math.exp %378 : vector<1x16xf32>
    %380 = arith.subf %242, %373 : vector<1x16xf32>
    %cst_136 = arith.constant 5.000000e-02 : f32
    %381 = vector.broadcast %cst_136 : f32 to vector<1x16xf32>
    %382 = arith.mulf %381, %380 : vector<1x16xf32>
    %cst_137 = arith.constant 1.02040815 : f32
    %383 = vector.broadcast %cst_137 : f32 to vector<1x16xf32>
    %384 = arith.mulf %382, %383 : vector<1x16xf32>
    %385 = arith.addf %258, %384 : vector<1x16xf32>
    %cst_138 = arith.constant 1.000000e+00 : f32
    %386 = vector.broadcast %cst_138 : f32 to vector<1x16xf32>
    %387 = arith.subf %386, %379 : vector<1x16xf32>
    %388 = arith.mulf %242, %387 : vector<1x16xf32>
    %cst_139 = arith.constant 2.94117641 : f32
    %389 = vector.broadcast %cst_139 : f32 to vector<1x16xf32>
    %390 = arith.mulf %388, %389 : vector<1x16xf32>
    %391 = arith.mulf %270, %376 : vector<1x16xf32>
    %392 = arith.subf %390, %391 : vector<1x16xf32>
    %cst_140 = arith.constant 5.000000e-02 : f32
    %393 = vector.broadcast %cst_140 : f32 to vector<1x16xf32>
    %394 = arith.mulf %393, %392 : vector<1x16xf32>
    %cst_141 = arith.constant 1.02040815 : f32
    %395 = vector.broadcast %cst_141 : f32 to vector<1x16xf32>
    %396 = arith.mulf %394, %395 : vector<1x16xf32>
    %397 = arith.addf %270, %396 : vector<1x16xf32>
    %cst_142 = arith.constant 0.000000e+00 : f32
    %398 = vector.broadcast %cst_142 : f32 to vector<1x16xf32>
    %399 = arith.maximumf %344, %398 : vector<1x16xf32>
    %400 = math.tanh %399 : vector<1x16xf32>
    %cst_143 = arith.constant 0.000000e+00 : f32
    %401 = vector.broadcast %cst_143 : f32 to vector<1x16xf32>
    %402 = arith.maximumf %355, %401 : vector<1x16xf32>
    %403 = math.tanh %402 : vector<1x16xf32>
    %404 = vector.extract_strided_slice %16 {offsets = [3, 0], sizes = [1, 16], strides = [1, 1]} : vector<8x16xf32> to vector<1x16xf32>
    %405 = vector.extract_strided_slice %20 {offsets = [3, 0], sizes = [1, 16], strides = [1, 1]} : vector<8x16xf32> to vector<1x16xf32>
    %406 = vector.extract_strided_slice %22 {offsets = [3, 0], sizes = [1, 16], strides = [1, 1]} : vector<8x16xf32> to vector<1x16xf32>
    %cst_144 = arith.constant dense<0.000000e+00> : vector<1x16xf32>
    %407 = tpu.matmul %400, %3, %cst_144 {dimension_numbers = #tpu.dot_dimension_numbers<[1], [0], [0], [1], [0, 0, 1, 1], [], []>} : vector<1x16xf32>, vector<16x16xf32>, vector<1x16xf32> -> vector<1x16xf32>
    %cst_145 = arith.constant 1.010000e-01 : f32
    %408 = vector.broadcast %cst_145 : f32 to vector<1x16xf32>
    %409 = arith.mulf %408, %400 : vector<1x16xf32>
    %cst_146 = arith.constant 3.200000e-01 : f32
    %410 = vector.broadcast %cst_146 : f32 to vector<1x16xf32>
    %411 = arith.addf %410, %409 : vector<1x16xf32>
    %412 = arith.addf %411, %407 : vector<1x16xf32>
    %cst_147 = arith.constant 1.010000e-01 : f32
    %413 = vector.broadcast %cst_147 : f32 to vector<1x16xf32>
    %414 = arith.mulf %413, %403 : vector<1x16xf32>
    %415 = arith.subf %412, %414 : vector<1x16xf32>
    %cst_148 = arith.constant 0.000000e+00 : f32
    %416 = vector.broadcast %cst_148 : f32 to vector<1x16xf32>
    %417 = arith.maximumf %415, %416 : vector<1x16xf32>
    %418 = arith.addf %417, %406 : vector<1x16xf32>
    %cst_149 = arith.constant 1.010000e-01 : f32
    %419 = vector.broadcast %cst_149 : f32 to vector<1x16xf32>
    %420 = arith.mulf %419, %400 : vector<1x16xf32>
    %cst_150 = arith.constant 2.240000e-01 : f32
    %421 = vector.broadcast %cst_150 : f32 to vector<1x16xf32>
    %422 = arith.addf %421, %420 : vector<1x16xf32>
    %423 = arith.subf %422, %403 : vector<1x16xf32>
    %cst_151 = arith.constant 0.000000e+00 : f32
    %424 = vector.broadcast %cst_151 : f32 to vector<1x16xf32>
    %425 = arith.maximumf %423, %424 : vector<1x16xf32>
    %cst_152 = arith.constant 3.100000e+02 : f32
    %426 = vector.broadcast %cst_152 : f32 to vector<1x16xf32>
    %427 = arith.mulf %426, %418 : vector<1x16xf32>
    %cst_153 = arith.constant 1.250000e+02 : f32
    %428 = vector.broadcast %cst_153 : f32 to vector<1x16xf32>
    %429 = arith.subf %427, %428 : vector<1x16xf32>
    %430 = math.absf %429 : vector<1x16xf32>
    %cst_154 = arith.constant 9.99999974E-6 : f32
    %431 = vector.broadcast %cst_154 : f32 to vector<1x16xf32>
    %432 = arith.addf %431, %430 : vector<1x16xf32>
    %cst_155 = arith.constant -1.600000e-01 : f32
    %433 = vector.broadcast %cst_155 : f32 to vector<1x16xf32>
    %434 = arith.mulf %433, %429 : vector<1x16xf32>
    %435 = math.exp %434 : vector<1x16xf32>
    %cst_156 = arith.constant 1.000000e+00 : f32
    %436 = vector.broadcast %cst_156 : f32 to vector<1x16xf32>
    %437 = arith.subf %436, %435 : vector<1x16xf32>
    %438 = math.absf %437 : vector<1x16xf32>
    %cst_157 = arith.constant 1.600000e-06 : f32
    %439 = vector.broadcast %cst_157 : f32 to vector<1x16xf32>
    %440 = arith.addf %439, %438 : vector<1x16xf32>
    %441 = arith.divf %432, %440 : vector<1x16xf32>
    %cst_158 = arith.constant 6.150000e+02 : f32
    %442 = vector.broadcast %cst_158 : f32 to vector<1x16xf32>
    %443 = arith.mulf %442, %425 : vector<1x16xf32>
    %cst_159 = arith.constant 1.770000e+02 : f32
    %444 = vector.broadcast %cst_159 : f32 to vector<1x16xf32>
    %445 = arith.subf %443, %444 : vector<1x16xf32>
    %446 = math.absf %445 : vector<1x16xf32>
    %cst_160 = arith.constant 9.99999974E-6 : f32
    %447 = vector.broadcast %cst_160 : f32 to vector<1x16xf32>
    %448 = arith.addf %447, %446 : vector<1x16xf32>
    %cst_161 = arith.constant -8.700000e-02 : f32
    %449 = vector.broadcast %cst_161 : f32 to vector<1x16xf32>
    %450 = arith.mulf %449, %445 : vector<1x16xf32>
    %451 = math.exp %450 : vector<1x16xf32>
    %cst_162 = arith.constant 1.000000e+00 : f32
    %452 = vector.broadcast %cst_162 : f32 to vector<1x16xf32>
    %453 = arith.subf %452, %451 : vector<1x16xf32>
    %454 = math.absf %453 : vector<1x16xf32>
    %cst_163 = arith.constant 8.700000e-07 : f32
    %455 = vector.broadcast %cst_163 : f32 to vector<1x16xf32>
    %456 = arith.addf %455, %454 : vector<1x16xf32>
    %457 = arith.divf %448, %456 : vector<1x16xf32>
    %cst_164 = arith.constant 0.000000e+00 : f32
    %458 = vector.broadcast %cst_164 : f32 to vector<1x16xf32>
    %459 = arith.subf %458, %400 : vector<1x16xf32>
    %cst_165 = arith.constant 0.00999999977 : f32
    %460 = vector.broadcast %cst_165 : f32 to vector<1x16xf32>
    %461 = arith.mulf %459, %460 : vector<1x16xf32>
    %cst_166 = arith.constant 1.000000e+00 : f32
    %462 = vector.broadcast %cst_166 : f32 to vector<1x16xf32>
    %463 = arith.subf %462, %400 : vector<1x16xf32>
    %cst_167 = arith.constant 6.410000e-04 : f32
    %464 = vector.broadcast %cst_167 : f32 to vector<1x16xf32>
    %465 = arith.mulf %464, %463 : vector<1x16xf32>
    %466 = arith.mulf %465, %441 : vector<1x16xf32>
    %467 = arith.addf %461, %466 : vector<1x16xf32>
    %cst_168 = arith.constant 5.000000e-02 : f32
    %468 = vector.broadcast %cst_168 : f32 to vector<1x16xf32>
    %469 = arith.mulf %468, %467 : vector<1x16xf32>
    %470 = arith.addf %400, %469 : vector<1x16xf32>
    %471 = arith.addf %470, %404 : vector<1x16xf32>
    %cst_169 = arith.constant 0.000000e+00 : f32
    %472 = vector.broadcast %cst_169 : f32 to vector<1x16xf32>
    %473 = arith.subf %472, %403 : vector<1x16xf32>
    %cst_170 = arith.constant 1.000000e-01 : f32
    %474 = vector.broadcast %cst_170 : f32 to vector<1x16xf32>
    %475 = arith.mulf %473, %474 : vector<1x16xf32>
    %cst_171 = arith.constant 1.000000e-03 : f32
    %476 = vector.broadcast %cst_171 : f32 to vector<1x16xf32>
    %477 = arith.mulf %476, %457 : vector<1x16xf32>
    %478 = arith.addf %475, %477 : vector<1x16xf32>
    %cst_172 = arith.constant 5.000000e-02 : f32
    %479 = vector.broadcast %cst_172 : f32 to vector<1x16xf32>
    %480 = arith.mulf %479, %478 : vector<1x16xf32>
    %481 = arith.addf %403, %480 : vector<1x16xf32>
    %482 = arith.addf %481, %405 : vector<1x16xf32>
    %cst_173 = arith.constant 1.53846157 : f32
    %483 = vector.broadcast %cst_173 : f32 to vector<1x16xf32>
    %484 = arith.mulf %483, %366 : vector<1x16xf32>
    %485 = arith.subf %400, %484 : vector<1x16xf32>
    %cst_174 = arith.constant 1.000000e+00 : f32
    %486 = vector.broadcast %cst_174 : f32 to vector<1x16xf32>
    %487 = arith.subf %369, %486 : vector<1x16xf32>
    %cst_175 = arith.constant 2.43902445 : f32
    %488 = vector.broadcast %cst_175 : f32 to vector<1x16xf32>
    %489 = arith.mulf %488, %487 : vector<1x16xf32>
    %490 = arith.subf %485, %489 : vector<1x16xf32>
    %cst_176 = arith.constant 5.000000e-02 : f32
    %491 = vector.broadcast %cst_176 : f32 to vector<1x16xf32>
    %492 = arith.mulf %491, %490 : vector<1x16xf32>
    %493 = arith.addf %366, %492 : vector<1x16xf32>
    %cst_177 = arith.constant 5.000000e-02 : f32
    %494 = vector.broadcast %cst_177 : f32 to vector<1x16xf32>
    %495 = arith.mulf %494, %366 : vector<1x16xf32>
    %496 = arith.addf %369, %495 : vector<1x16xf32>
    %497 = math.log %385 : vector<1x16xf32>
    %cst_178 = arith.constant 3.125000e+00 : f32
    %498 = vector.broadcast %cst_178 : f32 to vector<1x16xf32>
    %499 = arith.mulf %498, %497 : vector<1x16xf32>
    %500 = math.exp %499 : vector<1x16xf32>
    %cst_179 = arith.constant 2.125000e+00 : f32
    %501 = vector.broadcast %cst_179 : f32 to vector<1x16xf32>
    %502 = arith.mulf %501, %497 : vector<1x16xf32>
    %503 = math.exp %502 : vector<1x16xf32>
    %cst_180 = arith.constant -0.415515453 : f32
    %504 = vector.broadcast %cst_180 : f32 to vector<1x16xf32>
    %505 = arith.divf %504, %369 : vector<1x16xf32>
    %506 = math.exp %505 : vector<1x16xf32>
    %507 = arith.subf %369, %500 : vector<1x16xf32>
    %cst_181 = arith.constant 5.000000e-02 : f32
    %508 = vector.broadcast %cst_181 : f32 to vector<1x16xf32>
    %509 = arith.mulf %508, %507 : vector<1x16xf32>
    %cst_182 = arith.constant 1.02040815 : f32
    %510 = vector.broadcast %cst_182 : f32 to vector<1x16xf32>
    %511 = arith.mulf %509, %510 : vector<1x16xf32>
    %512 = arith.addf %385, %511 : vector<1x16xf32>
    %cst_183 = arith.constant 1.000000e+00 : f32
    %513 = vector.broadcast %cst_183 : f32 to vector<1x16xf32>
    %514 = arith.subf %513, %506 : vector<1x16xf32>
    %515 = arith.mulf %369, %514 : vector<1x16xf32>
    %cst_184 = arith.constant 2.94117641 : f32
    %516 = vector.broadcast %cst_184 : f32 to vector<1x16xf32>
    %517 = arith.mulf %515, %516 : vector<1x16xf32>
    %518 = arith.mulf %397, %503 : vector<1x16xf32>
    %519 = arith.subf %517, %518 : vector<1x16xf32>
    %cst_185 = arith.constant 5.000000e-02 : f32
    %520 = vector.broadcast %cst_185 : f32 to vector<1x16xf32>
    %521 = arith.mulf %520, %519 : vector<1x16xf32>
    %cst_186 = arith.constant 1.02040815 : f32
    %522 = vector.broadcast %cst_186 : f32 to vector<1x16xf32>
    %523 = arith.mulf %521, %522 : vector<1x16xf32>
    %524 = arith.addf %397, %523 : vector<1x16xf32>
    %cst_187 = arith.constant 0.000000e+00 : f32
    %525 = vector.broadcast %cst_187 : f32 to vector<1x16xf32>
    %526 = arith.maximumf %471, %525 : vector<1x16xf32>
    %527 = math.tanh %526 : vector<1x16xf32>
    %cst_188 = arith.constant 0.000000e+00 : f32
    %528 = vector.broadcast %cst_188 : f32 to vector<1x16xf32>
    %529 = arith.maximumf %482, %528 : vector<1x16xf32>
    %530 = math.tanh %529 : vector<1x16xf32>
    %531 = vector.extract_strided_slice %16 {offsets = [4, 0], sizes = [1, 16], strides = [1, 1]} : vector<8x16xf32> to vector<1x16xf32>
    %532 = vector.extract_strided_slice %20 {offsets = [4, 0], sizes = [1, 16], strides = [1, 1]} : vector<8x16xf32> to vector<1x16xf32>
    %533 = vector.extract_strided_slice %22 {offsets = [4, 0], sizes = [1, 16], strides = [1, 1]} : vector<8x16xf32> to vector<1x16xf32>
    %cst_189 = arith.constant dense<0.000000e+00> : vector<1x16xf32>
    %534 = tpu.matmul %527, %3, %cst_189 {dimension_numbers = #tpu.dot_dimension_numbers<[1], [0], [0], [1], [0, 0, 1, 1], [], []>} : vector<1x16xf32>, vector<16x16xf32>, vector<1x16xf32> -> vector<1x16xf32>
    %cst_190 = arith.constant 1.010000e-01 : f32
    %535 = vector.broadcast %cst_190 : f32 to vector<1x16xf32>
    %536 = arith.mulf %535, %527 : vector<1x16xf32>
    %cst_191 = arith.constant 3.200000e-01 : f32
    %537 = vector.broadcast %cst_191 : f32 to vector<1x16xf32>
    %538 = arith.addf %537, %536 : vector<1x16xf32>
    %539 = arith.addf %538, %534 : vector<1x16xf32>
    %cst_192 = arith.constant 1.010000e-01 : f32
    %540 = vector.broadcast %cst_192 : f32 to vector<1x16xf32>
    %541 = arith.mulf %540, %530 : vector<1x16xf32>
    %542 = arith.subf %539, %541 : vector<1x16xf32>
    %cst_193 = arith.constant 0.000000e+00 : f32
    %543 = vector.broadcast %cst_193 : f32 to vector<1x16xf32>
    %544 = arith.maximumf %542, %543 : vector<1x16xf32>
    %545 = arith.addf %544, %533 : vector<1x16xf32>
    %cst_194 = arith.constant 1.010000e-01 : f32
    %546 = vector.broadcast %cst_194 : f32 to vector<1x16xf32>
    %547 = arith.mulf %546, %527 : vector<1x16xf32>
    %cst_195 = arith.constant 2.240000e-01 : f32
    %548 = vector.broadcast %cst_195 : f32 to vector<1x16xf32>
    %549 = arith.addf %548, %547 : vector<1x16xf32>
    %550 = arith.subf %549, %530 : vector<1x16xf32>
    %cst_196 = arith.constant 0.000000e+00 : f32
    %551 = vector.broadcast %cst_196 : f32 to vector<1x16xf32>
    %552 = arith.maximumf %550, %551 : vector<1x16xf32>
    %cst_197 = arith.constant 3.100000e+02 : f32
    %553 = vector.broadcast %cst_197 : f32 to vector<1x16xf32>
    %554 = arith.mulf %553, %545 : vector<1x16xf32>
    %cst_198 = arith.constant 1.250000e+02 : f32
    %555 = vector.broadcast %cst_198 : f32 to vector<1x16xf32>
    %556 = arith.subf %554, %555 : vector<1x16xf32>
    %557 = math.absf %556 : vector<1x16xf32>
    %cst_199 = arith.constant 9.99999974E-6 : f32
    %558 = vector.broadcast %cst_199 : f32 to vector<1x16xf32>
    %559 = arith.addf %558, %557 : vector<1x16xf32>
    %cst_200 = arith.constant -1.600000e-01 : f32
    %560 = vector.broadcast %cst_200 : f32 to vector<1x16xf32>
    %561 = arith.mulf %560, %556 : vector<1x16xf32>
    %562 = math.exp %561 : vector<1x16xf32>
    %cst_201 = arith.constant 1.000000e+00 : f32
    %563 = vector.broadcast %cst_201 : f32 to vector<1x16xf32>
    %564 = arith.subf %563, %562 : vector<1x16xf32>
    %565 = math.absf %564 : vector<1x16xf32>
    %cst_202 = arith.constant 1.600000e-06 : f32
    %566 = vector.broadcast %cst_202 : f32 to vector<1x16xf32>
    %567 = arith.addf %566, %565 : vector<1x16xf32>
    %568 = arith.divf %559, %567 : vector<1x16xf32>
    %cst_203 = arith.constant 6.150000e+02 : f32
    %569 = vector.broadcast %cst_203 : f32 to vector<1x16xf32>
    %570 = arith.mulf %569, %552 : vector<1x16xf32>
    %cst_204 = arith.constant 1.770000e+02 : f32
    %571 = vector.broadcast %cst_204 : f32 to vector<1x16xf32>
    %572 = arith.subf %570, %571 : vector<1x16xf32>
    %573 = math.absf %572 : vector<1x16xf32>
    %cst_205 = arith.constant 9.99999974E-6 : f32
    %574 = vector.broadcast %cst_205 : f32 to vector<1x16xf32>
    %575 = arith.addf %574, %573 : vector<1x16xf32>
    %cst_206 = arith.constant -8.700000e-02 : f32
    %576 = vector.broadcast %cst_206 : f32 to vector<1x16xf32>
    %577 = arith.mulf %576, %572 : vector<1x16xf32>
    %578 = math.exp %577 : vector<1x16xf32>
    %cst_207 = arith.constant 1.000000e+00 : f32
    %579 = vector.broadcast %cst_207 : f32 to vector<1x16xf32>
    %580 = arith.subf %579, %578 : vector<1x16xf32>
    %581 = math.absf %580 : vector<1x16xf32>
    %cst_208 = arith.constant 8.700000e-07 : f32
    %582 = vector.broadcast %cst_208 : f32 to vector<1x16xf32>
    %583 = arith.addf %582, %581 : vector<1x16xf32>
    %584 = arith.divf %575, %583 : vector<1x16xf32>
    %cst_209 = arith.constant 0.000000e+00 : f32
    %585 = vector.broadcast %cst_209 : f32 to vector<1x16xf32>
    %586 = arith.subf %585, %527 : vector<1x16xf32>
    %cst_210 = arith.constant 0.00999999977 : f32
    %587 = vector.broadcast %cst_210 : f32 to vector<1x16xf32>
    %588 = arith.mulf %586, %587 : vector<1x16xf32>
    %cst_211 = arith.constant 1.000000e+00 : f32
    %589 = vector.broadcast %cst_211 : f32 to vector<1x16xf32>
    %590 = arith.subf %589, %527 : vector<1x16xf32>
    %cst_212 = arith.constant 6.410000e-04 : f32
    %591 = vector.broadcast %cst_212 : f32 to vector<1x16xf32>
    %592 = arith.mulf %591, %590 : vector<1x16xf32>
    %593 = arith.mulf %592, %568 : vector<1x16xf32>
    %594 = arith.addf %588, %593 : vector<1x16xf32>
    %cst_213 = arith.constant 5.000000e-02 : f32
    %595 = vector.broadcast %cst_213 : f32 to vector<1x16xf32>
    %596 = arith.mulf %595, %594 : vector<1x16xf32>
    %597 = arith.addf %527, %596 : vector<1x16xf32>
    %598 = arith.addf %597, %531 : vector<1x16xf32>
    %cst_214 = arith.constant 0.000000e+00 : f32
    %599 = vector.broadcast %cst_214 : f32 to vector<1x16xf32>
    %600 = arith.subf %599, %530 : vector<1x16xf32>
    %cst_215 = arith.constant 1.000000e-01 : f32
    %601 = vector.broadcast %cst_215 : f32 to vector<1x16xf32>
    %602 = arith.mulf %600, %601 : vector<1x16xf32>
    %cst_216 = arith.constant 1.000000e-03 : f32
    %603 = vector.broadcast %cst_216 : f32 to vector<1x16xf32>
    %604 = arith.mulf %603, %584 : vector<1x16xf32>
    %605 = arith.addf %602, %604 : vector<1x16xf32>
    %cst_217 = arith.constant 5.000000e-02 : f32
    %606 = vector.broadcast %cst_217 : f32 to vector<1x16xf32>
    %607 = arith.mulf %606, %605 : vector<1x16xf32>
    %608 = arith.addf %530, %607 : vector<1x16xf32>
    %609 = arith.addf %608, %532 : vector<1x16xf32>
    %cst_218 = arith.constant 1.53846157 : f32
    %610 = vector.broadcast %cst_218 : f32 to vector<1x16xf32>
    %611 = arith.mulf %610, %493 : vector<1x16xf32>
    %612 = arith.subf %527, %611 : vector<1x16xf32>
    %cst_219 = arith.constant 1.000000e+00 : f32
    %613 = vector.broadcast %cst_219 : f32 to vector<1x16xf32>
    %614 = arith.subf %496, %613 : vector<1x16xf32>
    %cst_220 = arith.constant 2.43902445 : f32
    %615 = vector.broadcast %cst_220 : f32 to vector<1x16xf32>
    %616 = arith.mulf %615, %614 : vector<1x16xf32>
    %617 = arith.subf %612, %616 : vector<1x16xf32>
    %cst_221 = arith.constant 5.000000e-02 : f32
    %618 = vector.broadcast %cst_221 : f32 to vector<1x16xf32>
    %619 = arith.mulf %618, %617 : vector<1x16xf32>
    %620 = arith.addf %493, %619 : vector<1x16xf32>
    %cst_222 = arith.constant 5.000000e-02 : f32
    %621 = vector.broadcast %cst_222 : f32 to vector<1x16xf32>
    %622 = arith.mulf %621, %493 : vector<1x16xf32>
    %623 = arith.addf %496, %622 : vector<1x16xf32>
    %624 = math.log %512 : vector<1x16xf32>
    %cst_223 = arith.constant 3.125000e+00 : f32
    %625 = vector.broadcast %cst_223 : f32 to vector<1x16xf32>
    %626 = arith.mulf %625, %624 : vector<1x16xf32>
    %627 = math.exp %626 : vector<1x16xf32>
    %cst_224 = arith.constant 2.125000e+00 : f32
    %628 = vector.broadcast %cst_224 : f32 to vector<1x16xf32>
    %629 = arith.mulf %628, %624 : vector<1x16xf32>
    %630 = math.exp %629 : vector<1x16xf32>
    %cst_225 = arith.constant -0.415515453 : f32
    %631 = vector.broadcast %cst_225 : f32 to vector<1x16xf32>
    %632 = arith.divf %631, %496 : vector<1x16xf32>
    %633 = math.exp %632 : vector<1x16xf32>
    %634 = arith.subf %496, %627 : vector<1x16xf32>
    %cst_226 = arith.constant 5.000000e-02 : f32
    %635 = vector.broadcast %cst_226 : f32 to vector<1x16xf32>
    %636 = arith.mulf %635, %634 : vector<1x16xf32>
    %cst_227 = arith.constant 1.02040815 : f32
    %637 = vector.broadcast %cst_227 : f32 to vector<1x16xf32>
    %638 = arith.mulf %636, %637 : vector<1x16xf32>
    %639 = arith.addf %512, %638 : vector<1x16xf32>
    %cst_228 = arith.constant 1.000000e+00 : f32
    %640 = vector.broadcast %cst_228 : f32 to vector<1x16xf32>
    %641 = arith.subf %640, %633 : vector<1x16xf32>
    %642 = arith.mulf %496, %641 : vector<1x16xf32>
    %cst_229 = arith.constant 2.94117641 : f32
    %643 = vector.broadcast %cst_229 : f32 to vector<1x16xf32>
    %644 = arith.mulf %642, %643 : vector<1x16xf32>
    %645 = arith.mulf %524, %630 : vector<1x16xf32>
    %646 = arith.subf %644, %645 : vector<1x16xf32>
    %cst_230 = arith.constant 5.000000e-02 : f32
    %647 = vector.broadcast %cst_230 : f32 to vector<1x16xf32>
    %648 = arith.mulf %647, %646 : vector<1x16xf32>
    %cst_231 = arith.constant 1.02040815 : f32
    %649 = vector.broadcast %cst_231 : f32 to vector<1x16xf32>
    %650 = arith.mulf %648, %649 : vector<1x16xf32>
    %651 = arith.addf %524, %650 : vector<1x16xf32>
    %cst_232 = arith.constant 0.000000e+00 : f32
    %652 = vector.broadcast %cst_232 : f32 to vector<1x16xf32>
    %653 = arith.maximumf %598, %652 : vector<1x16xf32>
    %654 = math.tanh %653 : vector<1x16xf32>
    %cst_233 = arith.constant 0.000000e+00 : f32
    %655 = vector.broadcast %cst_233 : f32 to vector<1x16xf32>
    %656 = arith.maximumf %609, %655 : vector<1x16xf32>
    %657 = math.tanh %656 : vector<1x16xf32>
    %658 = vector.extract_strided_slice %16 {offsets = [5, 0], sizes = [1, 16], strides = [1, 1]} : vector<8x16xf32> to vector<1x16xf32>
    %659 = vector.extract_strided_slice %20 {offsets = [5, 0], sizes = [1, 16], strides = [1, 1]} : vector<8x16xf32> to vector<1x16xf32>
    %660 = vector.extract_strided_slice %22 {offsets = [5, 0], sizes = [1, 16], strides = [1, 1]} : vector<8x16xf32> to vector<1x16xf32>
    %cst_234 = arith.constant dense<0.000000e+00> : vector<1x16xf32>
    %661 = tpu.matmul %654, %3, %cst_234 {dimension_numbers = #tpu.dot_dimension_numbers<[1], [0], [0], [1], [0, 0, 1, 1], [], []>} : vector<1x16xf32>, vector<16x16xf32>, vector<1x16xf32> -> vector<1x16xf32>
    %cst_235 = arith.constant 1.010000e-01 : f32
    %662 = vector.broadcast %cst_235 : f32 to vector<1x16xf32>
    %663 = arith.mulf %662, %654 : vector<1x16xf32>
    %cst_236 = arith.constant 3.200000e-01 : f32
    %664 = vector.broadcast %cst_236 : f32 to vector<1x16xf32>
    %665 = arith.addf %664, %663 : vector<1x16xf32>
    %666 = arith.addf %665, %661 : vector<1x16xf32>
    %cst_237 = arith.constant 1.010000e-01 : f32
    %667 = vector.broadcast %cst_237 : f32 to vector<1x16xf32>
    %668 = arith.mulf %667, %657 : vector<1x16xf32>
    %669 = arith.subf %666, %668 : vector<1x16xf32>
    %cst_238 = arith.constant 0.000000e+00 : f32
    %670 = vector.broadcast %cst_238 : f32 to vector<1x16xf32>
    %671 = arith.maximumf %669, %670 : vector<1x16xf32>
    %672 = arith.addf %671, %660 : vector<1x16xf32>
    %cst_239 = arith.constant 1.010000e-01 : f32
    %673 = vector.broadcast %cst_239 : f32 to vector<1x16xf32>
    %674 = arith.mulf %673, %654 : vector<1x16xf32>
    %cst_240 = arith.constant 2.240000e-01 : f32
    %675 = vector.broadcast %cst_240 : f32 to vector<1x16xf32>
    %676 = arith.addf %675, %674 : vector<1x16xf32>
    %677 = arith.subf %676, %657 : vector<1x16xf32>
    %cst_241 = arith.constant 0.000000e+00 : f32
    %678 = vector.broadcast %cst_241 : f32 to vector<1x16xf32>
    %679 = arith.maximumf %677, %678 : vector<1x16xf32>
    %cst_242 = arith.constant 3.100000e+02 : f32
    %680 = vector.broadcast %cst_242 : f32 to vector<1x16xf32>
    %681 = arith.mulf %680, %672 : vector<1x16xf32>
    %cst_243 = arith.constant 1.250000e+02 : f32
    %682 = vector.broadcast %cst_243 : f32 to vector<1x16xf32>
    %683 = arith.subf %681, %682 : vector<1x16xf32>
    %684 = math.absf %683 : vector<1x16xf32>
    %cst_244 = arith.constant 9.99999974E-6 : f32
    %685 = vector.broadcast %cst_244 : f32 to vector<1x16xf32>
    %686 = arith.addf %685, %684 : vector<1x16xf32>
    %cst_245 = arith.constant -1.600000e-01 : f32
    %687 = vector.broadcast %cst_245 : f32 to vector<1x16xf32>
    %688 = arith.mulf %687, %683 : vector<1x16xf32>
    %689 = math.exp %688 : vector<1x16xf32>
    %cst_246 = arith.constant 1.000000e+00 : f32
    %690 = vector.broadcast %cst_246 : f32 to vector<1x16xf32>
    %691 = arith.subf %690, %689 : vector<1x16xf32>
    %692 = math.absf %691 : vector<1x16xf32>
    %cst_247 = arith.constant 1.600000e-06 : f32
    %693 = vector.broadcast %cst_247 : f32 to vector<1x16xf32>
    %694 = arith.addf %693, %692 : vector<1x16xf32>
    %695 = arith.divf %686, %694 : vector<1x16xf32>
    %cst_248 = arith.constant 6.150000e+02 : f32
    %696 = vector.broadcast %cst_248 : f32 to vector<1x16xf32>
    %697 = arith.mulf %696, %679 : vector<1x16xf32>
    %cst_249 = arith.constant 1.770000e+02 : f32
    %698 = vector.broadcast %cst_249 : f32 to vector<1x16xf32>
    %699 = arith.subf %697, %698 : vector<1x16xf32>
    %700 = math.absf %699 : vector<1x16xf32>
    %cst_250 = arith.constant 9.99999974E-6 : f32
    %701 = vector.broadcast %cst_250 : f32 to vector<1x16xf32>
    %702 = arith.addf %701, %700 : vector<1x16xf32>
    %cst_251 = arith.constant -8.700000e-02 : f32
    %703 = vector.broadcast %cst_251 : f32 to vector<1x16xf32>
    %704 = arith.mulf %703, %699 : vector<1x16xf32>
    %705 = math.exp %704 : vector<1x16xf32>
    %cst_252 = arith.constant 1.000000e+00 : f32
    %706 = vector.broadcast %cst_252 : f32 to vector<1x16xf32>
    %707 = arith.subf %706, %705 : vector<1x16xf32>
    %708 = math.absf %707 : vector<1x16xf32>
    %cst_253 = arith.constant 8.700000e-07 : f32
    %709 = vector.broadcast %cst_253 : f32 to vector<1x16xf32>
    %710 = arith.addf %709, %708 : vector<1x16xf32>
    %711 = arith.divf %702, %710 : vector<1x16xf32>
    %cst_254 = arith.constant 0.000000e+00 : f32
    %712 = vector.broadcast %cst_254 : f32 to vector<1x16xf32>
    %713 = arith.subf %712, %654 : vector<1x16xf32>
    %cst_255 = arith.constant 0.00999999977 : f32
    %714 = vector.broadcast %cst_255 : f32 to vector<1x16xf32>
    %715 = arith.mulf %713, %714 : vector<1x16xf32>
    %cst_256 = arith.constant 1.000000e+00 : f32
    %716 = vector.broadcast %cst_256 : f32 to vector<1x16xf32>
    %717 = arith.subf %716, %654 : vector<1x16xf32>
    %cst_257 = arith.constant 6.410000e-04 : f32
    %718 = vector.broadcast %cst_257 : f32 to vector<1x16xf32>
    %719 = arith.mulf %718, %717 : vector<1x16xf32>
    %720 = arith.mulf %719, %695 : vector<1x16xf32>
    %721 = arith.addf %715, %720 : vector<1x16xf32>
    %cst_258 = arith.constant 5.000000e-02 : f32
    %722 = vector.broadcast %cst_258 : f32 to vector<1x16xf32>
    %723 = arith.mulf %722, %721 : vector<1x16xf32>
    %724 = arith.addf %654, %723 : vector<1x16xf32>
    %725 = arith.addf %724, %658 : vector<1x16xf32>
    %cst_259 = arith.constant 0.000000e+00 : f32
    %726 = vector.broadcast %cst_259 : f32 to vector<1x16xf32>
    %727 = arith.subf %726, %657 : vector<1x16xf32>
    %cst_260 = arith.constant 1.000000e-01 : f32
    %728 = vector.broadcast %cst_260 : f32 to vector<1x16xf32>
    %729 = arith.mulf %727, %728 : vector<1x16xf32>
    %cst_261 = arith.constant 1.000000e-03 : f32
    %730 = vector.broadcast %cst_261 : f32 to vector<1x16xf32>
    %731 = arith.mulf %730, %711 : vector<1x16xf32>
    %732 = arith.addf %729, %731 : vector<1x16xf32>
    %cst_262 = arith.constant 5.000000e-02 : f32
    %733 = vector.broadcast %cst_262 : f32 to vector<1x16xf32>
    %734 = arith.mulf %733, %732 : vector<1x16xf32>
    %735 = arith.addf %657, %734 : vector<1x16xf32>
    %736 = arith.addf %735, %659 : vector<1x16xf32>
    %cst_263 = arith.constant 1.53846157 : f32
    %737 = vector.broadcast %cst_263 : f32 to vector<1x16xf32>
    %738 = arith.mulf %737, %620 : vector<1x16xf32>
    %739 = arith.subf %654, %738 : vector<1x16xf32>
    %cst_264 = arith.constant 1.000000e+00 : f32
    %740 = vector.broadcast %cst_264 : f32 to vector<1x16xf32>
    %741 = arith.subf %623, %740 : vector<1x16xf32>
    %cst_265 = arith.constant 2.43902445 : f32
    %742 = vector.broadcast %cst_265 : f32 to vector<1x16xf32>
    %743 = arith.mulf %742, %741 : vector<1x16xf32>
    %744 = arith.subf %739, %743 : vector<1x16xf32>
    %cst_266 = arith.constant 5.000000e-02 : f32
    %745 = vector.broadcast %cst_266 : f32 to vector<1x16xf32>
    %746 = arith.mulf %745, %744 : vector<1x16xf32>
    %747 = arith.addf %620, %746 : vector<1x16xf32>
    %cst_267 = arith.constant 5.000000e-02 : f32
    %748 = vector.broadcast %cst_267 : f32 to vector<1x16xf32>
    %749 = arith.mulf %748, %620 : vector<1x16xf32>
    %750 = arith.addf %623, %749 : vector<1x16xf32>
    %751 = math.log %639 : vector<1x16xf32>
    %cst_268 = arith.constant 3.125000e+00 : f32
    %752 = vector.broadcast %cst_268 : f32 to vector<1x16xf32>
    %753 = arith.mulf %752, %751 : vector<1x16xf32>
    %754 = math.exp %753 : vector<1x16xf32>
    %cst_269 = arith.constant 2.125000e+00 : f32
    %755 = vector.broadcast %cst_269 : f32 to vector<1x16xf32>
    %756 = arith.mulf %755, %751 : vector<1x16xf32>
    %757 = math.exp %756 : vector<1x16xf32>
    %cst_270 = arith.constant -0.415515453 : f32
    %758 = vector.broadcast %cst_270 : f32 to vector<1x16xf32>
    %759 = arith.divf %758, %623 : vector<1x16xf32>
    %760 = math.exp %759 : vector<1x16xf32>
    %761 = arith.subf %623, %754 : vector<1x16xf32>
    %cst_271 = arith.constant 5.000000e-02 : f32
    %762 = vector.broadcast %cst_271 : f32 to vector<1x16xf32>
    %763 = arith.mulf %762, %761 : vector<1x16xf32>
    %cst_272 = arith.constant 1.02040815 : f32
    %764 = vector.broadcast %cst_272 : f32 to vector<1x16xf32>
    %765 = arith.mulf %763, %764 : vector<1x16xf32>
    %766 = arith.addf %639, %765 : vector<1x16xf32>
    %cst_273 = arith.constant 1.000000e+00 : f32
    %767 = vector.broadcast %cst_273 : f32 to vector<1x16xf32>
    %768 = arith.subf %767, %760 : vector<1x16xf32>
    %769 = arith.mulf %623, %768 : vector<1x16xf32>
    %cst_274 = arith.constant 2.94117641 : f32
    %770 = vector.broadcast %cst_274 : f32 to vector<1x16xf32>
    %771 = arith.mulf %769, %770 : vector<1x16xf32>
    %772 = arith.mulf %651, %757 : vector<1x16xf32>
    %773 = arith.subf %771, %772 : vector<1x16xf32>
    %cst_275 = arith.constant 5.000000e-02 : f32
    %774 = vector.broadcast %cst_275 : f32 to vector<1x16xf32>
    %775 = arith.mulf %774, %773 : vector<1x16xf32>
    %cst_276 = arith.constant 1.02040815 : f32
    %776 = vector.broadcast %cst_276 : f32 to vector<1x16xf32>
    %777 = arith.mulf %775, %776 : vector<1x16xf32>
    %778 = arith.addf %651, %777 : vector<1x16xf32>
    %cst_277 = arith.constant 0.000000e+00 : f32
    %779 = vector.broadcast %cst_277 : f32 to vector<1x16xf32>
    %780 = arith.maximumf %725, %779 : vector<1x16xf32>
    %781 = math.tanh %780 : vector<1x16xf32>
    %cst_278 = arith.constant 0.000000e+00 : f32
    %782 = vector.broadcast %cst_278 : f32 to vector<1x16xf32>
    %783 = arith.maximumf %736, %782 : vector<1x16xf32>
    %784 = math.tanh %783 : vector<1x16xf32>
    %785 = vector.extract_strided_slice %16 {offsets = [6, 0], sizes = [1, 16], strides = [1, 1]} : vector<8x16xf32> to vector<1x16xf32>
    %786 = vector.extract_strided_slice %20 {offsets = [6, 0], sizes = [1, 16], strides = [1, 1]} : vector<8x16xf32> to vector<1x16xf32>
    %787 = vector.extract_strided_slice %22 {offsets = [6, 0], sizes = [1, 16], strides = [1, 1]} : vector<8x16xf32> to vector<1x16xf32>
    %cst_279 = arith.constant dense<0.000000e+00> : vector<1x16xf32>
    %788 = tpu.matmul %781, %3, %cst_279 {dimension_numbers = #tpu.dot_dimension_numbers<[1], [0], [0], [1], [0, 0, 1, 1], [], []>} : vector<1x16xf32>, vector<16x16xf32>, vector<1x16xf32> -> vector<1x16xf32>
    %cst_280 = arith.constant 1.010000e-01 : f32
    %789 = vector.broadcast %cst_280 : f32 to vector<1x16xf32>
    %790 = arith.mulf %789, %781 : vector<1x16xf32>
    %cst_281 = arith.constant 3.200000e-01 : f32
    %791 = vector.broadcast %cst_281 : f32 to vector<1x16xf32>
    %792 = arith.addf %791, %790 : vector<1x16xf32>
    %793 = arith.addf %792, %788 : vector<1x16xf32>
    %cst_282 = arith.constant 1.010000e-01 : f32
    %794 = vector.broadcast %cst_282 : f32 to vector<1x16xf32>
    %795 = arith.mulf %794, %784 : vector<1x16xf32>
    %796 = arith.subf %793, %795 : vector<1x16xf32>
    %cst_283 = arith.constant 0.000000e+00 : f32
    %797 = vector.broadcast %cst_283 : f32 to vector<1x16xf32>
    %798 = arith.maximumf %796, %797 : vector<1x16xf32>
    %799 = arith.addf %798, %787 : vector<1x16xf32>
    %cst_284 = arith.constant 1.010000e-01 : f32
    %800 = vector.broadcast %cst_284 : f32 to vector<1x16xf32>
    %801 = arith.mulf %800, %781 : vector<1x16xf32>
    %cst_285 = arith.constant 2.240000e-01 : f32
    %802 = vector.broadcast %cst_285 : f32 to vector<1x16xf32>
    %803 = arith.addf %802, %801 : vector<1x16xf32>
    %804 = arith.subf %803, %784 : vector<1x16xf32>
    %cst_286 = arith.constant 0.000000e+00 : f32
    %805 = vector.broadcast %cst_286 : f32 to vector<1x16xf32>
    %806 = arith.maximumf %804, %805 : vector<1x16xf32>
    %cst_287 = arith.constant 3.100000e+02 : f32
    %807 = vector.broadcast %cst_287 : f32 to vector<1x16xf32>
    %808 = arith.mulf %807, %799 : vector<1x16xf32>
    %cst_288 = arith.constant 1.250000e+02 : f32
    %809 = vector.broadcast %cst_288 : f32 to vector<1x16xf32>
    %810 = arith.subf %808, %809 : vector<1x16xf32>
    %811 = math.absf %810 : vector<1x16xf32>
    %cst_289 = arith.constant 9.99999974E-6 : f32
    %812 = vector.broadcast %cst_289 : f32 to vector<1x16xf32>
    %813 = arith.addf %812, %811 : vector<1x16xf32>
    %cst_290 = arith.constant -1.600000e-01 : f32
    %814 = vector.broadcast %cst_290 : f32 to vector<1x16xf32>
    %815 = arith.mulf %814, %810 : vector<1x16xf32>
    %816 = math.exp %815 : vector<1x16xf32>
    %cst_291 = arith.constant 1.000000e+00 : f32
    %817 = vector.broadcast %cst_291 : f32 to vector<1x16xf32>
    %818 = arith.subf %817, %816 : vector<1x16xf32>
    %819 = math.absf %818 : vector<1x16xf32>
    %cst_292 = arith.constant 1.600000e-06 : f32
    %820 = vector.broadcast %cst_292 : f32 to vector<1x16xf32>
    %821 = arith.addf %820, %819 : vector<1x16xf32>
    %822 = arith.divf %813, %821 : vector<1x16xf32>
    %cst_293 = arith.constant 6.150000e+02 : f32
    %823 = vector.broadcast %cst_293 : f32 to vector<1x16xf32>
    %824 = arith.mulf %823, %806 : vector<1x16xf32>
    %cst_294 = arith.constant 1.770000e+02 : f32
    %825 = vector.broadcast %cst_294 : f32 to vector<1x16xf32>
    %826 = arith.subf %824, %825 : vector<1x16xf32>
    %827 = math.absf %826 : vector<1x16xf32>
    %cst_295 = arith.constant 9.99999974E-6 : f32
    %828 = vector.broadcast %cst_295 : f32 to vector<1x16xf32>
    %829 = arith.addf %828, %827 : vector<1x16xf32>
    %cst_296 = arith.constant -8.700000e-02 : f32
    %830 = vector.broadcast %cst_296 : f32 to vector<1x16xf32>
    %831 = arith.mulf %830, %826 : vector<1x16xf32>
    %832 = math.exp %831 : vector<1x16xf32>
    %cst_297 = arith.constant 1.000000e+00 : f32
    %833 = vector.broadcast %cst_297 : f32 to vector<1x16xf32>
    %834 = arith.subf %833, %832 : vector<1x16xf32>
    %835 = math.absf %834 : vector<1x16xf32>
    %cst_298 = arith.constant 8.700000e-07 : f32
    %836 = vector.broadcast %cst_298 : f32 to vector<1x16xf32>
    %837 = arith.addf %836, %835 : vector<1x16xf32>
    %838 = arith.divf %829, %837 : vector<1x16xf32>
    %cst_299 = arith.constant 0.000000e+00 : f32
    %839 = vector.broadcast %cst_299 : f32 to vector<1x16xf32>
    %840 = arith.subf %839, %781 : vector<1x16xf32>
    %cst_300 = arith.constant 0.00999999977 : f32
    %841 = vector.broadcast %cst_300 : f32 to vector<1x16xf32>
    %842 = arith.mulf %840, %841 : vector<1x16xf32>
    %cst_301 = arith.constant 1.000000e+00 : f32
    %843 = vector.broadcast %cst_301 : f32 to vector<1x16xf32>
    %844 = arith.subf %843, %781 : vector<1x16xf32>
    %cst_302 = arith.constant 6.410000e-04 : f32
    %845 = vector.broadcast %cst_302 : f32 to vector<1x16xf32>
    %846 = arith.mulf %845, %844 : vector<1x16xf32>
    %847 = arith.mulf %846, %822 : vector<1x16xf32>
    %848 = arith.addf %842, %847 : vector<1x16xf32>
    %cst_303 = arith.constant 5.000000e-02 : f32
    %849 = vector.broadcast %cst_303 : f32 to vector<1x16xf32>
    %850 = arith.mulf %849, %848 : vector<1x16xf32>
    %851 = arith.addf %781, %850 : vector<1x16xf32>
    %852 = arith.addf %851, %785 : vector<1x16xf32>
    %cst_304 = arith.constant 0.000000e+00 : f32
    %853 = vector.broadcast %cst_304 : f32 to vector<1x16xf32>
    %854 = arith.subf %853, %784 : vector<1x16xf32>
    %cst_305 = arith.constant 1.000000e-01 : f32
    %855 = vector.broadcast %cst_305 : f32 to vector<1x16xf32>
    %856 = arith.mulf %854, %855 : vector<1x16xf32>
    %cst_306 = arith.constant 1.000000e-03 : f32
    %857 = vector.broadcast %cst_306 : f32 to vector<1x16xf32>
    %858 = arith.mulf %857, %838 : vector<1x16xf32>
    %859 = arith.addf %856, %858 : vector<1x16xf32>
    %cst_307 = arith.constant 5.000000e-02 : f32
    %860 = vector.broadcast %cst_307 : f32 to vector<1x16xf32>
    %861 = arith.mulf %860, %859 : vector<1x16xf32>
    %862 = arith.addf %784, %861 : vector<1x16xf32>
    %863 = arith.addf %862, %786 : vector<1x16xf32>
    %cst_308 = arith.constant 1.53846157 : f32
    %864 = vector.broadcast %cst_308 : f32 to vector<1x16xf32>
    %865 = arith.mulf %864, %747 : vector<1x16xf32>
    %866 = arith.subf %781, %865 : vector<1x16xf32>
    %cst_309 = arith.constant 1.000000e+00 : f32
    %867 = vector.broadcast %cst_309 : f32 to vector<1x16xf32>
    %868 = arith.subf %750, %867 : vector<1x16xf32>
    %cst_310 = arith.constant 2.43902445 : f32
    %869 = vector.broadcast %cst_310 : f32 to vector<1x16xf32>
    %870 = arith.mulf %869, %868 : vector<1x16xf32>
    %871 = arith.subf %866, %870 : vector<1x16xf32>
    %cst_311 = arith.constant 5.000000e-02 : f32
    %872 = vector.broadcast %cst_311 : f32 to vector<1x16xf32>
    %873 = arith.mulf %872, %871 : vector<1x16xf32>
    %874 = arith.addf %747, %873 : vector<1x16xf32>
    %cst_312 = arith.constant 5.000000e-02 : f32
    %875 = vector.broadcast %cst_312 : f32 to vector<1x16xf32>
    %876 = arith.mulf %875, %747 : vector<1x16xf32>
    %877 = arith.addf %750, %876 : vector<1x16xf32>
    %878 = math.log %766 : vector<1x16xf32>
    %cst_313 = arith.constant 3.125000e+00 : f32
    %879 = vector.broadcast %cst_313 : f32 to vector<1x16xf32>
    %880 = arith.mulf %879, %878 : vector<1x16xf32>
    %881 = math.exp %880 : vector<1x16xf32>
    %cst_314 = arith.constant 2.125000e+00 : f32
    %882 = vector.broadcast %cst_314 : f32 to vector<1x16xf32>
    %883 = arith.mulf %882, %878 : vector<1x16xf32>
    %884 = math.exp %883 : vector<1x16xf32>
    %cst_315 = arith.constant -0.415515453 : f32
    %885 = vector.broadcast %cst_315 : f32 to vector<1x16xf32>
    %886 = arith.divf %885, %750 : vector<1x16xf32>
    %887 = math.exp %886 : vector<1x16xf32>
    %888 = arith.subf %750, %881 : vector<1x16xf32>
    %cst_316 = arith.constant 5.000000e-02 : f32
    %889 = vector.broadcast %cst_316 : f32 to vector<1x16xf32>
    %890 = arith.mulf %889, %888 : vector<1x16xf32>
    %cst_317 = arith.constant 1.02040815 : f32
    %891 = vector.broadcast %cst_317 : f32 to vector<1x16xf32>
    %892 = arith.mulf %890, %891 : vector<1x16xf32>
    %893 = arith.addf %766, %892 : vector<1x16xf32>
    %cst_318 = arith.constant 1.000000e+00 : f32
    %894 = vector.broadcast %cst_318 : f32 to vector<1x16xf32>
    %895 = arith.subf %894, %887 : vector<1x16xf32>
    %896 = arith.mulf %750, %895 : vector<1x16xf32>
    %cst_319 = arith.constant 2.94117641 : f32
    %897 = vector.broadcast %cst_319 : f32 to vector<1x16xf32>
    %898 = arith.mulf %896, %897 : vector<1x16xf32>
    %899 = arith.mulf %778, %884 : vector<1x16xf32>
    %900 = arith.subf %898, %899 : vector<1x16xf32>
    %cst_320 = arith.constant 5.000000e-02 : f32
    %901 = vector.broadcast %cst_320 : f32 to vector<1x16xf32>
    %902 = arith.mulf %901, %900 : vector<1x16xf32>
    %cst_321 = arith.constant 1.02040815 : f32
    %903 = vector.broadcast %cst_321 : f32 to vector<1x16xf32>
    %904 = arith.mulf %902, %903 : vector<1x16xf32>
    %905 = arith.addf %778, %904 : vector<1x16xf32>
    %cst_322 = arith.constant 0.000000e+00 : f32
    %906 = vector.broadcast %cst_322 : f32 to vector<1x16xf32>
    %907 = arith.maximumf %852, %906 : vector<1x16xf32>
    %908 = math.tanh %907 : vector<1x16xf32>
    %cst_323 = arith.constant 0.000000e+00 : f32
    %909 = vector.broadcast %cst_323 : f32 to vector<1x16xf32>
    %910 = arith.maximumf %863, %909 : vector<1x16xf32>
    %911 = math.tanh %910 : vector<1x16xf32>
    %912 = vector.extract_strided_slice %16 {offsets = [7, 0], sizes = [1, 16], strides = [1, 1]} : vector<8x16xf32> to vector<1x16xf32>
    %913 = vector.extract_strided_slice %20 {offsets = [7, 0], sizes = [1, 16], strides = [1, 1]} : vector<8x16xf32> to vector<1x16xf32>
    %914 = vector.extract_strided_slice %22 {offsets = [7, 0], sizes = [1, 16], strides = [1, 1]} : vector<8x16xf32> to vector<1x16xf32>
    %cst_324 = arith.constant dense<0.000000e+00> : vector<1x16xf32>
    %915 = tpu.matmul %908, %3, %cst_324 {dimension_numbers = #tpu.dot_dimension_numbers<[1], [0], [0], [1], [0, 0, 1, 1], [], []>} : vector<1x16xf32>, vector<16x16xf32>, vector<1x16xf32> -> vector<1x16xf32>
    %cst_325 = arith.constant 1.010000e-01 : f32
    %916 = vector.broadcast %cst_325 : f32 to vector<1x16xf32>
    %917 = arith.mulf %916, %908 : vector<1x16xf32>
    %cst_326 = arith.constant 3.200000e-01 : f32
    %918 = vector.broadcast %cst_326 : f32 to vector<1x16xf32>
    %919 = arith.addf %918, %917 : vector<1x16xf32>
    %920 = arith.addf %919, %915 : vector<1x16xf32>
    %cst_327 = arith.constant 1.010000e-01 : f32
    %921 = vector.broadcast %cst_327 : f32 to vector<1x16xf32>
    %922 = arith.mulf %921, %911 : vector<1x16xf32>
    %923 = arith.subf %920, %922 : vector<1x16xf32>
    %cst_328 = arith.constant 0.000000e+00 : f32
    %924 = vector.broadcast %cst_328 : f32 to vector<1x16xf32>
    %925 = arith.maximumf %923, %924 : vector<1x16xf32>
    %926 = arith.addf %925, %914 : vector<1x16xf32>
    %cst_329 = arith.constant 1.010000e-01 : f32
    %927 = vector.broadcast %cst_329 : f32 to vector<1x16xf32>
    %928 = arith.mulf %927, %908 : vector<1x16xf32>
    %cst_330 = arith.constant 2.240000e-01 : f32
    %929 = vector.broadcast %cst_330 : f32 to vector<1x16xf32>
    %930 = arith.addf %929, %928 : vector<1x16xf32>
    %931 = arith.subf %930, %911 : vector<1x16xf32>
    %cst_331 = arith.constant 0.000000e+00 : f32
    %932 = vector.broadcast %cst_331 : f32 to vector<1x16xf32>
    %933 = arith.maximumf %931, %932 : vector<1x16xf32>
    %cst_332 = arith.constant 3.100000e+02 : f32
    %934 = vector.broadcast %cst_332 : f32 to vector<1x16xf32>
    %935 = arith.mulf %934, %926 : vector<1x16xf32>
    %cst_333 = arith.constant 1.250000e+02 : f32
    %936 = vector.broadcast %cst_333 : f32 to vector<1x16xf32>
    %937 = arith.subf %935, %936 : vector<1x16xf32>
    %938 = math.absf %937 : vector<1x16xf32>
    %cst_334 = arith.constant 9.99999974E-6 : f32
    %939 = vector.broadcast %cst_334 : f32 to vector<1x16xf32>
    %940 = arith.addf %939, %938 : vector<1x16xf32>
    %cst_335 = arith.constant -1.600000e-01 : f32
    %941 = vector.broadcast %cst_335 : f32 to vector<1x16xf32>
    %942 = arith.mulf %941, %937 : vector<1x16xf32>
    %943 = math.exp %942 : vector<1x16xf32>
    %cst_336 = arith.constant 1.000000e+00 : f32
    %944 = vector.broadcast %cst_336 : f32 to vector<1x16xf32>
    %945 = arith.subf %944, %943 : vector<1x16xf32>
    %946 = math.absf %945 : vector<1x16xf32>
    %cst_337 = arith.constant 1.600000e-06 : f32
    %947 = vector.broadcast %cst_337 : f32 to vector<1x16xf32>
    %948 = arith.addf %947, %946 : vector<1x16xf32>
    %949 = arith.divf %940, %948 : vector<1x16xf32>
    %cst_338 = arith.constant 6.150000e+02 : f32
    %950 = vector.broadcast %cst_338 : f32 to vector<1x16xf32>
    %951 = arith.mulf %950, %933 : vector<1x16xf32>
    %cst_339 = arith.constant 1.770000e+02 : f32
    %952 = vector.broadcast %cst_339 : f32 to vector<1x16xf32>
    %953 = arith.subf %951, %952 : vector<1x16xf32>
    %954 = math.absf %953 : vector<1x16xf32>
    %cst_340 = arith.constant 9.99999974E-6 : f32
    %955 = vector.broadcast %cst_340 : f32 to vector<1x16xf32>
    %956 = arith.addf %955, %954 : vector<1x16xf32>
    %cst_341 = arith.constant -8.700000e-02 : f32
    %957 = vector.broadcast %cst_341 : f32 to vector<1x16xf32>
    %958 = arith.mulf %957, %953 : vector<1x16xf32>
    %959 = math.exp %958 : vector<1x16xf32>
    %cst_342 = arith.constant 1.000000e+00 : f32
    %960 = vector.broadcast %cst_342 : f32 to vector<1x16xf32>
    %961 = arith.subf %960, %959 : vector<1x16xf32>
    %962 = math.absf %961 : vector<1x16xf32>
    %cst_343 = arith.constant 8.700000e-07 : f32
    %963 = vector.broadcast %cst_343 : f32 to vector<1x16xf32>
    %964 = arith.addf %963, %962 : vector<1x16xf32>
    %965 = arith.divf %956, %964 : vector<1x16xf32>
    %cst_344 = arith.constant 0.000000e+00 : f32
    %966 = vector.broadcast %cst_344 : f32 to vector<1x16xf32>
    %967 = arith.subf %966, %908 : vector<1x16xf32>
    %cst_345 = arith.constant 0.00999999977 : f32
    %968 = vector.broadcast %cst_345 : f32 to vector<1x16xf32>
    %969 = arith.mulf %967, %968 : vector<1x16xf32>
    %cst_346 = arith.constant 1.000000e+00 : f32
    %970 = vector.broadcast %cst_346 : f32 to vector<1x16xf32>
    %971 = arith.subf %970, %908 : vector<1x16xf32>
    %cst_347 = arith.constant 6.410000e-04 : f32
    %972 = vector.broadcast %cst_347 : f32 to vector<1x16xf32>
    %973 = arith.mulf %972, %971 : vector<1x16xf32>
    %974 = arith.mulf %973, %949 : vector<1x16xf32>
    %975 = arith.addf %969, %974 : vector<1x16xf32>
    %cst_348 = arith.constant 5.000000e-02 : f32
    %976 = vector.broadcast %cst_348 : f32 to vector<1x16xf32>
    %977 = arith.mulf %976, %975 : vector<1x16xf32>
    %978 = arith.addf %908, %977 : vector<1x16xf32>
    %979 = arith.addf %978, %912 : vector<1x16xf32>
    %cst_349 = arith.constant 0.000000e+00 : f32
    %980 = vector.broadcast %cst_349 : f32 to vector<1x16xf32>
    %981 = arith.subf %980, %911 : vector<1x16xf32>
    %cst_350 = arith.constant 1.000000e-01 : f32
    %982 = vector.broadcast %cst_350 : f32 to vector<1x16xf32>
    %983 = arith.mulf %981, %982 : vector<1x16xf32>
    %cst_351 = arith.constant 1.000000e-03 : f32
    %984 = vector.broadcast %cst_351 : f32 to vector<1x16xf32>
    %985 = arith.mulf %984, %965 : vector<1x16xf32>
    %986 = arith.addf %983, %985 : vector<1x16xf32>
    %cst_352 = arith.constant 5.000000e-02 : f32
    %987 = vector.broadcast %cst_352 : f32 to vector<1x16xf32>
    %988 = arith.mulf %987, %986 : vector<1x16xf32>
    %989 = arith.addf %911, %988 : vector<1x16xf32>
    %990 = arith.addf %989, %913 : vector<1x16xf32>
    %cst_353 = arith.constant 1.53846157 : f32
    %991 = vector.broadcast %cst_353 : f32 to vector<1x16xf32>
    %992 = arith.mulf %991, %874 : vector<1x16xf32>
    %993 = arith.subf %908, %992 : vector<1x16xf32>
    %cst_354 = arith.constant 1.000000e+00 : f32
    %994 = vector.broadcast %cst_354 : f32 to vector<1x16xf32>
    %995 = arith.subf %877, %994 : vector<1x16xf32>
    %cst_355 = arith.constant 2.43902445 : f32
    %996 = vector.broadcast %cst_355 : f32 to vector<1x16xf32>
    %997 = arith.mulf %996, %995 : vector<1x16xf32>
    %998 = arith.subf %993, %997 : vector<1x16xf32>
    %cst_356 = arith.constant 5.000000e-02 : f32
    %999 = vector.broadcast %cst_356 : f32 to vector<1x16xf32>
    %1000 = arith.mulf %999, %998 : vector<1x16xf32>
    %1001 = arith.addf %874, %1000 : vector<1x16xf32>
    %cst_357 = arith.constant 5.000000e-02 : f32
    %1002 = vector.broadcast %cst_357 : f32 to vector<1x16xf32>
    %1003 = arith.mulf %1002, %874 : vector<1x16xf32>
    %1004 = arith.addf %877, %1003 : vector<1x16xf32>
    %1005 = math.log %893 : vector<1x16xf32>
    %cst_358 = arith.constant 3.125000e+00 : f32
    %1006 = vector.broadcast %cst_358 : f32 to vector<1x16xf32>
    %1007 = arith.mulf %1006, %1005 : vector<1x16xf32>
    %1008 = math.exp %1007 : vector<1x16xf32>
    %cst_359 = arith.constant 2.125000e+00 : f32
    %1009 = vector.broadcast %cst_359 : f32 to vector<1x16xf32>
    %1010 = arith.mulf %1009, %1005 : vector<1x16xf32>
    %1011 = math.exp %1010 : vector<1x16xf32>
    %cst_360 = arith.constant -0.415515453 : f32
    %1012 = vector.broadcast %cst_360 : f32 to vector<1x16xf32>
    %1013 = arith.divf %1012, %877 : vector<1x16xf32>
    %1014 = math.exp %1013 : vector<1x16xf32>
    %1015 = arith.subf %877, %1008 : vector<1x16xf32>
    %cst_361 = arith.constant 5.000000e-02 : f32
    %1016 = vector.broadcast %cst_361 : f32 to vector<1x16xf32>
    %1017 = arith.mulf %1016, %1015 : vector<1x16xf32>
    %cst_362 = arith.constant 1.02040815 : f32
    %1018 = vector.broadcast %cst_362 : f32 to vector<1x16xf32>
    %1019 = arith.mulf %1017, %1018 : vector<1x16xf32>
    %1020 = arith.addf %893, %1019 : vector<1x16xf32>
    %cst_363 = arith.constant 1.000000e+00 : f32
    %1021 = vector.broadcast %cst_363 : f32 to vector<1x16xf32>
    %1022 = arith.subf %1021, %1014 : vector<1x16xf32>
    %1023 = arith.mulf %877, %1022 : vector<1x16xf32>
    %cst_364 = arith.constant 2.94117641 : f32
    %1024 = vector.broadcast %cst_364 : f32 to vector<1x16xf32>
    %1025 = arith.mulf %1023, %1024 : vector<1x16xf32>
    %1026 = arith.mulf %905, %1011 : vector<1x16xf32>
    %1027 = arith.subf %1025, %1026 : vector<1x16xf32>
    %cst_365 = arith.constant 5.000000e-02 : f32
    %1028 = vector.broadcast %cst_365 : f32 to vector<1x16xf32>
    %1029 = arith.mulf %1028, %1027 : vector<1x16xf32>
    %cst_366 = arith.constant 1.02040815 : f32
    %1030 = vector.broadcast %cst_366 : f32 to vector<1x16xf32>
    %1031 = arith.mulf %1029, %1030 : vector<1x16xf32>
    %1032 = arith.addf %905, %1031 : vector<1x16xf32>
    %cst_367 = arith.constant 0.000000e+00 : f32
    %1033 = vector.broadcast %cst_367 : f32 to vector<1x16xf32>
    %1034 = arith.maximumf %979, %1033 : vector<1x16xf32>
    %1035 = math.tanh %1034 : vector<1x16xf32>
    %cst_368 = arith.constant 0.000000e+00 : f32
    %1036 = vector.broadcast %cst_368 : f32 to vector<1x16xf32>
    %1037 = arith.maximumf %990, %1036 : vector<1x16xf32>
    %1038 = math.tanh %1037 : vector<1x16xf32>
    %1039 = tpu.concatenate %146, %273, %400, %527, %654, %781, %908, %1035 in 0 : vector<1x16xf32>, vector<1x16xf32>, vector<1x16xf32>, vector<1x16xf32>, vector<1x16xf32>, vector<1x16xf32>, vector<1x16xf32>, vector<1x16xf32> -> vector<8x16xf32>
    %1040 = arith.index_cast %12 : i32 to index
    %c0_369 = arith.constant 0 : index
    %1041 = vector.load %arg13[%1040, %c0_369] : memref<8x16xf32, #tpu.memory_space<vmem>>, vector<8x16xf32>
    tpu.vector_store %arg13[%1040, %c0_369], %1039 {strides = array<i32>} : memref<8x16xf32, #tpu.memory_space<vmem>>, vector<8x16xf32>,
    %1042 = tpu.concatenate %149, %276, %403, %530, %657, %784, %911, %1038 in 0 : vector<1x16xf32>, vector<1x16xf32>, vector<1x16xf32>, vector<1x16xf32>, vector<1x16xf32>, vector<1x16xf32>, vector<1x16xf32>, vector<1x16xf32> -> vector<8x16xf32>
    %1043 = arith.index_cast %12 : i32 to index
    %c0_370 = arith.constant 0 : index
    %1044 = vector.load %arg14[%1043, %c0_370] : memref<8x16xf32, #tpu.memory_space<vmem>>, vector<8x16xf32>
    tpu.vector_store %arg14[%1043, %c0_370], %1042 {strides = array<i32>} : memref<8x16xf32, #tpu.memory_space<vmem>>, vector<8x16xf32>,
    %c1_i32 = arith.constant 1 : i32
    %1045 = tpu.concatenate %1035, %1038, %1001, %1004, %1020, %1032 in 0 : vector<1x16xf32>, vector<1x16xf32>, vector<1x16xf32>, vector<1x16xf32>, vector<1x16xf32>, vector<1x16xf32> -> vector<6x16xf32>
    %c0_371 = arith.constant 0 : index
    %c0_372 = arith.constant 0 : index
    %1046 = vector.load %arg7[%c0_371, %c0_372] : memref<6x16xf32, #tpu.memory_space<vmem>>, vector<6x16xf32>
    tpu.vector_store %arg7[%c0_371, %c0_372], %1045 {strides = array<i32>} : memref<6x16xf32, #tpu.memory_space<vmem>>, vector<6x16xf32>,
    %1047 = arith.index_cast %arg0 : i32 to index
    %c0_373 = arith.constant 0 : index
    %1048 = vector.load %arg9[%1047, %c0_373] : memref<2x16xf32, #tpu.memory_space<vmem>>, vector<1x16xf32>
    tpu.vector_store %arg9[%1047, %c0_373], %1001 {strides = array<i32>} : memref<2x16xf32, #tpu.memory_space<vmem>>, vector<1x16xf32>,
    %1049 = arith.index_cast %arg0 : i32 to index
    %c0_374 = arith.constant 0 : index
    %1050 = vector.load %arg10[%1049, %c0_374] : memref<2x16xf32, #tpu.memory_space<vmem>>, vector<1x16xf32>
    tpu.vector_store %arg10[%1049, %c0_374], %1004 {strides = array<i32>} : memref<2x16xf32, #tpu.memory_space<vmem>>, vector<1x16xf32>,
    %1051 = arith.index_cast %arg0 : i32 to index
    %c0_375 = arith.constant 0 : index
    %1052 = vector.load %arg11[%1051, %c0_375] : memref<2x16xf32, #tpu.memory_space<vmem>>, vector<1x16xf32>
    tpu.vector_store %arg11[%1051, %c0_375], %1020 {strides = array<i32>} : memref<2x16xf32, #tpu.memory_space<vmem>>, vector<1x16xf32>,
    %1053 = arith.index_cast %arg0 : i32 to index
    %c0_376 = arith.constant 0 : index
    %1054 = vector.load %arg12[%1053, %c0_376] : memref<2x16xf32, #tpu.memory_space<vmem>>, vector<1x16xf32>
    tpu.vector_store %arg12[%1053, %c0_376], %1032 {strides = array<i32>} : memref<2x16xf32, #tpu.memory_space<vmem>>, vector<1x16xf32>,
    %1055 = arith.index_cast %arg0 : i32 to index
    %c0_377 = arith.constant 0 : index
    %1056 = vector.load %arg3[%1055, %c0_377] : memref<2x16xf32, #tpu.memory_space<vmem>>, vector<1x16xf32>
    %cst_378 = arith.constant 2.100000e-02 : f32
    %1057 = vector.broadcast %cst_378 : f32 to vector<1x16xf32>
    %1058 = arith.mulf %1057, %1056 : vector<1x16xf32>
    %cst_379 = arith.constant 1.000000e+00 : f32
    %1059 = vector.broadcast %cst_379 : f32 to vector<1x16xf32>
    %1060 = arith.subf %1059, %1032 : vector<1x16xf32>
    %cst_380 = arith.constant 2.380000e+00 : f32
    %1061 = vector.broadcast %cst_380 : f32 to vector<1x16xf32>
    %1062 = arith.mulf %1061, %1060 : vector<1x16xf32>
    %1063 = arith.divf %1032, %1020 : vector<1x16xf32>
    %cst_381 = arith.constant 1.000000e+00 : f32
    %1064 = vector.broadcast %cst_381 : f32 to vector<1x16xf32>
    %1065 = arith.subf %1064, %1063 : vector<1x16xf32>
    %cst_382 = arith.constant 2.000000e+00 : f32
    %1066 = vector.broadcast %cst_382 : f32 to vector<1x16xf32>
    %1067 = arith.mulf %1066, %1065 : vector<1x16xf32>
    %1068 = arith.addf %1062, %1067 : vector<1x16xf32>
    %cst_383 = arith.constant 1.000000e+00 : f32
    %1069 = vector.broadcast %cst_383 : f32 to vector<1x16xf32>
    %1070 = arith.subf %1069, %1020 : vector<1x16xf32>
    %cst_384 = arith.constant 4.800000e-01 : f32
    %1071 = vector.broadcast %cst_384 : f32 to vector<1x16xf32>
    %1072 = arith.mulf %1071, %1070 : vector<1x16xf32>
    %1073 = arith.addf %1068, %1072 : vector<1x16xf32>
    %cst_385 = arith.constant 5.88235283 : f32
    %1074 = vector.broadcast %cst_385 : f32 to vector<1x16xf32>
    %1075 = arith.mulf %1074, %1073 : vector<1x16xf32>
    %1076 = arith.addf %1058, %1075 : vector<1x16xf32>
    %1077 = arith.index_cast %arg0 : i32 to index
    %c0_386 = arith.constant 0 : index
    %1078 = vector.load %arg8[%1077, %c0_386] : memref<2x16xf32, #tpu.memory_space<vmem>>, vector<1x16xf32>
    tpu.vector_store %arg8[%1077, %c0_386], %1076 {strides = array<i32>} : memref<2x16xf32, #tpu.memory_space<vmem>>, vector<1x16xf32>,
    return
  }
  func.func @transform_0(%arg0: i32) -> (i32, i32) {
    %c0_i32 = arith.constant 0 : i32
    %c0_i32_0 = arith.constant 0 : i32
    %c0_i32_1 = arith.constant 0 : i32
    return %c0_i32, %c0_i32_0 : i32, i32
  }
  func.func @transform_1(%arg0: i32) -> (i32, i32) {
    %c0_i32 = arith.constant 0 : i32
    %c0_i32_0 = arith.constant 0 : i32
    %c0_i32_1 = arith.constant 0 : i32
    return %c0_i32, %c0_i32_0 : i32, i32
  }
  func.func @transform_2(%arg0: i32) -> (i32, i32) {
    %c0_i32 = arith.constant 0 : i32
    %c0_i32_0 = arith.constant 0 : i32
    %c0_i32_1 = arith.constant 0 : i32
    return %c0_i32, %c0_i32_0 : i32, i32
  }
  func.func @transform_3(%arg0: i32) -> (i32, i32) {
    %c0_i32 = arith.constant 0 : i32
    %c0_i32_0 = arith.constant 0 : i32
    return %arg0, %c0_i32 : i32, i32
  }
  func.func @transform_4(%arg0: i32) -> (i32, i32) {
    %c0_i32 = arith.constant 0 : i32
    %c0_i32_0 = arith.constant 0 : i32
    return %arg0, %c0_i32 : i32, i32
  }
  func.func @transform_5(%arg0: i32) -> (i32, i32) {
    %c0_i32 = arith.constant 0 : i32
    %c0_i32_0 = arith.constant 0 : i32
    return %arg0, %c0_i32 : i32, i32
  }
  func.func @transform_6(%arg0: i32) -> (i32, i32) {
    %c0_i32 = arith.constant 0 : i32
    %c0_i32_0 = arith.constant 0 : i32
    %c0_i32_1 = arith.constant 0 : i32
    return %c0_i32, %c0_i32_0 : i32, i32
  }
  func.func @transform_7(%arg0: i32) -> (i32, i32) {
    %c0_i32 = arith.constant 0 : i32
    %c0_i32_0 = arith.constant 0 : i32
    %c0_i32_1 = arith.constant 0 : i32
    return %c0_i32, %c0_i32_0 : i32, i32
  }
  func.func @transform_8(%arg0: i32) -> (i32, i32) {
    %c0_i32 = arith.constant 0 : i32
    %c0_i32_0 = arith.constant 0 : i32
    %c0_i32_1 = arith.constant 0 : i32
    return %c0_i32, %c0_i32_0 : i32, i32
  }
  func.func @transform_9(%arg0: i32) -> (i32, i32) {
    %c0_i32 = arith.constant 0 : i32
    %c0_i32_0 = arith.constant 0 : i32
    %c0_i32_1 = arith.constant 0 : i32
    return %c0_i32, %c0_i32_0 : i32, i32
  }
  func.func @transform_10(%arg0: i32) -> (i32, i32) {
    %c0_i32 = arith.constant 0 : i32
    %c0_i32_0 = arith.constant 0 : i32
    %c0_i32_1 = arith.constant 0 : i32
    return %c0_i32, %c0_i32_0 : i32, i32
  }
  func.func @transform_11(%arg0: i32) -> (i32, i32) {
    %c0_i32 = arith.constant 0 : i32
    %c0_i32_0 = arith.constant 0 : i32
    %c0_i32_1 = arith.constant 0 : i32
    return %c0_i32, %c0_i32_0 : i32, i32
  }
  func.func @transform_12(%arg0: i32) -> (i32, i32) {
    %c0_i32 = arith.constant 0 : i32
    %c0_i32_0 = arith.constant 0 : i32
    return %arg0, %c0_i32 : i32, i32
  }
  func.func @transform_13(%arg0: i32) -> (i32, i32) {
    %c0_i32 = arith.constant 0 : i32
    %c0_i32_0 = arith.constant 0 : i32
    return %arg0, %c0_i32 : i32, i32
  }
}

</mosaic_0001>

<llo_original>
// kernel: tpu_custom_call.1
$region0: #{tpu_custom_call.1}
  #allocation0 [shape = 'u32[]', space=smem, size = 0x4, offset = 0x4, fixed_abs, tag = 'smem constant byte address 0x4 - core index']
  #allocation1 [shape = 'u32[72,128]{1,0:T(1,128)}', space=vmem, size = 0x9000, scoped, tag = 'internal scratch']
  %s0 = inlined_call_operand.hbm [shape: f32[16,16], index: 0, kind: input, shape index: {}]
  %s1 = inlined_call_operand.hbm [shape: f32[6,16], index: 1, kind: input, shape index: {}]
  %s2 = inlined_call_operand.hbm [shape: f32[2,16], index: 2, kind: input, shape index: {}]
  %s3 = inlined_call_operand.hbm [shape: f32[16,16], index: 3, kind: input, shape index: {}]
  %s4 = inlined_call_operand.hbm [shape: f32[16,16], index: 4, kind: input, shape index: {}]
  %s5 = inlined_call_operand.hbm [shape: f32[16,16], index: 5, kind: input, shape index: {}]
  %s6 = inlined_call_operand.hbm [shape: f32[6,16], index: 6, kind: output, shape index: {0}]
  %s7 = inlined_call_operand.hbm [shape: f32[2,16], index: 7, kind: output, shape index: {1}]
  %s8 = inlined_call_operand.hbm [shape: f32[2,16], index: 8, kind: output, shape index: {2}]
  %s9 = inlined_call_operand.hbm [shape: f32[2,16], index: 9, kind: output, shape index: {3}]
  %s10 = inlined_call_operand.hbm [shape: f32[2,16], index: 10, kind: output, shape index: {4}]
  %s11 = inlined_call_operand.hbm [shape: f32[2,16], index: 11, kind: output, shape index: {5}]
  %s12 = inlined_call_operand.hbm [shape: f32[16,16], index: 12, kind: output, shape index: {6}]
  %s13 = inlined_call_operand.hbm [shape: f32[16,16], index: 13, kind: output, shape index: {7}]
  %14 = xla_tuple %s6, %s7, %s8, %s9, %s10, %s11, %s12, %s13
  %s15 = sld [smem:[#allocation0]]
  $region141: #{tpu_custom_call.1} parent=0
    _
  %s17 = ssub.s32 1, %s15
  %s18 = scalar_select 0, %s17, %s15
  $region1: #{tpu_custom_call.1} parent=0
    #allocation2 [shape = 'u8[8192]{0}', space=vmem, size = 0x2000, scoped, tag = 'input window, operand 0, single buffered']
    #allocation3 [shape = 's32[2]{0}', space=sflag, size = 0x8, scoped, tag = 'scoped memory for tpu_custom_call.1']
    #allocation4 [shape = 's32[2]{0}', space=sflag, size = 0x8, scoped, tag = 'scoped memory for tpu_custom_call.1']
    #allocation5 [shape = 'u8[4096]{0}', space=vmem, size = 0x1000, scoped, tag = 'input window, operand 1, single buffered']
    #allocation6 [shape = 's32[1]{0}', space=sflag, size = 0x4, scoped, tag = 'scoped memory for tpu_custom_call.1']
    #allocation7 [shape = 'u8[1024]{0}', space=vmem, size = 0x400, scoped, tag = 'input window, operand 2, single buffered']
    #allocation8 [shape = 'u8[8192]{0}', space=vmem, size = 0x2000, scoped, tag = 'input window, operand 3']
    #allocation9 [shape = 's32[2]{0}', space=sflag, size = 0x8, scoped, tag = 'scoped memory for tpu_custom_call.1']
    #allocation10 [shape = 'u8[8192]{0}', space=vmem, size = 0x2000, scoped, tag = 'input window, operand 4']
    #allocation11 [shape = 'u8[8192]{0}', space=vmem, size = 0x2000, scoped, tag = 'input window, operand 5']
    #allocation12 [shape = 's32[2]{0}', space=sflag, size = 0x8, scoped, tag = 'scoped memory for tpu_custom_call.1']
    #allocation13 [shape = 'u8[4096]{0}', space=vmem, size = 0x1000, scoped, tag = 'output window, operand 0, single buffered']
    #allocation14 [shape = 'u8[1024]{0}', space=vmem, size = 0x400, scoped, tag = 'output window, operand 1, single buffered']
    #allocation15 [shape = 's32[1]{0}', space=sflag, size = 0x4, scoped, tag = 'scoped memory for tpu_custom_call.1']
    #allocation16 [shape = 'u8[1024]{0}', space=vmem, size = 0x400, scoped, tag = 'output window, operand 2, single buffered']
    #allocation17 [shape = 'u8[1024]{0}', space=vmem, size = 0x400, scoped, tag = 'output window, operand 3, single buffered']
    #allocation18 [shape = 's32[1]{0}', space=sflag, size = 0x4, scoped, tag = 'scoped memory for tpu_custom_call.1']
    #allocation19 [shape = 'u8[1024]{0}', space=vmem, size = 0x400, scoped, tag = 'output window, operand 4, single buffered']
    #allocation20 [shape = 'u8[1024]{0}', space=vmem, size = 0x400, scoped, tag = 'output window, operand 5, single buffered']
    #allocation21 [shape = 's32[1]{0}', space=sflag, size = 0x4, scoped, tag = 'scoped memory for tpu_custom_call.1']
    #allocation22 [shape = 'u8[8192]{0}', space=vmem, size = 0x2000, scoped, tag = 'output window, operand 6']
    #allocation23 [shape = 'u8[8192]{0}', space=vmem, size = 0x2000, scoped, tag = 'output window, operand 7']
    %19 = vsyncpa [#allocation3], 0
    %20 = vsyncpa [#allocation6], 0
    %21 = vsyncpa [#allocation9], 0
    %s22 = scalar_lea.sflag [#allocation9], 1
    %23 = vsyncpa %s22, 0
    %24 = vsyncpa [#allocation12], 0
    %s25 = scalar_lea.sflag [#allocation12], 1
    %26 = vsyncpa %s25, 0
    %27 = vsyncpa [#allocation4], 0
    %28 = vsyncpa [#allocation15], 0
    %29 = vsyncpa [#allocation18], 0
    %30 = vsyncpa [#allocation21], 0
    loop: start=0, step=1, limit=4
    $region2: #{tpu_custom_call.1} parent=1 // loop_pre_header
      _
    $region3: #{tpu_custom_call.1} parent=1 // loop_header
      %s32 = sphi 0, %s36
      %p33 = scmp.ge.s32.totalorder %s32, 4
      %s40 = sphi 0, %s40
      %s42 = sphi 0, %s40
      %s43 = sphi 0, %s42
      %s57 = sphi 0, %s43
      %s61 = sphi 0, %s61
      %s63 = sphi 0, %s61
      %s64 = sphi 0, %s63
      %s78 = sphi 0, %s64
      %s82 = sphi 0, %s82
      %s84 = sphi 0, %s82
      %s85 = sphi 0, %s84
      %s99 = sphi 0, %s85
      %s105 = sphi 0, %s107
      %s108 = sphi 0, %s105
      %s109 = sphi 0, %s108
      %s125 = sphi 0, %s109
      %s131 = sphi 0, %s133
      %s134 = sphi 0, %s131
      %s135 = sphi 0, %s134
      %s151 = sphi 0, %s135
      %s157 = sphi 0, %s159
      %s160 = sphi 0, %s157
      %s161 = sphi 0, %s160
      %s177 = sphi 0, %s161
      %s181 = sphi 0, %s181
      %s183 = sphi 0, %s181
      %s184 = sphi 0, %s183
      %s198 = sphi 0, %s184
      %s202 = sphi 0, %s202
      %s204 = sphi 0, %s202
      %s205 = sphi 0, %s204
      %s219 = sphi 0, %s205
      %s223 = sphi 0, %s223
      %s225 = sphi 0, %s223
      %s226 = sphi 0, %s225
      %s240 = sphi 0, %s226
      %s244 = sphi 0, %s244
      %s246 = sphi 0, %s244
      %s247 = sphi 0, %s246
      %s261 = sphi 0, %s247
      %s265 = sphi 0, %s265
      %s267 = sphi 0, %s265
      %s268 = sphi 0, %s267
      %s282 = sphi 0, %s268
      %s286 = sphi 0, %s286
      %s288 = sphi 0, %s286
      %s289 = sphi 0, %s288
      %s303 = sphi 0, %s289
      %s309 = sphi 0, %s311
      %s312 = sphi 0, %s309
      %s313 = sphi 0, %s312
      %s329 = sphi 0, %s313
      %s335 = sphi 0, %s337
      %s338 = sphi 0, %s335
      %s339 = sphi 0, %s338
      %s355 = sphi 0, %s339
    $region4: #{tpu_custom_call.1} parent=1 // loop_header_branch
      %35 = sbr.rel (%p33) target = $region8
    $region5: #{tpu_custom_call.1} parent=1 // loop_body
      %s37 = ssub.s32 %s32, 1
      %s38 = ssub.s32 %s32, 2
      %s39 = sadd.s32 %s32, 1
      %s41 = sadd.s32 %s40, 1
      %p44 = scmp.eq.s32.totalorder %s32, 1
      %p45 = scmp.ne.s32.totalorder %s40, %s42
      %p46 = scmp.eq.s32.totalorder %s32, 0
      %p47 = por %p45, %p46
      %p48 = scmp.ne.s32.totalorder %s40, %s42
      %p49 = scmp.eq.s32.totalorder %s37, 1
      %p50 = por %p48, %p49
      %p51 = scmp.ne.s32.totalorder %s42, %s43
      %p52 = scmp.eq.s32.totalorder %s37, 0
      %p53 = por %p51, %p52
      %p54 = scmp.ne.s32.totalorder %s42, %s43
      %p55 = scmp.eq.s32.totalorder %s38, 1
      %p56 = por %p54, %p55
      %p58 = scmp.ne.s32.totalorder %s43, %s57
      %p59 = scmp.eq.s32.totalorder %s38, 0
      %p60 = por %p58, %p59
      %s62 = sadd.s32 %s61, 1
      %p65 = scmp.eq.s32.totalorder %s32, 1
      %p66 = scmp.ne.s32.totalorder %s61, %s63
      %p67 = scmp.eq.s32.totalorder %s32, 0
      %p68 = por %p66, %p67
      %p69 = scmp.ne.s32.totalorder %s61, %s63
      %p70 = scmp.eq.s32.totalorder %s37, 1
      %p71 = por %p69, %p70
      %p72 = scmp.ne.s32.totalorder %s63, %s64
      %p73 = scmp.eq.s32.totalorder %s37, 0
      %p74 = por %p72, %p73
      %p75 = scmp.ne.s32.totalorder %s63, %s64
      %p76 = scmp.eq.s32.totalorder %s38, 1
      %p77 = por %p75, %p76
      %p79 = scmp.ne.s32.totalorder %s64, %s78
      %p80 = scmp.eq.s32.totalorder %s38, 0
      %p81 = por %p79, %p80
      %s83 = sadd.s32 %s82, 1
      %p86 = scmp.eq.s32.totalorder %s32, 1
      %p87 = scmp.ne.s32.totalorder %s82, %s84
      %p88 = scmp.eq.s32.totalorder %s32, 0
      %p89 = por %p87, %p88
      %p90 = scmp.ne.s32.totalorder %s82, %s84
      %p91 = scmp.eq.s32.totalorder %s37, 1
      %p92 = por %p90, %p91
      %p93 = scmp.ne.s32.totalorder %s84, %s85
      %p94 = scmp.eq.s32.totalorder %s37, 0
      %p95 = por %p93, %p94
      %p96 = scmp.ne.s32.totalorder %s84, %s85
      %p97 = scmp.eq.s32.totalorder %s38, 1
      %p98 = por %p96, %p97
      %p100 = scmp.ne.s32.totalorder %s85, %s99
      %p101 = scmp.eq.s32.totalorder %s38, 0
      %p102 = por %p100, %p101
      %s103 = ssub.s32 %s32, %s39
      %p104 = scmp.eq.s32.totalorder %s103, 0
      %s106 = sadd.s32 %s105, 1
      %s107 = scalar_select %p104, %s105, %s106
      %p110 = pneg %p104
      %p111 = scmp.eq.s32.totalorder %s32, 1
      %p112 = por %p110, %p111
      %p113 = scmp.ne.s32.totalorder %s105, %s108
      %p114 = scmp.eq.s32.totalorder %s32, 0
      %p115 = por %p113, %p114
      %p116 = scmp.ne.s32.totalorder %s105, %s108
      %p117 = scmp.eq.s32.totalorder %s37, 1
      %p118 = por %p116, %p117
      %p119 = scmp.ne.s32.totalorder %s108, %s109
      %p120 = scmp.eq.s32.totalorder %s37, 0
      %p121 = por %p119, %p120
      %p122 = scmp.ne.s32.totalorder %s108, %s109
      %p123 = scmp.eq.s32.totalorder %s38, 1
      %p124 = por %p122, %p123
      %p126 = scmp.ne.s32.totalorder %s109, %s125
      %p127 = scmp.eq.s32.totalorder %s38, 0
      %p128 = por %p126, %p127
      %s129 = ssub.s32 %s32, %s39
      %p130 = scmp.eq.s32.totalorder %s129, 0
      %s132 = sadd.s32 %s131, 1
      %s133 = scalar_select %p130, %s131, %s132
      %p136 = pneg %p130
      %p137 = scmp.eq.s32.totalorder %s32, 1
      %p138 = por %p136, %p137
      %p139 = scmp.ne.s32.totalorder %s131, %s134
      %p140 = scmp.eq.s32.totalorder %s32, 0
      %p141 = por %p139, %p140
      %p142 = scmp.ne.s32.totalorder %s131, %s134
      %p143 = scmp.eq.s32.totalorder %s37, 1
      %p144 = por %p142, %p143
      %p145 = scmp.ne.s32.totalorder %s134, %s135
      %p146 = scmp.eq.s32.totalorder %s37, 0
      %p147 = por %p145, %p146
      %p148 = scmp.ne.s32.totalorder %s134, %s135
      %p149 = scmp.eq.s32.totalorder %s38, 1
      %p150 = por %p148, %p149
      %p152 = scmp.ne.s32.totalorder %s135, %s151
      %p153 = scmp.eq.s32.totalorder %s38, 0
      %p154 = por %p152, %p153
      %s155 = ssub.s32 %s32, %s39
      %p156 = scmp.eq.s32.totalorder %s155, 0
      %s158 = sadd.s32 %s157, 1
      %s159 = scalar_select %p156, %s157, %s158
      %p162 = pneg %p156
      %p163 = scmp.eq.s32.totalorder %s32, 1
      %p164 = por %p162, %p163
      %p165 = scmp.ne.s32.totalorder %s157, %s160
      %p166 = scmp.eq.s32.totalorder %s32, 0
      %p167 = por %p165, %p166
      %p168 = scmp.ne.s32.totalorder %s157, %s160
      %p169 = scmp.eq.s32.totalorder %s37, 1
      %p170 = por %p168, %p169
      %p171 = scmp.ne.s32.totalorder %s160, %s161
      %p172 = scmp.eq.s32.totalorder %s37, 0
      %p173 = por %p171, %p172
      %p174 = scmp.ne.s32.totalorder %s160, %s161
      %p175 = scmp.eq.s32.totalorder %s38, 1
      %p176 = por %p174, %p175
      %p178 = scmp.ne.s32.totalorder %s161, %s177
      %p179 = scmp.eq.s32.totalorder %s38, 0
      %p180 = por %p178, %p179
      %s182 = sadd.s32 %s181, 1
      %p185 = scmp.eq.s32.totalorder %s32, 1
      %p186 = scmp.ne.s32.totalorder %s181, %s183
      %p187 = scmp.eq.s32.totalorder %s32, 0
      %p188 = por %p186, %p187
      %p189 = scmp.ne.s32.totalorder %s181, %s183
      %p190 = scmp.eq.s32.totalorder %s37, 1
      %p191 = por %p189, %p190
      %p192 = scmp.ne.s32.totalorder %s183, %s184
      %p193 = scmp.eq.s32.totalorder %s37, 0
      %p194 = por %p192, %p193
      %p195 = scmp.ne.s32.totalorder %s183, %s184
      %p196 = scmp.eq.s32.totalorder %s38, 1
      %p197 = por %p195, %p196
      %p199 = scmp.ne.s32.totalorder %s184, %s198
      %p200 = scmp.eq.s32.totalorder %s38, 0
      %p201 = por %p199, %p200
      %s203 = sadd.s32 %s202, 1
      %p206 = scmp.eq.s32.totalorder %s32, 1
      %p207 = scmp.ne.s32.totalorder %s202, %s204
      %p208 = scmp.eq.s32.totalorder %s32, 0
      %p209 = por %p207, %p208
      %p210 = scmp.ne.s32.totalorder %s202, %s204
      %p211 = scmp.eq.s32.totalorder %s37, 1
      %p212 = por %p210, %p211
      %p213 = scmp.ne.s32.totalorder %s204, %s205
      %p214 = scmp.eq.s32.totalorder %s37, 0
      %p215 = por %p213, %p214
      %p216 = scmp.ne.s32.totalorder %s204, %s205
      %p217 = scmp.eq.s32.totalorder %s38, 1
      %p218 = por %p216, %p217
      %p220 = scmp.ne.s32.totalorder %s205, %s219
      %p221 = scmp.eq.s32.totalorder %s38, 0
      %p222 = por %p220, %p221
      %s224 = sadd.s32 %s223, 1
      %p227 = scmp.eq.s32.totalorder %s32, 1
      %p228 = scmp.ne.s32.totalorder %s223, %s225
      %p229 = scmp.eq.s32.totalorder %s32, 0
      %p230 = por %p228, %p229
      %p231 = scmp.ne.s32.totalorder %s223, %s225
      %p232 = scmp.eq.s32.totalorder %s37, 1
      %p233 = por %p231, %p232
      %p234 = scmp.ne.s32.totalorder %s225, %s226
      %p235 = scmp.eq.s32.totalorder %s37, 0
      %p236 = por %p234, %p235
      %p237 = scmp.ne.s32.totalorder %s225, %s226
      %p238 = scmp.eq.s32.totalorder %s38, 1
      %p239 = por %p237, %p238
      %p241 = scmp.ne.s32.totalorder %s226, %s240
      %p242 = scmp.eq.s32.totalorder %s38, 0
      %p243 = por %p241, %p242
      %s245 = sadd.s32 %s244, 1
      %p248 = scmp.eq.s32.totalorder %s32, 1
      %p249 = scmp.ne.s32.totalorder %s244, %s246
      %p250 = scmp.eq.s32.totalorder %s32, 0
      %p251 = por %p249, %p250
      %p252 = scmp.ne.s32.totalorder %s244, %s246
      %p253 = scmp.eq.s32.totalorder %s37, 1
      %p254 = por %p252, %p253
      %p255 = scmp.ne.s32.totalorder %s246, %s247
      %p256 = scmp.eq.s32.totalorder %s37, 0
      %p257 = por %p255, %p256
      %p258 = scmp.ne.s32.totalorder %s246, %s247
      %p259 = scmp.eq.s32.totalorder %s38, 1
      %p260 = por %p258, %p259
      %p262 = scmp.ne.s32.totalorder %s247, %s261
      %p263 = scmp.eq.s32.totalorder %s38, 0
      %p264 = por %p262, %p263
      %s266 = sadd.s32 %s265, 1
      %p269 = scmp.eq.s32.totalorder %s32, 1
      %p270 = scmp.ne.s32.totalorder %s265, %s267
      %p271 = scmp.eq.s32.totalorder %s32, 0
      %p272 = por %p270, %p271
      %p273 = scmp.ne.s32.totalorder %s265, %s267
      %p274 = scmp.eq.s32.totalorder %s37, 1
      %p275 = por %p273, %p274
      %p276 = scmp.ne.s32.totalorder %s267, %s268
      %p277 = scmp.eq.s32.totalorder %s37, 0
      %p278 = por %p276, %p277
      %p279 = scmp.ne.s32.totalorder %s267, %s268
      %p280 = scmp.eq.s32.totalorder %s38, 1
      %p281 = por %p279, %p280
      %p283 = scmp.ne.s32.totalorder %s268, %s282
      %p284 = scmp.eq.s32.totalorder %s38, 0
      %p285 = por %p283, %p284
      %s287 = sadd.s32 %s286, 1
      %p290 = scmp.eq.s32.totalorder %s32, 1
      %p291 = scmp.ne.s32.totalorder %s286, %s288
      %p292 = scmp.eq.s32.totalorder %s32, 0
      %p293 = por %p291, %p292
      %p294 = scmp.ne.s32.totalorder %s286, %s288
      %p295 = scmp.eq.s32.totalorder %s37, 1
      %p296 = por %p294, %p295
      %p297 = scmp.ne.s32.totalorder %s288, %s289
      %p298 = scmp.eq.s32.totalorder %s37, 0
      %p299 = por %p297, %p298
      %p300 = scmp.ne.s32.totalorder %s288, %s289
      %p301 = scmp.eq.s32.totalorder %s38, 1
      %p302 = por %p300, %p301
      %p304 = scmp.ne.s32.totalorder %s289, %s303
      %p305 = scmp.eq.s32.totalorder %s38, 0
      %p306 = por %p304, %p305
      %s307 = ssub.s32 %s32, %s39
      %p308 = scmp.eq.s32.totalorder %s307, 0
      %s310 = sadd.s32 %s309, 1
      %s311 = scalar_select %p308, %s309, %s310
      %p314 = pneg %p308
      %p315 = scmp.eq.s32.totalorder %s32, 1
      %p316 = por %p314, %p315
      %p317 = scmp.ne.s32.totalorder %s309, %s312
      %p318 = scmp.eq.s32.totalorder %s32, 0
      %p319 = por %p317, %p318
      %p320 = scmp.ne.s32.totalorder %s309, %s312
      %p321 = scmp.eq.s32.totalorder %s37, 1
      %p322 = por %p320, %p321
      %p323 = scmp.ne.s32.totalorder %s312, %s313
      %p324 = scmp.eq.s32.totalorder %s37, 0
      %p325 = por %p323, %p324
      %p326 = scmp.ne.s32.totalorder %s312, %s313
      %p327 = scmp.eq.s32.totalorder %s38, 1
      %p328 = por %p326, %p327
      %p330 = scmp.ne.s32.totalorder %s313, %s329
      %p331 = scmp.eq.s32.totalorder %s38, 0
      %p332 = por %p330, %p331
      %s333 = ssub.s32 %s32, %s39
      %p334 = scmp.eq.s32.totalorder %s333, 0
      %s336 = sadd.s32 %s335, 1
      %s337 = scalar_select %p334, %s335, %s336
      %p340 = pneg %p334
      %p341 = scmp.eq.s32.totalorder %s32, 1
      %p342 = por %p340, %p341
      %p343 = scmp.ne.s32.totalorder %s335, %s338
      %p344 = scmp.eq.s32.totalorder %s32, 0
      %p345 = por %p343, %p344
      %p346 = scmp.ne.s32.totalorder %s335, %s338
      %p347 = scmp.eq.s32.totalorder %s37, 1
      %p348 = por %p346, %p347
      %p349 = scmp.ne.s32.totalorder %s338, %s339
      %p350 = scmp.eq.s32.totalorder %s37, 0
      %p351 = por %p349, %p350
      %p352 = scmp.ne.s32.totalorder %s338, %s339
      %p353 = scmp.eq.s32.totalorder %s38, 1
      %p354 = por %p352, %p353
      %p356 = scmp.ne.s32.totalorder %s339, %s355
      %p357 = scmp.eq.s32.totalorder %s38, 0
      %p358 = por %p356, %p357
      %p359 = scmp.le.s32.totalorder 1, %s32
      %p360 = scmp.lt.s32.totalorder %s32, 3
      %p361 = pnand %p359, %p360
      %p362 = pneg %p361
      // Predicated region
      $region9: #{tpu_custom_call.1} parent=5 // pred_check
        _
      $region10: #{tpu_custom_call.1} parent=5 // pred_check_branch
        %364 = sbr.rel (%p361) target = $region12
      $region11: #{tpu_custom_call.1} parent=5 // pred_region
        %s365 = ssub.s32 %s32, 1
        // Predicated region
        $region13: #{tpu_custom_call.1} parent=11 // pred_check
          %p366 = pneg %p53
        $region14: #{tpu_custom_call.1} parent=11 // pred_check_branch
          %368 = sbr.rel (%p366) target = $region16
        $region15: #{tpu_custom_call.1} parent=11 // pred_region
          %370 = vsyncadd [#allocation3], 0
          %s371 = sshll.u32 %s0, 4
          %s372 = int_to_ptr.hbm [resolvable:$true] %s371
          %s373 = sshll.u32 [#allocation2], 4
          %s374 = int_to_ptr.vmem [resolvable:$true] %s373
          %379 = dma.hbm_to_vmem [thread:$0]  %s372, 256, %s374, [#allocation3], 128, 128, 8
        $region16: #{tpu_custom_call.1} parent=11 // pred_fallthru
          _
        // Predicated region
        $region17: #{tpu_custom_call.1} parent=11 // pred_check
          %p380 = pneg %p74
        $region18: #{tpu_custom_call.1} parent=11 // pred_check_branch
          %382 = sbr.rel (%p380) target = $region20
        $region19: #{tpu_custom_call.1} parent=11 // pred_region
          %384 = vsyncadd [#allocation6], 0
          %s386 = sshll.u32 %s1, 4
          %s387 = int_to_ptr.hbm [resolvable:$true] %s386
          %s388 = sshll.u32 [#allocation5], 4
          %s389 = int_to_ptr.vmem [resolvable:$true] %s388
          %391 = dma.hbm_to_vmem [thread:$0]  %s387, 128, %s389, [#allocation6]
        $region20: #{tpu_custom_call.1} parent=11 // pred_fallthru
          _
        // Predicated region
        $region21: #{tpu_custom_call.1} parent=11 // pred_check
          %p392 = pneg %p95
        $region22: #{tpu_custom_call.1} parent=11 // pred_check_branch
          %394 = sbr.rel (%p392) target = $region24
        $region23: #{tpu_custom_call.1} parent=11 // pred_region
          %396 = vsyncadd [#allocation6], 0
          %s398 = sshll.u32 %s2, 4
          %s399 = int_to_ptr.hbm [resolvable:$true] %s398
          %s400 = sshll.u32 [#allocation7], 4
          %s401 = int_to_ptr.vmem [resolvable:$true] %s400
          %403 = dma.hbm_to_vmem [thread:$0]  %s399, 32, %s401, [#allocation6]
        $region24: #{tpu_custom_call.1} parent=11 // pred_fallthru
          _
      $region12: #{tpu_custom_call.1} parent=5 // pred_fallthru
        _
      %p404 = scmp.lt.s32.totalorder %s32, 2
      // Predicated region
      $region25: #{tpu_custom_call.1} parent=5 // pred_check
        %p405 = pneg %p404
      $region26: #{tpu_custom_call.1} parent=5 // pred_check_branch
        %407 = sbr.rel (%p405) target = $region28
      $region27: #{tpu_custom_call.1} parent=5 // pred_region
        // Predicated region
        $region29: #{tpu_custom_call.1} parent=27 // pred_check
          %p408 = pneg %p115
        $region30: #{tpu_custom_call.1} parent=27 // pred_check_branch
          %410 = sbr.rel (%p408) target = $region32
        $region31: #{tpu_custom_call.1} parent=27 // pred_region
          %s411 = sand.u32 %s32, 1
          %s412 = scalar_lea.sflag [#allocation9], %s411
          %s413 = sand.u32 %s105, 1
          %s414 = smul.addr %s413, 8
          %s415 = scalar_lea.vmem [#allocation8], %s414
          %417 = vsyncadd %s412, 0
          %s418 = smul.addr %s32, 8
          %s419 = scalar_lea.hbm %s3, %s418
          %s421 = sshll.u32 %s419, 4
          %s422 = int_to_ptr.hbm [resolvable:$true] %s421
          %s423 = sshll.u32 %s415, 4
          %s424 = int_to_ptr.vmem [resolvable:$true] %s423
          %426 = dma.hbm_to_vmem [thread:$0]  %s422, 128, %s424, %s412
        $region32: #{tpu_custom_call.1} parent=27 // pred_fallthru
          _
        // Predicated region
        $region33: #{tpu_custom_call.1} parent=27 // pred_check
          %p427 = pneg %p141
        $region34: #{tpu_custom_call.1} parent=27 // pred_check_branch
          %429 = sbr.rel (%p427) target = $region36
        $region35: #{tpu_custom_call.1} parent=27 // pred_region
          %s430 = sand.u32 %s32, 1
          %s431 = scalar_lea.sflag [#allocation9], %s430
          %s432 = sand.u32 %s131, 1
          %s433 = smul.addr %s432, 8
          %s434 = scalar_lea.vmem [#allocation10], %s433
          %436 = vsyncadd %s431, 0
          %s437 = smul.addr %s32, 8
          %s438 = scalar_lea.hbm %s4, %s437
          %s440 = sshll.u32 %s438, 4
          %s441 = int_to_ptr.hbm [resolvable:$true] %s440
          %s442 = sshll.u32 %s434, 4
          %s443 = int_to_ptr.vmem [resolvable:$true] %s442
          %445 = dma.hbm_to_vmem [thread:$0]  %s441, 128, %s443, %s431
        $region36: #{tpu_custom_call.1} parent=27 // pred_fallthru
          _
        // Predicated region
        $region37: #{tpu_custom_call.1} parent=27 // pred_check
          %p446 = pneg %p167
        $region38: #{tpu_custom_call.1} parent=27 // pred_check_branch
          %448 = sbr.rel (%p446) target = $region40
        $region39: #{tpu_custom_call.1} parent=27 // pred_region
          %s449 = sand.u32 %s157, 1
          %s450 = scalar_lea.sflag [#allocation12], %s449
          %s451 = sand.u32 %s157, 1
          %s452 = smul.addr %s451, 8
          %s453 = scalar_lea.vmem [#allocation11], %s452
          %455 = vsyncadd %s450, 0
          %s456 = smul.addr %s32, 8
          %s457 = scalar_lea.hbm %s5, %s456
          %s459 = sshll.u32 %s457, 4
          %s460 = int_to_ptr.hbm [resolvable:$true] %s459
          %s461 = sshll.u32 %s453, 4
          %s462 = int_to_ptr.vmem [resolvable:$true] %s461
          %464 = dma.hbm_to_vmem [thread:$0]  %s460, 128, %s462, %s450
        $region40: #{tpu_custom_call.1} parent=27 // pred_fallthru
          _
      $region28: #{tpu_custom_call.1} parent=5 // pred_fallthru
        _
      %p465 = scmp.le.s32.totalorder 1, %s32
      %p466 = scmp.lt.s32.totalorder %s32, 3
      %p467 = pnand %p465, %p466
      %p468 = pneg %p467
      // Predicated region
      $region41: #{tpu_custom_call.1} parent=5 // pred_check
        _
      $region42: #{tpu_custom_call.1} parent=5 // pred_check_branch
        %470 = sbr.rel (%p467) target = $region44
      $region43: #{tpu_custom_call.1} parent=5 // pred_region
        %s471 = ssub.s32 %s32, 1
        // Predicated region
        $region45: #{tpu_custom_call.1} parent=43 // pred_check
          %p472 = pneg %p53
        $region46: #{tpu_custom_call.1} parent=43 // pred_check_branch
          %474 = sbr.rel (%p472) target = $region48
        $region47: #{tpu_custom_call.1} parent=43 // pred_region
          %476 = dma.done [#allocation3], 256
        $region48: #{tpu_custom_call.1} parent=43 // pred_fallthru
          _
        // Predicated region
        $region49: #{tpu_custom_call.1} parent=43 // pred_check
          %p477 = pneg %p74
        $region50: #{tpu_custom_call.1} parent=43 // pred_check_branch
          %479 = sbr.rel (%p477) target = $region52
        $region51: #{tpu_custom_call.1} parent=43 // pred_region
          %481 = dma.done [#allocation6], 128
        $region52: #{tpu_custom_call.1} parent=43 // pred_fallthru
          _
        // Predicated region
        $region53: #{tpu_custom_call.1} parent=43 // pred_check
          %p482 = pneg %p95
        $region54: #{tpu_custom_call.1} parent=43 // pred_check_branch
          %484 = sbr.rel (%p482) target = $region56
        $region55: #{tpu_custom_call.1} parent=43 // pred_region
          %486 = dma.done [#allocation6], 32
        $region56: #{tpu_custom_call.1} parent=43 // pred_fallthru
          _
        %s487 = sand.u32 %s37, 1
        %s488 = scalar_lea.sflag [#allocation9], %s487
        %s489 = sand.u32 %s108, 1
        %s490 = smul.addr %s489, 8
        %s491 = scalar_lea.vmem [#allocation8], %s490
        // Predicated region
        $region57: #{tpu_custom_call.1} parent=43 // pred_check
          %p492 = pneg %p121
        $region58: #{tpu_custom_call.1} parent=43 // pred_check_branch
          %494 = sbr.rel (%p492) target = $region60
        $region59: #{tpu_custom_call.1} parent=43 // pred_region
          %496 = dma.done %s488, 128
        $region60: #{tpu_custom_call.1} parent=43 // pred_fallthru
          _
        %s497 = sand.u32 %s37, 1
        %s498 = scalar_lea.sflag [#allocation9], %s497
        %s499 = sand.u32 %s134, 1
        %s500 = smul.addr %s499, 8
        %s501 = scalar_lea.vmem [#allocation10], %s500
        // Predicated region
        $region61: #{tpu_custom_call.1} parent=43 // pred_check
          %p502 = pneg %p147
        $region62: #{tpu_custom_call.1} parent=43 // pred_check_branch
          %504 = sbr.rel (%p502) target = $region64
        $region63: #{tpu_custom_call.1} parent=43 // pred_region
          %506 = dma.done %s498, 128
        $region64: #{tpu_custom_call.1} parent=43 // pred_fallthru
          _
        %s507 = sand.u32 %s160, 1
        %s508 = scalar_lea.sflag [#allocation12], %s507
        %s509 = sand.u32 %s160, 1
        %s510 = smul.addr %s509, 8
        %s511 = scalar_lea.vmem [#allocation11], %s510
        // Predicated region
        $region65: #{tpu_custom_call.1} parent=43 // pred_check
          %p512 = pneg %p173
        $region66: #{tpu_custom_call.1} parent=43 // pred_check_branch
          %514 = sbr.rel (%p512) target = $region68
        $region67: #{tpu_custom_call.1} parent=43 // pred_region
          %516 = dma.done %s508, 128
        $region68: #{tpu_custom_call.1} parent=43 // pred_fallthru
          _
        %p517 = pneg %p53
        %p518 = pneg %p50
        %p519 = pneg %p74
        %p520 = pneg %p71
        %p521 = pneg %p95
        %p522 = pneg %p92
        %s523 = sand.u32 %s37, 1
        %s524 = scalar_lea.sflag [#allocation9], %s523
        %s525 = sand.u32 %s108, 1
        %s526 = smul.addr %s525, 8
        %s527 = scalar_lea.vmem [#allocation8], %s526
        %p528 = pneg %p121
        %p529 = pneg %p118
        %s530 = sand.u32 %s37, 1
        %s531 = scalar_lea.sflag [#allocation9], %s530
        %s532 = sand.u32 %s134, 1
        %s533 = smul.addr %s532, 8
        %s534 = scalar_lea.vmem [#allocation10], %s533
        %p535 = pneg %p147
        %p536 = pneg %p144
        %s537 = sand.u32 %s160, 1
        %s538 = scalar_lea.sflag [#allocation12], %s537
        %s539 = sand.u32 %s160, 1
        %s540 = smul.addr %s539, 8
        %s541 = scalar_lea.vmem [#allocation11], %s540
        %p542 = pneg %p173
        %p543 = pneg %p170
        %p544 = pneg %p194
        %p545 = pneg %p191
        %p546 = pneg %p215
        %p547 = pneg %p212
        %p548 = pneg %p236
        %p549 = pneg %p233
        %p550 = pneg %p257
        %p551 = pneg %p254
        %p552 = pneg %p278
        %p553 = pneg %p275
        %p554 = pneg %p299
        %p555 = pneg %p296
        %p556 = pneg %p325
        %p557 = pneg %p322
        %s558 = sand.u32 %s37, 1
        %s559 = scalar_lea.sflag [#allocation4], %s558
        %s560 = sand.u32 %s312, 1
        %s561 = smul.addr %s560, 8
        %s562 = scalar_lea.vmem [#allocation22], %s561
        %p563 = pneg %p351
        %p564 = pneg %p348
        %s565 = sand.u32 %s37, 1
        %s566 = scalar_lea.sflag [#allocation4], %s565
        %s567 = sand.u32 %s338, 1
        %s568 = smul.addr %s567, 8
        %s569 = scalar_lea.vmem [#allocation23], %s568
        %p570 = scmp.eq.s32.totalorder %s37, 0
        // Predicated region
        $region69: #{tpu_custom_call.1} parent=43 // pred_check
          %p571 = pneg %p570
        $region70: #{tpu_custom_call.1} parent=43 // pred_check_branch
          %573 = sbr.rel (%p571) target = $region72
        $region71: #{tpu_custom_call.1} parent=43 // pred_region
          %v574 = vld [vmem:[#allocation5] sm:$0x3f]
          %vm575 = vcmask 128000
          %576 = vst.msk [vmem:[#allocation13] sm:$0x3f] %vm575, %v574
        $region72: #{tpu_custom_call.1} parent=43 // pred_fallthru
          _
        %v577 = vld [vmem:[#allocation2] sm:$0xff]
        %v578 = vld [vmem:[#allocation2 + $0x8] sm:$0xff]
        %v579 = vld [vmem:[#allocation13] sm:$0x3f]
        %v580 = vld [vmem:[%s491] sm:$0xff]
        %v581 = vmul.f32 %v580, 0.008944272
        %v582 = vld [vmem:[%s501] sm:$0xff]
        %v583 = vmul.f32 %v582, 0.008944272
        %v584 = vld [vmem:[%s511] sm:$0xff]
        %vm585 = vcmask 130048
        %v587 = vsel %vm585, %v579, 0
        %589 = vmatpush.msra.mxu0 0.0
        %590 = vmatpush.msra.mxu0 0.0
        %591 = vmatpush.msra.mxu0 0.0
        %592 = vmatpush.msra.mxu0 0.0
        %593 = vmatpush.msra.mxu0 0.0
        %594 = vmatpush.msra.mxu0 0.0
        %595 = vmatpush.msra.mxu0 0.0
        %596 = vmatpush.msra.mxu0 0.0
        %597 = vmatpush.msra.mxu0 0.0
        %598 = vmatpush.msra.mxu0 0.0
        %599 = vmatpush.msra.mxu0 0.0
        %600 = vmatpush.msra.mxu0 0.0
        %601 = vmatpush.msra.mxu0 0.0
        %602 = vmatpush.msra.mxu0 0.0
        %603 = vmatpush.msra.mxu0 %v578
        %604 = vmatpush.msra.mxu0 %v577
        %605 = vmatmul.f32.gmra.mxu0 %v587
        %v606 = vpop.f32.mrf.mxu0
        %v607 = vadd.f32 0.0, %v606
        %608 = vdwg.mxu0
        %v609 = vmul.f32 %v579, 0.101
        %v610 = vadd.f32 %v609, 0.32
        %v611 = vadd.f32 %v610, %v607
        %v613 = vrot.slane %v609, 1
        %v615 = vsub.f32 %v611, %v613
        %v616 = vmax.f32 %v615, 0.0
        %v617 = vadd.f32 %v616, %v584
        %v618 = vadd.f32 %v609, 0.224
        %v619 = vrot.slane %v579, 1
        %v621 = vsub.f32 %v618, %v619
        %v622 = vmax.f32 %v621, 0.0
        %v623 = vmul.f32 %v617, 310.0
        %v624 = vsub.f32 %v623, 125.0
        %v625 = vand.u32 2147483647, %v624
        %v626 = vadd.f32 %v625, 1e-05
        %v627 = vmul.f32 %v624, -0.16
        %v628 = vmul.f32 %v627, 1.442695
        %v629 = vpow.pop %v628
        %v630 = vsub.f32 1.0, %v629
        %v631 = vand.u32 2147483647, %v630
        %v632 = vadd.f32 %v631, 1.6e-06
        %v633 = vrcp.pop %v632
        %v634 = vmul.f32 %v632, %v633
        %v635 = vsub.f32 1.0, %v634
        %v636 = vmul.f32 %v633, %v635
        %v637 = vadd.f32 %v633, %v636
        %vm638 = vweird.f32 %v632
        %vm639 = vweird.f32 %v633
        %vm640 = vmor %vm638, %vm639
        %v641 = vsel %vm640, %v633, %v637
        %v642 = vand.u32 2147483647, %v632
        %vm643 = vcmp.eq.f32.partialorder %v642, 8.507059e+37
        %v644 = vand.u32 %v632, 2147483648
        %v645 = vor.u32 1.1754944e-38, %v644
        %v646 = vsel %vm643, %v645, %v641
        %v647 = vmul.f32 %v626, %v646
        %v648 = vmul.f32 %v622, 615.0
        %v649 = vsub.f32 %v648, 177.0
        %v650 = vand.u32 2147483647, %v649
        %v651 = vadd.f32 %v650, 1e-05
        %v652 = vmul.f32 %v649, -0.087
        %v653 = vmul.f32 %v652, 1.442695
        %v654 = vpow.pop %v653
        %v655 = vsub.f32 1.0, %v654
        %v656 = vand.u32 2147483647, %v655
        %v657 = vadd.f32 %v656, 8.7e-07
        %v658 = vrcp.pop %v657
        %v659 = vmul.f32 %v657, %v658
        %v660 = vsub.f32 1.0, %v659
        %v661 = vmul.f32 %v658, %v660
        %v662 = vadd.f32 %v658, %v661
        %vm663 = vweird.f32 %v657
        %vm664 = vweird.f32 %v658
        %vm665 = vmor %vm663, %vm664
        %v666 = vsel %vm665, %v658, %v662
        %v667 = vand.u32 2147483647, %v657
        %vm668 = vcmp.eq.f32.partialorder %v667, 8.507059e+37
        %v669 = vand.u32 %v657, 2147483648
        %v670 = vor.u32 1.1754944e-38, %v669
        %v671 = vsel %vm668, %v670, %v666
        %v672 = vmul.f32 %v651, %v671
        %v673 = vsub.f32 0.0, %v579
        %v674 = vmul.f32 %v673, 0.01
        %v675 = vsub.f32 1.0, %v579
        %v676 = vmul.f32 %v675, 0.000641
        %v677 = vmul.f32 %v676, %v647
        %v678 = vadd.f32 %v674, %v677
        %v679 = vmul.f32 %v678, 0.05
        %v680 = vadd.f32 %v579, %v679
        %v681 = vadd.f32 %v680, %v581
        %v682 = vmul.f32 %v673, 0.1
        %v683 = vmul.f32 %v672, 0.001
        %v685 = vrot.slane %v683, 7
        %v687 = vadd.f32 %v682, %v685
        %v688 = vmul.f32 %v687, 0.05
        %v689 = vadd.f32 %v579, %v688
        %v691 = vrot.slane %v583, 7
        %v693 = vadd.f32 %v689, %v691
        %v694 = vmul.f32 %v579, 1.5384616
        %v696 = vrot.slane %v694, 2
        %v698 = vsub.f32 %v579, %v696
        %v699 = vsub.f32 %v579, 1.0
        %v700 = vmul.f32 %v699, 2.4390244
        %v702 = vrot.slane %v700, 3
        %v704 = vsub.f32 %v698, %v702
        %v705 = vmul.f32 %v704, 0.05
        %v707 = vrot.slane %v705, 6
        %v709 = vadd.f32 %v579, %v707
        %v710 = vmul.f32 %v579, 0.05
        %v712 = vrot.slane %v710, 7
        %v714 = vadd.f32 %v579, %v712
        %v715 = vlog2.pop %v579
        %v716 = vmul.f32 %v715, 0.6931472
        %v717 = vmul.f32 %v716, 3.125
        %v718 = vmul.f32 %v717, 1.442695
        %v719 = vpow.pop %v718
        %v720 = vmul.f32 %v716, 2.125
        %v721 = vmul.f32 %v720, 1.442695
        %v722 = vpow.pop %v721
        %v723 = vrcp.pop %v579
        %v724 = vmul.f32 %v579, %v723
        %v725 = vsub.f32 1.0, %v724
        %v726 = vmul.f32 %v723, %v725
        %v727 = vadd.f32 %v723, %v726
        %vm728 = vweird.f32 %v579
        %vm729 = vweird.f32 %v723
        %vm730 = vmor %vm728, %vm729
        %v731 = vsel %vm730, %v723, %v727
        %v732 = vand.u32 2147483647, %v579
        %vm733 = vcmp.eq.f32.partialorder %v732, 8.507059e+37
        %v734 = vand.u32 %v579, 2147483648
        %v735 = vor.u32 1.1754944e-38, %v734
        %v736 = vsel %vm733, %v735, %v731
        %v737 = vmul.f32 -0.41551545, %v736
        %v738 = vmul.f32 %v737, 1.442695
        %v739 = vpow.pop %v738
        %v741 = vrot.slane %v719, 1
        %v743 = vsub.f32 %v579, %v741
        %v744 = vmul.f32 %v743, 0.05
        %v745 = vmul.f32 %v744, 1.0204082
        %v747 = vrot.slane %v745, 7
        %v749 = vadd.f32 %v579, %v747
        %v750 = vsub.f32 1.0, %v739
        %v751 = vmul.f32 %v579, %v750
        %v752 = vmul.f32 %v751, 2.9411764
        %v754 = vrot.slane %v722, 7
        %v756 = vmul.f32 %v579, %v754
        %v758 = vrot.slane %v756, 2
        %v760 = vsub.f32 %v752, %v758
        %v761 = vmul.f32 %v760, 0.05
        %v762 = vmul.f32 %v761, 1.0204082
        %v764 = vrot.slane %v762, 6
        %v766 = vadd.f32 %v579, %v764
        %v767 = vmax.f32 %v681, 0.0
        %v768 = vtanh.pop %v767
        %v769 = vmax.f32 %v693, 0.0
        %v770 = vtanh.pop %v769
        %v772 = vsel %vm585, %v768, 0
        %774 = vmatpush.msra.mxu0 0.0
        %775 = vmatpush.msra.mxu0 0.0
        %776 = vmatpush.msra.mxu0 0.0
        %777 = vmatpush.msra.mxu0 0.0
        %778 = vmatpush.msra.mxu0 0.0
        %779 = vmatpush.msra.mxu0 0.0
        %780 = vmatpush.msra.mxu0 0.0
        %781 = vmatpush.msra.mxu0 0.0
        %782 = vmatpush.msra.mxu0 0.0
        %783 = vmatpush.msra.mxu0 0.0
        %784 = vmatpush.msra.mxu0 0.0
        %785 = vmatpush.msra.mxu0 0.0
        %786 = vmatpush.msra.mxu0 0.0
        %787 = vmatpush.msra.mxu0 0.0
        %788 = vmatpush.msra.mxu0 %v578
        %789 = vmatpush.msra.mxu0 %v577
        %790 = vmatmul.f32.gmra.mxu0 %v772
        %v791 = vpop.f32.mrf.mxu0
        %v792 = vadd.f32 0.0, %v791
        %793 = vdwg.mxu0
        %v794 = vmul.f32 %v768, 0.101
        %v795 = vadd.f32 %v794, 0.32
        %v796 = vadd.f32 %v795, %v792
        %v797 = vmul.f32 %v770, 0.101
        %v799 = vrot.slane %v797, 1
        %v801 = vsub.f32 %v796, %v799
        %v802 = vmax.f32 %v801, 0.0
        %v804 = vrot.slane %v584, 1
        %v806 = vadd.f32 %v802, %v804
        %v807 = vadd.f32 %v794, 0.224
        %v809 = vrot.slane %v770, 1
        %v811 = vsub.f32 %v807, %v809
        %v812 = vmax.f32 %v811, 0.0
        %v813 = vmul.f32 %v806, 310.0
        %v814 = vsub.f32 %v813, 125.0
        %v815 = vand.u32 2147483647, %v814
        %v816 = vadd.f32 %v815, 1e-05
        %v817 = vmul.f32 %v814, -0.16
        %v818 = vmul.f32 %v817, 1.442695
        %v819 = vpow.pop %v818
        %v820 = vsub.f32 1.0, %v819
        %v821 = vand.u32 2147483647, %v820
        %v822 = vadd.f32 %v821, 1.6e-06
        %v823 = vrcp.pop %v822
        %v824 = vmul.f32 %v822, %v823
        %v825 = vsub.f32 1.0, %v824
        %v826 = vmul.f32 %v823, %v825
        %v827 = vadd.f32 %v823, %v826
        %vm828 = vweird.f32 %v822
        %vm829 = vweird.f32 %v823
        %vm830 = vmor %vm828, %vm829
        %v831 = vsel %vm830, %v823, %v827
        %v832 = vand.u32 2147483647, %v822
        %vm833 = vcmp.eq.f32.partialorder %v832, 8.507059e+37
        %v834 = vand.u32 %v822, 2147483648
        %v835 = vor.u32 1.1754944e-38, %v834
        %v836 = vsel %vm833, %v835, %v831
        %v837 = vmul.f32 %v816, %v836
        %v838 = vmul.f32 %v812, 615.0
        %v839 = vsub.f32 %v838, 177.0
        %v840 = vand.u32 2147483647, %v839
        %v841 = vadd.f32 %v840, 1e-05
        %v842 = vmul.f32 %v839, -0.087
        %v843 = vmul.f32 %v842, 1.442695
        %v844 = vpow.pop %v843
        %v845 = vsub.f32 1.0, %v844
        %v846 = vand.u32 2147483647, %v845
        %v847 = vadd.f32 %v846, 8.7e-07
        %v848 = vrcp.pop %v847
        %v849 = vmul.f32 %v847, %v848
        %v850 = vsub.f32 1.0, %v849
        %v851 = vmul.f32 %v848, %v850
        %v852 = vadd.f32 %v848, %v851
        %vm853 = vweird.f32 %v847
        %vm854 = vweird.f32 %v848
        %vm855 = vmor %vm853, %vm854
        %v856 = vsel %vm855, %v848, %v852
        %v857 = vand.u32 2147483647, %v847
        %vm858 = vcmp.eq.f32.partialorder %v857, 8.507059e+37
        %v859 = vand.u32 %v847, 2147483648
        %v860 = vor.u32 1.1754944e-38, %v859
        %v861 = vsel %vm858, %v860, %v856
        %v862 = vmul.f32 %v841, %v861
        %v863 = vsub.f32 0.0, %v768
        %v864 = vmul.f32 %v863, 0.01
        %v865 = vsub.f32 1.0, %v768
        %v866 = vmul.f32 %v865, 0.000641
        %v867 = vmul.f32 %v866, %v837
        %v868 = vadd.f32 %v864, %v867
        %v869 = vmul.f32 %v868, 0.05
        %v870 = vadd.f32 %v768, %v869
        %v872 = vrot.slane %v581, 1
        %v874 = vadd.f32 %v870, %v872
        %v875 = vsub.f32 0.0, %v770
        %v876 = vmul.f32 %v875, 0.1
        %v877 = vmul.f32 %v862, 0.001
        %v879 = vrot.slane %v877, 7
        %v881 = vadd.f32 %v876, %v879
        %v882 = vmul.f32 %v881, 0.05
        %v883 = vadd.f32 %v770, %v882
        %v884 = vadd.f32 %v883, %v583
        %v885 = vmul.f32 %v709, 1.5384616
        %v887 = vrot.slane %v885, 2
        %v889 = vsub.f32 %v768, %v887
        %v890 = vsub.f32 %v714, 1.0
        %v891 = vmul.f32 %v890, 2.4390244
        %v893 = vrot.slane %v891, 3
        %v895 = vsub.f32 %v889, %v893
        %v896 = vmul.f32 %v895, 0.05
        %v898 = vrot.slane %v896, 6
        %v900 = vadd.f32 %v709, %v898
        %v901 = vmul.f32 %v709, 0.05
        %v903 = vrot.slane %v901, 7
        %v905 = vadd.f32 %v714, %v903
        %v906 = vlog2.pop %v749
        %v907 = vmul.f32 %v906, 0.6931472
        %v908 = vmul.f32 %v907, 3.125
        %v909 = vmul.f32 %v908, 1.442695
        %v910 = vpow.pop %v909
        %v911 = vmul.f32 %v907, 2.125
        %v912 = vmul.f32 %v911, 1.442695
        %v913 = vpow.pop %v912
        %v914 = vrcp.pop %v714
        %v915 = vmul.f32 %v714, %v914
        %v916 = vsub.f32 1.0, %v915
        %v917 = vmul.f32 %v914, %v916
        %v918 = vadd.f32 %v914, %v917
        %vm919 = vweird.f32 %v714
        %vm920 = vweird.f32 %v914
        %vm921 = vmor %vm919, %vm920
        %v922 = vsel %vm921, %v914, %v918
        %v923 = vand.u32 2147483647, %v714
        %vm924 = vcmp.eq.f32.partialorder %v923, 8.507059e+37
        %v925 = vand.u32 %v714, 2147483648
        %v926 = vor.u32 1.1754944e-38, %v925
        %v927 = vsel %vm924, %v926, %v922
        %v928 = vmul.f32 -0.41551545, %v927
        %v929 = vmul.f32 %v928, 1.442695
        %v930 = vpow.pop %v929
        %v932 = vrot.slane %v910, 1
        %v934 = vsub.f32 %v714, %v932
        %v935 = vmul.f32 %v934, 0.05
        %v936 = vmul.f32 %v935, 1.0204082
        %v938 = vrot.slane %v936, 7
        %v940 = vadd.f32 %v749, %v938
        %v941 = vsub.f32 1.0, %v930
        %v942 = vmul.f32 %v714, %v941
        %v943 = vmul.f32 %v942, 2.9411764
        %v945 = vrot.slane %v913, 7
        %v947 = vmul.f32 %v766, %v945
        %v949 = vrot.slane %v947, 2
        %v951 = vsub.f32 %v943, %v949
        %v952 = vmul.f32 %v951, 0.05
        %v953 = vmul.f32 %v952, 1.0204082
        %v955 = vrot.slane %v953, 6
        %v957 = vadd.f32 %v766, %v955
        %v958 = vmax.f32 %v874, 0.0
        %v959 = vtanh.pop %v958
        %v960 = vmax.f32 %v884, 0.0
        %v961 = vtanh.pop %v960
        %v963 = vsel %vm585, %v959, 0
        %965 = vmatpush.msra.mxu0 0.0
        %966 = vmatpush.msra.mxu0 0.0
        %967 = vmatpush.msra.mxu0 0.0
        %968 = vmatpush.msra.mxu0 0.0
        %969 = vmatpush.msra.mxu0 0.0
        %970 = vmatpush.msra.mxu0 0.0
        %971 = vmatpush.msra.mxu0 0.0
        %972 = vmatpush.msra.mxu0 0.0
        %973 = vmatpush.msra.mxu0 0.0
        %974 = vmatpush.msra.mxu0 0.0
        %975 = vmatpush.msra.mxu0 0.0
        %976 = vmatpush.msra.mxu0 0.0
        %977 = vmatpush.msra.mxu0 0.0
        %978 = vmatpush.msra.mxu0 0.0
        %979 = vmatpush.msra.mxu0 %v578
        %980 = vmatpush.msra.mxu0 %v577
        %981 = vmatmul.f32.gmra.mxu0 %v963
        %v982 = vpop.f32.mrf.mxu0
        %v983 = vadd.f32 0.0, %v982
        %984 = vdwg.mxu0
        %v985 = vmul.f32 %v959, 0.101
        %v986 = vadd.f32 %v985, 0.32
        %v987 = vadd.f32 %v986, %v983
        %v988 = vmul.f32 %v961, 0.101
        %v990 = vrot.slane %v988, 1
        %v992 = vsub.f32 %v987, %v990
        %v993 = vmax.f32 %v992, 0.0
        %v994 = vrot.slane %v584, 2
        %v996 = vadd.f32 %v993, %v994
        %v997 = vadd.f32 %v985, 0.224
        %v999 = vrot.slane %v961, 1
        %v1001 = vsub.f32 %v997, %v999
        %v1002 = vmax.f32 %v1001, 0.0
        %v1003 = vmul.f32 %v996, 310.0
        %v1004 = vsub.f32 %v1003, 125.0
        %v1005 = vand.u32 2147483647, %v1004
        %v1006 = vadd.f32 %v1005, 1e-05
        %v1007 = vmul.f32 %v1004, -0.16
        %v1008 = vmul.f32 %v1007, 1.442695
        %v1009 = vpow.pop %v1008
        %v1010 = vsub.f32 1.0, %v1009
        %v1011 = vand.u32 2147483647, %v1010
        %v1012 = vadd.f32 %v1011, 1.6e-06
        %v1013 = vrcp.pop %v1012
        %v1014 = vmul.f32 %v1012, %v1013
        %v1015 = vsub.f32 1.0, %v1014
        %v1016 = vmul.f32 %v1013, %v1015
        %v1017 = vadd.f32 %v1013, %v1016
        %vm1018 = vweird.f32 %v1012
        %vm1019 = vweird.f32 %v1013
        %vm1020 = vmor %vm1018, %vm1019
        %v1021 = vsel %vm1020, %v1013, %v1017
        %v1022 = vand.u32 2147483647, %v1012
        %vm1023 = vcmp.eq.f32.partialorder %v1022, 8.507059e+37
        %v1024 = vand.u32 %v1012, 2147483648
        %v1025 = vor.u32 1.1754944e-38, %v1024
        %v1026 = vsel %vm1023, %v1025, %v1021
        %v1027 = vmul.f32 %v1006, %v1026
        %v1028 = vmul.f32 %v1002, 615.0
        %v1029 = vsub.f32 %v1028, 177.0
        %v1030 = vand.u32 2147483647, %v1029
        %v1031 = vadd.f32 %v1030, 1e-05
        %v1032 = vmul.f32 %v1029, -0.087
        %v1033 = vmul.f32 %v1032, 1.442695
        %v1034 = vpow.pop %v1033
        %v1035 = vsub.f32 1.0, %v1034
        %v1036 = vand.u32 2147483647, %v1035
        %v1037 = vadd.f32 %v1036, 8.7e-07
        %v1038 = vrcp.pop %v1037
        %v1039 = vmul.f32 %v1037, %v1038
        %v1040 = vsub.f32 1.0, %v1039
        %v1041 = vmul.f32 %v1038, %v1040
        %v1042 = vadd.f32 %v1038, %v1041
        %vm1043 = vweird.f32 %v1037
        %vm1044 = vweird.f32 %v1038
        %vm1045 = vmor %vm1043, %vm1044
        %v1046 = vsel %vm1045, %v1038, %v1042
        %v1047 = vand.u32 2147483647, %v1037
        %vm1048 = vcmp.eq.f32.partialorder %v1047, 8.507059e+37
        %v1049 = vand.u32 %v1037, 2147483648
        %v1050 = vor.u32 1.1754944e-38, %v1049
        %v1051 = vsel %vm1048, %v1050, %v1046
        %v1052 = vmul.f32 %v1031, %v1051
        %v1053 = vsub.f32 0.0, %v959
        %v1054 = vmul.f32 %v1053, 0.01
        %v1055 = vsub.f32 1.0, %v959
        %v1056 = vmul.f32 %v1055, 0.000641
        %v1057 = vmul.f32 %v1056, %v1027
        %v1058 = vadd.f32 %v1054, %v1057
        %v1059 = vmul.f32 %v1058, 0.05
        %v1060 = vadd.f32 %v959, %v1059
        %v1061 = vrot.slane %v581, 2
        %v1063 = vadd.f32 %v1060, %v1061
        %v1064 = vsub.f32 0.0, %v961
        %v1065 = vmul.f32 %v1064, 0.1
        %v1066 = vmul.f32 %v1052, 0.001
        %v1068 = vrot.slane %v1066, 7
        %v1070 = vadd.f32 %v1065, %v1068
        %v1071 = vmul.f32 %v1070, 0.05
        %v1072 = vadd.f32 %v961, %v1071
        %v1073 = vrot.slane %v583, 1
        %v1075 = vadd.f32 %v1072, %v1073
        %v1076 = vmul.f32 %v900, 1.5384616
        %v1078 = vrot.slane %v1076, 2
        %v1080 = vsub.f32 %v959, %v1078
        %v1081 = vsub.f32 %v905, 1.0
        %v1082 = vmul.f32 %v1081, 2.4390244
        %v1084 = vrot.slane %v1082, 3
        %v1086 = vsub.f32 %v1080, %v1084
        %v1087 = vmul.f32 %v1086, 0.05
        %v1089 = vrot.slane %v1087, 6
        %v1091 = vadd.f32 %v900, %v1089
        %v1092 = vmul.f32 %v900, 0.05
        %v1094 = vrot.slane %v1092, 7
        %v1096 = vadd.f32 %v905, %v1094
        %v1097 = vlog2.pop %v940
        %v1098 = vmul.f32 %v1097, 0.6931472
        %v1099 = vmul.f32 %v1098, 3.125
        %v1100 = vmul.f32 %v1099, 1.442695
        %v1101 = vpow.pop %v1100
        %v1102 = vmul.f32 %v1098, 2.125
        %v1103 = vmul.f32 %v1102, 1.442695
        %v1104 = vpow.pop %v1103
        %v1105 = vrcp.pop %v905
        %v1106 = vmul.f32 %v905, %v1105
        %v1107 = vsub.f32 1.0, %v1106
        %v1108 = vmul.f32 %v1105, %v1107
        %v1109 = vadd.f32 %v1105, %v1108
        %vm1110 = vweird.f32 %v905
        %vm1111 = vweird.f32 %v1105
        %vm1112 = vmor %vm1110, %vm1111
        %v1113 = vsel %vm1112, %v1105, %v1109
        %v1114 = vand.u32 2147483647, %v905
        %vm1115 = vcmp.eq.f32.partialorder %v1114, 8.507059e+37
        %v1116 = vand.u32 %v905, 2147483648
        %v1117 = vor.u32 1.1754944e-38, %v1116
        %v1118 = vsel %vm1115, %v1117, %v1113
        %v1119 = vmul.f32 -0.41551545, %v1118
        %v1120 = vmul.f32 %v1119, 1.442695
        %v1121 = vpow.pop %v1120
        %v1123 = vrot.slane %v1101, 1
        %v1125 = vsub.f32 %v905, %v1123
        %v1126 = vmul.f32 %v1125, 0.05
        %v1127 = vmul.f32 %v1126, 1.0204082
        %v1129 = vrot.slane %v1127, 7
        %v1131 = vadd.f32 %v940, %v1129
        %v1132 = vsub.f32 1.0, %v1121
        %v1133 = vmul.f32 %v905, %v1132
        %v1134 = vmul.f32 %v1133, 2.9411764
        %v1136 = vrot.slane %v1104, 7
        %v1138 = vmul.f32 %v957, %v1136
        %v1140 = vrot.slane %v1138, 2
        %v1142 = vsub.f32 %v1134, %v1140
        %v1143 = vmul.f32 %v1142, 0.05
        %v1144 = vmul.f32 %v1143, 1.0204082
        %v1146 = vrot.slane %v1144, 6
        %v1148 = vadd.f32 %v957, %v1146
        %v1149 = vmax.f32 %v1063, 0.0
        %v1150 = vtanh.pop %v1149
        %v1151 = vmax.f32 %v1075, 0.0
        %v1152 = vtanh.pop %v1151
        %v1154 = vsel %vm585, %v1150, 0
        %1156 = vmatpush.msra.mxu0 0.0
        %1157 = vmatpush.msra.mxu0 0.0
        %1158 = vmatpush.msra.mxu0 0.0
        %1159 = vmatpush.msra.mxu0 0.0
        %1160 = vmatpush.msra.mxu0 0.0
        %1161 = vmatpush.msra.mxu0 0.0
        %1162 = vmatpush.msra.mxu0 0.0
        %1163 = vmatpush.msra.mxu0 0.0
        %1164 = vmatpush.msra.mxu0 0.0
        %1165 = vmatpush.msra.mxu0 0.0
        %1166 = vmatpush.msra.mxu0 0.0
        %1167 = vmatpush.msra.mxu0 0.0
        %1168 = vmatpush.msra.mxu0 0.0
        %1169 = vmatpush.msra.mxu0 0.0
        %1170 = vmatpush.msra.mxu0 %v578
        %1171 = vmatpush.msra.mxu0 %v577
        %1172 = vmatmul.f32.gmra.mxu0 %v1154
        %v1173 = vpop.f32.mrf.mxu0
        %v1174 = vadd.f32 0.0, %v1173
        %1175 = vdwg.mxu0
        %v1176 = vmul.f32 %v1150, 0.101
        %v1177 = vadd.f32 %v1176, 0.32
        %v1178 = vadd.f32 %v1177, %v1174
        %v1179 = vmul.f32 %v1152, 0.101
        %v1181 = vrot.slane %v1179, 1
        %v1183 = vsub.f32 %v1178, %v1181
        %v1184 = vmax.f32 %v1183, 0.0
        %v1185 = vrot.slane %v584, 3
        %v1187 = vadd.f32 %v1184, %v1185
        %v1188 = vadd.f32 %v1176, 0.224
        %v1190 = vrot.slane %v1152, 1
        %v1192 = vsub.f32 %v1188, %v1190
        %v1193 = vmax.f32 %v1192, 0.0
        %v1194 = vmul.f32 %v1187, 310.0
        %v1195 = vsub.f32 %v1194, 125.0
        %v1196 = vand.u32 2147483647, %v1195
        %v1197 = vadd.f32 %v1196, 1e-05
        %v1198 = vmul.f32 %v1195, -0.16
        %v1199 = vmul.f32 %v1198, 1.442695
        %v1200 = vpow.pop %v1199
        %v1201 = vsub.f32 1.0, %v1200
        %v1202 = vand.u32 2147483647, %v1201
        %v1203 = vadd.f32 %v1202, 1.6e-06
        %v1204 = vrcp.pop %v1203
        %v1205 = vmul.f32 %v1203, %v1204
        %v1206 = vsub.f32 1.0, %v1205
        %v1207 = vmul.f32 %v1204, %v1206
        %v1208 = vadd.f32 %v1204, %v1207
        %vm1209 = vweird.f32 %v1203
        %vm1210 = vweird.f32 %v1204
        %vm1211 = vmor %vm1209, %vm1210
        %v1212 = vsel %vm1211, %v1204, %v1208
        %v1213 = vand.u32 2147483647, %v1203
        %vm1214 = vcmp.eq.f32.partialorder %v1213, 8.507059e+37
        %v1215 = vand.u32 %v1203, 2147483648
        %v1216 = vor.u32 1.1754944e-38, %v1215
        %v1217 = vsel %vm1214, %v1216, %v1212
        %v1218 = vmul.f32 %v1197, %v1217
        %v1219 = vmul.f32 %v1193, 615.0
        %v1220 = vsub.f32 %v1219, 177.0
        %v1221 = vand.u32 2147483647, %v1220
        %v1222 = vadd.f32 %v1221, 1e-05
        %v1223 = vmul.f32 %v1220, -0.087
        %v1224 = vmul.f32 %v1223, 1.442695
        %v1225 = vpow.pop %v1224
        %v1226 = vsub.f32 1.0, %v1225
        %v1227 = vand.u32 2147483647, %v1226
        %v1228 = vadd.f32 %v1227, 8.7e-07
        %v1229 = vrcp.pop %v1228
        %v1230 = vmul.f32 %v1228, %v1229
        %v1231 = vsub.f32 1.0, %v1230
        %v1232 = vmul.f32 %v1229, %v1231
        %v1233 = vadd.f32 %v1229, %v1232
        %vm1234 = vweird.f32 %v1228
        %vm1235 = vweird.f32 %v1229
        %vm1236 = vmor %vm1234, %vm1235
        %v1237 = vsel %vm1236, %v1229, %v1233
        %v1238 = vand.u32 2147483647, %v1228
        %vm1239 = vcmp.eq.f32.partialorder %v1238, 8.507059e+37
        %v1240 = vand.u32 %v1228, 2147483648
        %v1241 = vor.u32 1.1754944e-38, %v1240
        %v1242 = vsel %vm1239, %v1241, %v1237
        %v1243 = vmul.f32 %v1222, %v1242
        %v1244 = vsub.f32 0.0, %v1150
        %v1245 = vmul.f32 %v1244, 0.01
        %v1246 = vsub.f32 1.0, %v1150
        %v1247 = vmul.f32 %v1246, 0.000641
        %v1248 = vmul.f32 %v1247, %v1218
        %v1249 = vadd.f32 %v1245, %v1248
        %v1250 = vmul.f32 %v1249, 0.05
        %v1251 = vadd.f32 %v1150, %v1250
        %v1252 = vrot.slane %v581, 3
        %v1254 = vadd.f32 %v1251, %v1252
        %v1255 = vsub.f32 0.0, %v1152
        %v1256 = vmul.f32 %v1255, 0.1
        %v1257 = vmul.f32 %v1243, 0.001
        %v1259 = vrot.slane %v1257, 7
        %v1261 = vadd.f32 %v1256, %v1259
        %v1262 = vmul.f32 %v1261, 0.05
        %v1263 = vadd.f32 %v1152, %v1262
        %v1264 = vrot.slane %v583, 2
        %v1266 = vadd.f32 %v1263, %v1264
        %v1267 = vmul.f32 %v1091, 1.5384616
        %v1269 = vrot.slane %v1267, 2
        %v1271 = vsub.f32 %v1150, %v1269
        %v1272 = vsub.f32 %v1096, 1.0
        %v1273 = vmul.f32 %v1272, 2.4390244
        %v1275 = vrot.slane %v1273, 3
        %v1277 = vsub.f32 %v1271, %v1275
        %v1278 = vmul.f32 %v1277, 0.05
        %v1280 = vrot.slane %v1278, 6
        %v1282 = vadd.f32 %v1091, %v1280
        %v1283 = vmul.f32 %v1091, 0.05
        %v1285 = vrot.slane %v1283, 7
        %v1287 = vadd.f32 %v1096, %v1285
        %v1288 = vlog2.pop %v1131
        %v1289 = vmul.f32 %v1288, 0.6931472
        %v1290 = vmul.f32 %v1289, 3.125
        %v1291 = vmul.f32 %v1290, 1.442695
        %v1292 = vpow.pop %v1291
        %v1293 = vmul.f32 %v1289, 2.125
        %v1294 = vmul.f32 %v1293, 1.442695
        %v1295 = vpow.pop %v1294
        %v1296 = vrcp.pop %v1096
        %v1297 = vmul.f32 %v1096, %v1296
        %v1298 = vsub.f32 1.0, %v1297
        %v1299 = vmul.f32 %v1296, %v1298
        %v1300 = vadd.f32 %v1296, %v1299
        %vm1301 = vweird.f32 %v1096
        %vm1302 = vweird.f32 %v1296
        %vm1303 = vmor %vm1301, %vm1302
        %v1304 = vsel %vm1303, %v1296, %v1300
        %v1305 = vand.u32 2147483647, %v1096
        %vm1306 = vcmp.eq.f32.partialorder %v1305, 8.507059e+37
        %v1307 = vand.u32 %v1096, 2147483648
        %v1308 = vor.u32 1.1754944e-38, %v1307
        %v1309 = vsel %vm1306, %v1308, %v1304
        %v1310 = vmul.f32 -0.41551545, %v1309
        %v1311 = vmul.f32 %v1310, 1.442695
        %v1312 = vpow.pop %v1311
        %v1314 = vrot.slane %v1292, 1
        %v1316 = vsub.f32 %v1096, %v1314
        %v1317 = vmul.f32 %v1316, 0.05
        %v1318 = vmul.f32 %v1317, 1.0204082
        %v1320 = vrot.slane %v1318, 7
        %v1322 = vadd.f32 %v1131, %v1320
        %v1323 = vsub.f32 1.0, %v1312
        %v1324 = vmul.f32 %v1096, %v1323
        %v1325 = vmul.f32 %v1324, 2.9411764
        %v1327 = vrot.slane %v1295, 7
        %v1329 = vmul.f32 %v1148, %v1327
        %v1331 = vrot.slane %v1329, 2
        %v1333 = vsub.f32 %v1325, %v1331
        %v1334 = vmul.f32 %v1333, 0.05
        %v1335 = vmul.f32 %v1334, 1.0204082
        %v1337 = vrot.slane %v1335, 6
        %v1339 = vadd.f32 %v1148, %v1337
        %v1340 = vmax.f32 %v1254, 0.0
        %v1341 = vtanh.pop %v1340
        %v1342 = vmax.f32 %v1266, 0.0
        %v1343 = vtanh.pop %v1342
        %v1345 = vsel %vm585, %v1341, 0
        %1347 = vmatpush.msra.mxu0 0.0
        %1348 = vmatpush.msra.mxu0 0.0
        %1349 = vmatpush.msra.mxu0 0.0
        %1350 = vmatpush.msra.mxu0 0.0
        %1351 = vmatpush.msra.mxu0 0.0
        %1352 = vmatpush.msra.mxu0 0.0
        %1353 = vmatpush.msra.mxu0 0.0
        %1354 = vmatpush.msra.mxu0 0.0
        %1355 = vmatpush.msra.mxu0 0.0
        %1356 = vmatpush.msra.mxu0 0.0
        %1357 = vmatpush.msra.mxu0 0.0
        %1358 = vmatpush.msra.mxu0 0.0
        %1359 = vmatpush.msra.mxu0 0.0
        %1360 = vmatpush.msra.mxu0 0.0
        %1361 = vmatpush.msra.mxu0 %v578
        %1362 = vmatpush.msra.mxu0 %v577
        %1363 = vmatmul.f32.gmra.mxu0 %v1345
        %v1364 = vpop.f32.mrf.mxu0
        %v1365 = vadd.f32 0.0, %v1364
        %1366 = vdwg.mxu0
        %v1367 = vmul.f32 %v1341, 0.101
        %v1368 = vadd.f32 %v1367, 0.32
        %v1369 = vadd.f32 %v1368, %v1365
        %v1370 = vmul.f32 %v1343, 0.101
        %v1372 = vrot.slane %v1370, 1
        %v1374 = vsub.f32 %v1369, %v1372
        %v1375 = vmax.f32 %v1374, 0.0
        %v1376 = vrot.slane %v584, 4
        %v1378 = vadd.f32 %v1375, %v1376
        %v1379 = vadd.f32 %v1367, 0.224
        %v1381 = vrot.slane %v1343, 1
        %v1383 = vsub.f32 %v1379, %v1381
        %v1384 = vmax.f32 %v1383, 0.0
        %v1385 = vmul.f32 %v1378, 310.0
        %v1386 = vsub.f32 %v1385, 125.0
        %v1387 = vand.u32 2147483647, %v1386
        %v1388 = vadd.f32 %v1387, 1e-05
        %v1389 = vmul.f32 %v1386, -0.16
        %v1390 = vmul.f32 %v1389, 1.442695
        %v1391 = vpow.pop %v1390
        %v1392 = vsub.f32 1.0, %v1391
        %v1393 = vand.u32 2147483647, %v1392
        %v1394 = vadd.f32 %v1393, 1.6e-06
        %v1395 = vrcp.pop %v1394
        %v1396 = vmul.f32 %v1394, %v1395
        %v1397 = vsub.f32 1.0, %v1396
        %v1398 = vmul.f32 %v1395, %v1397
        %v1399 = vadd.f32 %v1395, %v1398
        %vm1400 = vweird.f32 %v1394
        %vm1401 = vweird.f32 %v1395
        %vm1402 = vmor %vm1400, %vm1401
        %v1403 = vsel %vm1402, %v1395, %v1399
        %v1404 = vand.u32 2147483647, %v1394
        %vm1405 = vcmp.eq.f32.partialorder %v1404, 8.507059e+37
        %v1406 = vand.u32 %v1394, 2147483648
        %v1407 = vor.u32 1.1754944e-38, %v1406
        %v1408 = vsel %vm1405, %v1407, %v1403
        %v1409 = vmul.f32 %v1388, %v1408
        %v1410 = vmul.f32 %v1384, 615.0
        %v1411 = vsub.f32 %v1410, 177.0
        %v1412 = vand.u32 2147483647, %v1411
        %v1413 = vadd.f32 %v1412, 1e-05
        %v1414 = vmul.f32 %v1411, -0.087
        %v1415 = vmul.f32 %v1414, 1.442695
        %v1416 = vpow.pop %v1415
        %v1417 = vsub.f32 1.0, %v1416
        %v1418 = vand.u32 2147483647, %v1417
        %v1419 = vadd.f32 %v1418, 8.7e-07
        %v1420 = vrcp.pop %v1419
        %v1421 = vmul.f32 %v1419, %v1420
        %v1422 = vsub.f32 1.0, %v1421
        %v1423 = vmul.f32 %v1420, %v1422
        %v1424 = vadd.f32 %v1420, %v1423
        %vm1425 = vweird.f32 %v1419
        %vm1426 = vweird.f32 %v1420
        %vm1427 = vmor %vm1425, %vm1426
        %v1428 = vsel %vm1427, %v1420, %v1424
        %v1429 = vand.u32 2147483647, %v1419
        %vm1430 = vcmp.eq.f32.partialorder %v1429, 8.507059e+37
        %v1431 = vand.u32 %v1419, 2147483648
        %v1432 = vor.u32 1.1754944e-38, %v1431
        %v1433 = vsel %vm1430, %v1432, %v1428
        %v1434 = vmul.f32 %v1413, %v1433
        %v1435 = vsub.f32 0.0, %v1341
        %v1436 = vmul.f32 %v1435, 0.01
        %v1437 = vsub.f32 1.0, %v1341
        %v1438 = vmul.f32 %v1437, 0.000641
        %v1439 = vmul.f32 %v1438, %v1409
        %v1440 = vadd.f32 %v1436, %v1439
        %v1441 = vmul.f32 %v1440, 0.05
        %v1442 = vadd.f32 %v1341, %v1441
        %v1443 = vrot.slane %v581, 4
        %v1445 = vadd.f32 %v1442, %v1443
        %v1446 = vsub.f32 0.0, %v1343
        %v1447 = vmul.f32 %v1446, 0.1
        %v1448 = vmul.f32 %v1434, 0.001
        %v1450 = vrot.slane %v1448, 7
        %v1452 = vadd.f32 %v1447, %v1450
        %v1453 = vmul.f32 %v1452, 0.05
        %v1454 = vadd.f32 %v1343, %v1453
        %v1455 = vrot.slane %v583, 3
        %v1457 = vadd.f32 %v1454, %v1455
        %v1458 = vmul.f32 %v1282, 1.5384616
        %v1460 = vrot.slane %v1458, 2
        %v1462 = vsub.f32 %v1341, %v1460
        %v1463 = vsub.f32 %v1287, 1.0
        %v1464 = vmul.f32 %v1463, 2.4390244
        %v1466 = vrot.slane %v1464, 3
        %v1468 = vsub.f32 %v1462, %v1466
        %v1469 = vmul.f32 %v1468, 0.05
        %v1471 = vrot.slane %v1469, 6
        %v1473 = vadd.f32 %v1282, %v1471
        %v1474 = vmul.f32 %v1282, 0.05
        %v1476 = vrot.slane %v1474, 7
        %v1478 = vadd.f32 %v1287, %v1476
        %v1479 = vlog2.pop %v1322
        %v1480 = vmul.f32 %v1479, 0.6931472
        %v1481 = vmul.f32 %v1480, 3.125
        %v1482 = vmul.f32 %v1481, 1.442695
        %v1483 = vpow.pop %v1482
        %v1484 = vmul.f32 %v1480, 2.125
        %v1485 = vmul.f32 %v1484, 1.442695
        %v1486 = vpow.pop %v1485
        %v1487 = vrcp.pop %v1287
        %v1488 = vmul.f32 %v1287, %v1487
        %v1489 = vsub.f32 1.0, %v1488
        %v1490 = vmul.f32 %v1487, %v1489
        %v1491 = vadd.f32 %v1487, %v1490
        %vm1492 = vweird.f32 %v1287
        %vm1493 = vweird.f32 %v1487
        %vm1494 = vmor %vm1492, %vm1493
        %v1495 = vsel %vm1494, %v1487, %v1491
        %v1496 = vand.u32 2147483647, %v1287
        %vm1497 = vcmp.eq.f32.partialorder %v1496, 8.507059e+37
        %v1498 = vand.u32 %v1287, 2147483648
        %v1499 = vor.u32 1.1754944e-38, %v1498
        %v1500 = vsel %vm1497, %v1499, %v1495
        %v1501 = vmul.f32 -0.41551545, %v1500
        %v1502 = vmul.f32 %v1501, 1.442695
        %v1503 = vpow.pop %v1502
        %v1505 = vrot.slane %v1483, 1
        %v1507 = vsub.f32 %v1287, %v1505
        %v1508 = vmul.f32 %v1507, 0.05
        %v1509 = vmul.f32 %v1508, 1.0204082
        %v1511 = vrot.slane %v1509, 7
        %v1513 = vadd.f32 %v1322, %v1511
        %v1514 = vsub.f32 1.0, %v1503
        %v1515 = vmul.f32 %v1287, %v1514
        %v1516 = vmul.f32 %v1515, 2.9411764
        %v1518 = vrot.slane %v1486, 7
        %v1520 = vmul.f32 %v1339, %v1518
        %v1522 = vrot.slane %v1520, 2
        %v1524 = vsub.f32 %v1516, %v1522
        %v1525 = vmul.f32 %v1524, 0.05
        %v1526 = vmul.f32 %v1525, 1.0204082
        %v1528 = vrot.slane %v1526, 6
        %v1530 = vadd.f32 %v1339, %v1528
        %v1531 = vmax.f32 %v1445, 0.0
        %v1532 = vtanh.pop %v1531
        %v1533 = vmax.f32 %v1457, 0.0
        %v1534 = vtanh.pop %v1533
        %v1536 = vsel %vm585, %v1532, 0
        %1538 = vmatpush.msra.mxu0 0.0
        %1539 = vmatpush.msra.mxu0 0.0
        %1540 = vmatpush.msra.mxu0 0.0
        %1541 = vmatpush.msra.mxu0 0.0
        %1542 = vmatpush.msra.mxu0 0.0
        %1543 = vmatpush.msra.mxu0 0.0
        %1544 = vmatpush.msra.mxu0 0.0
        %1545 = vmatpush.msra.mxu0 0.0
        %1546 = vmatpush.msra.mxu0 0.0
        %1547 = vmatpush.msra.mxu0 0.0
        %1548 = vmatpush.msra.mxu0 0.0
        %1549 = vmatpush.msra.mxu0 0.0
        %1550 = vmatpush.msra.mxu0 0.0
        %1551 = vmatpush.msra.mxu0 0.0
        %1552 = vmatpush.msra.mxu0 %v578
        %1553 = vmatpush.msra.mxu0 %v577
        %1554 = vmatmul.f32.gmra.mxu0 %v1536
        %v1555 = vpop.f32.mrf.mxu0
        %v1556 = vadd.f32 0.0, %v1555
        %1557 = vdwg.mxu0
        %v1558 = vmul.f32 %v1532, 0.101
        %v1559 = vadd.f32 %v1558, 0.32
        %v1560 = vadd.f32 %v1559, %v1556
        %v1561 = vmul.f32 %v1534, 0.101
        %v1563 = vrot.slane %v1561, 1
        %v1565 = vsub.f32 %v1560, %v1563
        %v1566 = vmax.f32 %v1565, 0.0
        %v1567 = vrot.slane %v584, 5
        %v1569 = vadd.f32 %v1566, %v1567
        %v1570 = vadd.f32 %v1558, 0.224
        %v1572 = vrot.slane %v1534, 1
        %v1574 = vsub.f32 %v1570, %v1572
        %v1575 = vmax.f32 %v1574, 0.0
        %v1576 = vmul.f32 %v1569, 310.0
        %v1577 = vsub.f32 %v1576, 125.0
        %v1578 = vand.u32 2147483647, %v1577
        %v1579 = vadd.f32 %v1578, 1e-05
        %v1580 = vmul.f32 %v1577, -0.16
        %v1581 = vmul.f32 %v1580, 1.442695
        %v1582 = vpow.pop %v1581
        %v1583 = vsub.f32 1.0, %v1582
        %v1584 = vand.u32 2147483647, %v1583
        %v1585 = vadd.f32 %v1584, 1.6e-06
        %v1586 = vrcp.pop %v1585
        %v1587 = vmul.f32 %v1585, %v1586
        %v1588 = vsub.f32 1.0, %v1587
        %v1589 = vmul.f32 %v1586, %v1588
        %v1590 = vadd.f32 %v1586, %v1589
        %vm1591 = vweird.f32 %v1585
        %vm1592 = vweird.f32 %v1586
        %vm1593 = vmor %vm1591, %vm1592
        %v1594 = vsel %vm1593, %v1586, %v1590
        %v1595 = vand.u32 2147483647, %v1585
        %vm1596 = vcmp.eq.f32.partialorder %v1595, 8.507059e+37
        %v1597 = vand.u32 %v1585, 2147483648
        %v1598 = vor.u32 1.1754944e-38, %v1597
        %v1599 = vsel %vm1596, %v1598, %v1594
        %v1600 = vmul.f32 %v1579, %v1599
        %v1601 = vmul.f32 %v1575, 615.0
        %v1602 = vsub.f32 %v1601, 177.0
        %v1603 = vand.u32 2147483647, %v1602
        %v1604 = vadd.f32 %v1603, 1e-05
        %v1605 = vmul.f32 %v1602, -0.087
        %v1606 = vmul.f32 %v1605, 1.442695
        %v1607 = vpow.pop %v1606
        %v1608 = vsub.f32 1.0, %v1607
        %v1609 = vand.u32 2147483647, %v1608
        %v1610 = vadd.f32 %v1609, 8.7e-07
        %v1611 = vrcp.pop %v1610
        %v1612 = vmul.f32 %v1610, %v1611
        %v1613 = vsub.f32 1.0, %v1612
        %v1614 = vmul.f32 %v1611, %v1613
        %v1615 = vadd.f32 %v1611, %v1614
        %vm1616 = vweird.f32 %v1610
        %vm1617 = vweird.f32 %v1611
        %vm1618 = vmor %vm1616, %vm1617
        %v1619 = vsel %vm1618, %v1611, %v1615
        %v1620 = vand.u32 2147483647, %v1610
        %vm1621 = vcmp.eq.f32.partialorder %v1620, 8.507059e+37
        %v1622 = vand.u32 %v1610, 2147483648
        %v1623 = vor.u32 1.1754944e-38, %v1622
        %v1624 = vsel %vm1621, %v1623, %v1619
        %v1625 = vmul.f32 %v1604, %v1624
        %v1626 = vsub.f32 0.0, %v1532
        %v1627 = vmul.f32 %v1626, 0.01
        %v1628 = vsub.f32 1.0, %v1532
        %v1629 = vmul.f32 %v1628, 0.000641
        %v1630 = vmul.f32 %v1629, %v1600
        %v1631 = vadd.f32 %v1627, %v1630
        %v1632 = vmul.f32 %v1631, 0.05
        %v1633 = vadd.f32 %v1532, %v1632
        %v1634 = vrot.slane %v581, 5
        %v1636 = vadd.f32 %v1633, %v1634
        %v1637 = vsub.f32 0.0, %v1534
        %v1638 = vmul.f32 %v1637, 0.1
        %v1639 = vmul.f32 %v1625, 0.001
        %v1641 = vrot.slane %v1639, 7
        %v1643 = vadd.f32 %v1638, %v1641
        %v1644 = vmul.f32 %v1643, 0.05
        %v1645 = vadd.f32 %v1534, %v1644
        %v1646 = vrot.slane %v583, 4
        %v1648 = vadd.f32 %v1645, %v1646
        %v1649 = vmul.f32 %v1473, 1.5384616
        %v1651 = vrot.slane %v1649, 2
        %v1653 = vsub.f32 %v1532, %v1651
        %v1654 = vsub.f32 %v1478, 1.0
        %v1655 = vmul.f32 %v1654, 2.4390244
        %v1657 = vrot.slane %v1655, 3
        %v1659 = vsub.f32 %v1653, %v1657
        %v1660 = vmul.f32 %v1659, 0.05
        %v1662 = vrot.slane %v1660, 6
        %v1664 = vadd.f32 %v1473, %v1662
        %v1665 = vmul.f32 %v1473, 0.05
        %v1667 = vrot.slane %v1665, 7
        %v1669 = vadd.f32 %v1478, %v1667
        %v1670 = vlog2.pop %v1513
        %v1671 = vmul.f32 %v1670, 0.6931472
        %v1672 = vmul.f32 %v1671, 3.125
        %v1673 = vmul.f32 %v1672, 1.442695
        %v1674 = vpow.pop %v1673
        %v1675 = vmul.f32 %v1671, 2.125
        %v1676 = vmul.f32 %v1675, 1.442695
        %v1677 = vpow.pop %v1676
        %v1678 = vrcp.pop %v1478
        %v1679 = vmul.f32 %v1478, %v1678
        %v1680 = vsub.f32 1.0, %v1679
        %v1681 = vmul.f32 %v1678, %v1680
        %v1682 = vadd.f32 %v1678, %v1681
        %vm1683 = vweird.f32 %v1478
        %vm1684 = vweird.f32 %v1678
        %vm1685 = vmor %vm1683, %vm1684
        %v1686 = vsel %vm1685, %v1678, %v1682
        %v1687 = vand.u32 2147483647, %v1478
        %vm1688 = vcmp.eq.f32.partialorder %v1687, 8.507059e+37
        %v1689 = vand.u32 %v1478, 2147483648
        %v1690 = vor.u32 1.1754944e-38, %v1689
        %v1691 = vsel %vm1688, %v1690, %v1686
        %v1692 = vmul.f32 -0.41551545, %v1691
        %v1693 = vmul.f32 %v1692, 1.442695
        %v1694 = vpow.pop %v1693
        %v1696 = vrot.slane %v1674, 1
        %v1698 = vsub.f32 %v1478, %v1696
        %v1699 = vmul.f32 %v1698, 0.05
        %v1700 = vmul.f32 %v1699, 1.0204082
        %v1702 = vrot.slane %v1700, 7
        %v1704 = vadd.f32 %v1513, %v1702
        %v1705 = vsub.f32 1.0, %v1694
        %v1706 = vmul.f32 %v1478, %v1705
        %v1707 = vmul.f32 %v1706, 2.9411764
        %v1709 = vrot.slane %v1677, 7
        %v1711 = vmul.f32 %v1530, %v1709
        %v1713 = vrot.slane %v1711, 2
        %v1715 = vsub.f32 %v1707, %v1713
        %v1716 = vmul.f32 %v1715, 0.05
        %v1717 = vmul.f32 %v1716, 1.0204082
        %v1719 = vrot.slane %v1717, 6
        %v1721 = vadd.f32 %v1530, %v1719
        %v1722 = vmax.f32 %v1636, 0.0
        %v1723 = vtanh.pop %v1722
        %v1724 = vmax.f32 %v1648, 0.0
        %v1725 = vtanh.pop %v1724
        %v1727 = vsel %vm585, %v1723, 0
        %1729 = vmatpush.msra.mxu0 0.0
        %1730 = vmatpush.msra.mxu0 0.0
        %1731 = vmatpush.msra.mxu0 0.0
        %1732 = vmatpush.msra.mxu0 0.0
        %1733 = vmatpush.msra.mxu0 0.0
        %1734 = vmatpush.msra.mxu0 0.0
        %1735 = vmatpush.msra.mxu0 0.0
        %1736 = vmatpush.msra.mxu0 0.0
        %1737 = vmatpush.msra.mxu0 0.0
        %1738 = vmatpush.msra.mxu0 0.0
        %1739 = vmatpush.msra.mxu0 0.0
        %1740 = vmatpush.msra.mxu0 0.0
        %1741 = vmatpush.msra.mxu0 0.0
        %1742 = vmatpush.msra.mxu0 0.0
        %1743 = vmatpush.msra.mxu0 %v578
        %1744 = vmatpush.msra.mxu0 %v577
        %1745 = vmatmul.f32.gmra.mxu0 %v1727
        %v1746 = vpop.f32.mrf.mxu0
        %v1747 = vadd.f32 0.0, %v1746
        %1748 = vdwg.mxu0
        %v1749 = vmul.f32 %v1723, 0.101
        %v1750 = vadd.f32 %v1749, 0.32
        %v1751 = vadd.f32 %v1750, %v1747
        %v1752 = vmul.f32 %v1725, 0.101
        %v1754 = vrot.slane %v1752, 1
        %v1756 = vsub.f32 %v1751, %v1754
        %v1757 = vmax.f32 %v1756, 0.0
        %v1758 = vrot.slane %v584, 6
        %v1760 = vadd.f32 %v1757, %v1758
        %v1761 = vadd.f32 %v1749, 0.224
        %v1763 = vrot.slane %v1725, 1
        %v1765 = vsub.f32 %v1761, %v1763
        %v1766 = vmax.f32 %v1765, 0.0
        %v1767 = vmul.f32 %v1760, 310.0
        %v1768 = vsub.f32 %v1767, 125.0
        %v1769 = vand.u32 2147483647, %v1768
        %v1770 = vadd.f32 %v1769, 1e-05
        %v1771 = vmul.f32 %v1768, -0.16
        %v1772 = vmul.f32 %v1771, 1.442695
        %v1773 = vpow.pop %v1772
        %v1774 = vsub.f32 1.0, %v1773
        %v1775 = vand.u32 2147483647, %v1774
        %v1776 = vadd.f32 %v1775, 1.6e-06
        %v1777 = vrcp.pop %v1776
        %v1778 = vmul.f32 %v1776, %v1777
        %v1779 = vsub.f32 1.0, %v1778
        %v1780 = vmul.f32 %v1777, %v1779
        %v1781 = vadd.f32 %v1777, %v1780
        %vm1782 = vweird.f32 %v1776
        %vm1783 = vweird.f32 %v1777
        %vm1784 = vmor %vm1782, %vm1783
        %v1785 = vsel %vm1784, %v1777, %v1781
        %v1786 = vand.u32 2147483647, %v1776
        %vm1787 = vcmp.eq.f32.partialorder %v1786, 8.507059e+37
        %v1788 = vand.u32 %v1776, 2147483648
        %v1789 = vor.u32 1.1754944e-38, %v1788
        %v1790 = vsel %vm1787, %v1789, %v1785
        %v1791 = vmul.f32 %v1770, %v1790
        %v1792 = vmul.f32 %v1766, 615.0
        %v1793 = vsub.f32 %v1792, 177.0
        %v1794 = vand.u32 2147483647, %v1793
        %v1795 = vadd.f32 %v1794, 1e-05
        %v1796 = vmul.f32 %v1793, -0.087
        %v1797 = vmul.f32 %v1796, 1.442695
        %v1798 = vpow.pop %v1797
        %v1799 = vsub.f32 1.0, %v1798
        %v1800 = vand.u32 2147483647, %v1799
        %v1801 = vadd.f32 %v1800, 8.7e-07
        %v1802 = vrcp.pop %v1801
        %v1803 = vmul.f32 %v1801, %v1802
        %v1804 = vsub.f32 1.0, %v1803
        %v1805 = vmul.f32 %v1802, %v1804
        %v1806 = vadd.f32 %v1802, %v1805
        %vm1807 = vweird.f32 %v1801
        %vm1808 = vweird.f32 %v1802
        %vm1809 = vmor %vm1807, %vm1808
        %v1810 = vsel %vm1809, %v1802, %v1806
        %v1811 = vand.u32 2147483647, %v1801
        %vm1812 = vcmp.eq.f32.partialorder %v1811, 8.507059e+37
        %v1813 = vand.u32 %v1801, 2147483648
        %v1814 = vor.u32 1.1754944e-38, %v1813
        %v1815 = vsel %vm1812, %v1814, %v1810
        %v1816 = vmul.f32 %v1795, %v1815
        %v1817 = vsub.f32 0.0, %v1723
        %v1818 = vmul.f32 %v1817, 0.01
        %v1819 = vsub.f32 1.0, %v1723
        %v1820 = vmul.f32 %v1819, 0.000641
        %v1821 = vmul.f32 %v1820, %v1791
        %v1822 = vadd.f32 %v1818, %v1821
        %v1823 = vmul.f32 %v1822, 0.05
        %v1824 = vadd.f32 %v1723, %v1823
        %v1825 = vrot.slane %v581, 6
        %v1827 = vadd.f32 %v1824, %v1825
        %v1828 = vsub.f32 0.0, %v1725
        %v1829 = vmul.f32 %v1828, 0.1
        %v1830 = vmul.f32 %v1816, 0.001
        %v1832 = vrot.slane %v1830, 7
        %v1834 = vadd.f32 %v1829, %v1832
        %v1835 = vmul.f32 %v1834, 0.05
        %v1836 = vadd.f32 %v1725, %v1835
        %v1837 = vrot.slane %v583, 5
        %v1839 = vadd.f32 %v1836, %v1837
        %v1840 = vmul.f32 %v1664, 1.5384616
        %v1842 = vrot.slane %v1840, 2
        %v1844 = vsub.f32 %v1723, %v1842
        %v1845 = vsub.f32 %v1669, 1.0
        %v1846 = vmul.f32 %v1845, 2.4390244
        %v1848 = vrot.slane %v1846, 3
        %v1850 = vsub.f32 %v1844, %v1848
        %v1851 = vmul.f32 %v1850, 0.05
        %v1853 = vrot.slane %v1851, 6
        %v1855 = vadd.f32 %v1664, %v1853
        %v1856 = vmul.f32 %v1664, 0.05
        %v1858 = vrot.slane %v1856, 7
        %v1860 = vadd.f32 %v1669, %v1858
        %v1861 = vlog2.pop %v1704
        %v1862 = vmul.f32 %v1861, 0.6931472
        %v1863 = vmul.f32 %v1862, 3.125
        %v1864 = vmul.f32 %v1863, 1.442695
        %v1865 = vpow.pop %v1864
        %v1866 = vmul.f32 %v1862, 2.125
        %v1867 = vmul.f32 %v1866, 1.442695
        %v1868 = vpow.pop %v1867
        %v1869 = vrcp.pop %v1669
        %v1870 = vmul.f32 %v1669, %v1869
        %v1871 = vsub.f32 1.0, %v1870
        %v1872 = vmul.f32 %v1869, %v1871
        %v1873 = vadd.f32 %v1869, %v1872
        %vm1874 = vweird.f32 %v1669
        %vm1875 = vweird.f32 %v1869
        %vm1876 = vmor %vm1874, %vm1875
        %v1877 = vsel %vm1876, %v1869, %v1873
        %v1878 = vand.u32 2147483647, %v1669
        %vm1879 = vcmp.eq.f32.partialorder %v1878, 8.507059e+37
        %v1880 = vand.u32 %v1669, 2147483648
        %v1881 = vor.u32 1.1754944e-38, %v1880
        %v1882 = vsel %vm1879, %v1881, %v1877
        %v1883 = vmul.f32 -0.41551545, %v1882
        %v1884 = vmul.f32 %v1883, 1.442695
        %v1885 = vpow.pop %v1884
        %v1887 = vrot.slane %v1865, 1
        %v1889 = vsub.f32 %v1669, %v1887
        %v1890 = vmul.f32 %v1889, 0.05
        %v1891 = vmul.f32 %v1890, 1.0204082
        %v1893 = vrot.slane %v1891, 7
        %v1895 = vadd.f32 %v1704, %v1893
        %v1896 = vsub.f32 1.0, %v1885
        %v1897 = vmul.f32 %v1669, %v1896
        %v1898 = vmul.f32 %v1897, 2.9411764
        %v1900 = vrot.slane %v1868, 7
        %v1902 = vmul.f32 %v1721, %v1900
        %v1904 = vrot.slane %v1902, 2
        %v1906 = vsub.f32 %v1898, %v1904
        %v1907 = vmul.f32 %v1906, 0.05
        %v1908 = vmul.f32 %v1907, 1.0204082
        %v1910 = vrot.slane %v1908, 6
        %v1912 = vadd.f32 %v1721, %v1910
        %v1913 = vmax.f32 %v1827, 0.0
        %v1914 = vtanh.pop %v1913
        %v1915 = vmax.f32 %v1839, 0.0
        %v1916 = vtanh.pop %v1915
        %v1918 = vsel %vm585, %v1914, 0
        %1920 = vmatpush.msra.mxu0 0.0
        %1921 = vmatpush.msra.mxu0 0.0
        %1922 = vmatpush.msra.mxu0 0.0
        %1923 = vmatpush.msra.mxu0 0.0
        %1924 = vmatpush.msra.mxu0 0.0
        %1925 = vmatpush.msra.mxu0 0.0
        %1926 = vmatpush.msra.mxu0 0.0
        %1927 = vmatpush.msra.mxu0 0.0
        %1928 = vmatpush.msra.mxu0 0.0
        %1929 = vmatpush.msra.mxu0 0.0
        %1930 = vmatpush.msra.mxu0 0.0
        %1931 = vmatpush.msra.mxu0 0.0
        %1932 = vmatpush.msra.mxu0 0.0
        %1933 = vmatpush.msra.mxu0 0.0
        %1934 = vmatpush.msra.mxu0 %v578
        %1935 = vmatpush.msra.mxu0 %v577
        %1936 = vmatmul.f32.gmra.mxu0 %v1918
        %v1937 = vpop.f32.mrf.mxu0
        %v1938 = vadd.f32 0.0, %v1937
        %1939 = vdwg.mxu0
        %v1940 = vmul.f32 %v1914, 0.101
        %v1941 = vadd.f32 %v1940, 0.32
        %v1942 = vadd.f32 %v1941, %v1938
        %v1943 = vmul.f32 %v1916, 0.101
        %v1945 = vrot.slane %v1943, 1
        %v1947 = vsub.f32 %v1942, %v1945
        %v1948 = vmax.f32 %v1947, 0.0
        %v1949 = vrot.slane %v584, 7
        %v1951 = vadd.f32 %v1948, %v1949
        %v1952 = vadd.f32 %v1940, 0.224
        %v1954 = vrot.slane %v1916, 1
        %v1956 = vsub.f32 %v1952, %v1954
        %v1957 = vmax.f32 %v1956, 0.0
        %v1958 = vmul.f32 %v1951, 310.0
        %v1959 = vsub.f32 %v1958, 125.0
        %v1960 = vand.u32 2147483647, %v1959
        %v1961 = vadd.f32 %v1960, 1e-05
        %v1962 = vmul.f32 %v1959, -0.16
        %v1963 = vmul.f32 %v1962, 1.442695
        %v1964 = vpow.pop %v1963
        %v1965 = vsub.f32 1.0, %v1964
        %v1966 = vand.u32 2147483647, %v1965
        %v1967 = vadd.f32 %v1966, 1.6e-06
        %v1968 = vrcp.pop %v1967
        %v1969 = vmul.f32 %v1967, %v1968
        %v1970 = vsub.f32 1.0, %v1969
        %v1971 = vmul.f32 %v1968, %v1970
        %v1972 = vadd.f32 %v1968, %v1971
        %vm1973 = vweird.f32 %v1967
        %vm1974 = vweird.f32 %v1968
        %vm1975 = vmor %vm1973, %vm1974
        %v1976 = vsel %vm1975, %v1968, %v1972
        %v1977 = vand.u32 2147483647, %v1967
        %vm1978 = vcmp.eq.f32.partialorder %v1977, 8.507059e+37
        %v1979 = vand.u32 %v1967, 2147483648
        %v1980 = vor.u32 1.1754944e-38, %v1979
        %v1981 = vsel %vm1978, %v1980, %v1976
        %v1982 = vmul.f32 %v1961, %v1981
        %v1983 = vmul.f32 %v1957, 615.0
        %v1984 = vsub.f32 %v1983, 177.0
        %v1985 = vand.u32 2147483647, %v1984
        %v1986 = vadd.f32 %v1985, 1e-05
        %v1987 = vmul.f32 %v1984, -0.087
        %v1988 = vmul.f32 %v1987, 1.442695
        %v1989 = vpow.pop %v1988
        %v1990 = vsub.f32 1.0, %v1989
        %v1991 = vand.u32 2147483647, %v1990
        %v1992 = vadd.f32 %v1991, 8.7e-07
        %v1993 = vrcp.pop %v1992
        %v1994 = vmul.f32 %v1992, %v1993
        %v1995 = vsub.f32 1.0, %v1994
        %v1996 = vmul.f32 %v1993, %v1995
        %v1997 = vadd.f32 %v1993, %v1996
        %vm1998 = vweird.f32 %v1992
        %vm1999 = vweird.f32 %v1993
        %vm2000 = vmor %vm1998, %vm1999
        %v2001 = vsel %vm2000, %v1993, %v1997
        %v2002 = vand.u32 2147483647, %v1992
        %vm2003 = vcmp.eq.f32.partialorder %v2002, 8.507059e+37
        %v2004 = vand.u32 %v1992, 2147483648
        %v2005 = vor.u32 1.1754944e-38, %v2004
        %v2006 = vsel %vm2003, %v2005, %v2001
        %v2007 = vmul.f32 %v1986, %v2006
        %v2008 = vsub.f32 0.0, %v1914
        %v2009 = vmul.f32 %v2008, 0.01
        %v2010 = vsub.f32 1.0, %v1914
        %v2011 = vmul.f32 %v2010, 0.000641
        %v2012 = vmul.f32 %v2011, %v1982
        %v2013 = vadd.f32 %v2009, %v2012
        %v2014 = vmul.f32 %v2013, 0.05
        %v2015 = vadd.f32 %v1914, %v2014
        %v2016 = vrot.slane %v581, 7
        %v2018 = vadd.f32 %v2015, %v2016
        %v2019 = vsub.f32 0.0, %v1916
        %v2020 = vmul.f32 %v2019, 0.1
        %v2021 = vmul.f32 %v2007, 0.001
        %v2023 = vrot.slane %v2021, 7
        %v2025 = vadd.f32 %v2020, %v2023
        %v2026 = vmul.f32 %v2025, 0.05
        %v2027 = vadd.f32 %v1916, %v2026
        %v2028 = vrot.slane %v583, 6
        %v2030 = vadd.f32 %v2027, %v2028
        %v2031 = vmul.f32 %v1855, 1.5384616
        %v2033 = vrot.slane %v2031, 2
        %v2035 = vsub.f32 %v1914, %v2033
        %v2036 = vsub.f32 %v1860, 1.0
        %v2037 = vmul.f32 %v2036, 2.4390244
        %v2039 = vrot.slane %v2037, 3
        %v2041 = vsub.f32 %v2035, %v2039
        %v2042 = vmul.f32 %v2041, 0.05
        %v2044 = vrot.slane %v2042, 6
        %v2046 = vadd.f32 %v1855, %v2044
        %v2047 = vmul.f32 %v1855, 0.05
        %v2049 = vrot.slane %v2047, 7
        %v2051 = vadd.f32 %v1860, %v2049
        %v2052 = vlog2.pop %v1895
        %v2053 = vmul.f32 %v2052, 0.6931472
        %v2054 = vmul.f32 %v2053, 3.125
        %v2055 = vmul.f32 %v2054, 1.442695
        %v2056 = vpow.pop %v2055
        %v2057 = vmul.f32 %v2053, 2.125
        %v2058 = vmul.f32 %v2057, 1.442695
        %v2059 = vpow.pop %v2058
        %v2060 = vrcp.pop %v1860
        %v2061 = vmul.f32 %v1860, %v2060
        %v2062 = vsub.f32 1.0, %v2061
        %v2063 = vmul.f32 %v2060, %v2062
        %v2064 = vadd.f32 %v2060, %v2063
        %vm2065 = vweird.f32 %v1860
        %vm2066 = vweird.f32 %v2060
        %vm2067 = vmor %vm2065, %vm2066
        %v2068 = vsel %vm2067, %v2060, %v2064
        %v2069 = vand.u32 2147483647, %v1860
        %vm2070 = vcmp.eq.f32.partialorder %v2069, 8.507059e+37
        %v2071 = vand.u32 %v1860, 2147483648
        %v2072 = vor.u32 1.1754944e-38, %v2071
        %v2073 = vsel %vm2070, %v2072, %v2068
        %v2074 = vmul.f32 -0.41551545, %v2073
        %v2075 = vmul.f32 %v2074, 1.442695
        %v2076 = vpow.pop %v2075
        %v2078 = vrot.slane %v2056, 1
        %v2080 = vsub.f32 %v1860, %v2078
        %v2081 = vmul.f32 %v2080, 0.05
        %v2082 = vmul.f32 %v2081, 1.0204082
        %v2084 = vrot.slane %v2082, 7
        %v2086 = vadd.f32 %v1895, %v2084
        %v2087 = vsub.f32 1.0, %v2076
        %v2088 = vmul.f32 %v1860, %v2087
        %v2089 = vmul.f32 %v2088, 2.9411764
        %v2091 = vrot.slane %v2059, 7
        %v2093 = vmul.f32 %v1912, %v2091
        %v2095 = vrot.slane %v2093, 2
        %v2097 = vsub.f32 %v2089, %v2095
        %v2098 = vmul.f32 %v2097, 0.05
        %v2099 = vmul.f32 %v2098, 1.0204082
        %v2101 = vrot.slane %v2099, 6
        %v2103 = vadd.f32 %v1912, %v2101
        %v2104 = vmax.f32 %v2018, 0.0
        %v2105 = vtanh.pop %v2104
        %v2106 = vmax.f32 %v2030, 0.0
        %v2107 = vtanh.pop %v2106
        %v2108 = vrot.slane %v959, 7
        %v2110 = vrot.slane %v1150, 6
        %v2112 = vrot.slane %v1341, 5
        %v2114 = vrot.slane %v1532, 4
        %v2116 = vrot.slane %v1723, 3
        %v2118 = vrot.slane %v1914, 2
        %v2121 = vrot.slane %v2105, 1
        %vm2123 = vcmask 1040384
        %v2124 = vsel %vm2123, %v768, %v2108
        %vm2125 = vcmask 1041408
        %v2126 = vsel %vm2125, %v2124, %v2110
        %vm2127 = vcmask 1042432
        %v2128 = vsel %vm2127, %v2126, %v2112
        %vm2129 = vcmask 1043456
        %v2130 = vsel %vm2129, %v2128, %v2114
        %vm2131 = vcmask 1044480
        %v2132 = vsel %vm2131, %v2130, %v2116
        %vm2133 = vcmask 1045504
        %v2134 = vsel %vm2133, %v2132, %v2118
        %vm2135 = vcmask 1046528
        %v2136 = vsel %vm2135, %v2134, %v2121
        %2137 = vst.msk [vmem:[%s562] sm:$0xff] %vm585, %v2136
        %v2138 = vrot.slane %v1152, 7
        %v2140 = vrot.slane %v1343, 6
        %v2142 = vrot.slane %v1534, 5
        %v2144 = vrot.slane %v1725, 4
        %v2146 = vrot.slane %v1916, 3
        %v2149 = vrot.slane %v2107, 2
        %v2151 = vsel %vm2123, %v809, %v961
        %v2152 = vsel %vm2125, %v2151, %v2138
        %v2153 = vsel %vm2127, %v2152, %v2140
        %v2154 = vsel %vm2129, %v2153, %v2142
        %v2155 = vsel %vm2131, %v2154, %v2144
        %v2156 = vsel %vm2133, %v2155, %v2146
        %v2157 = vsel %vm2135, %v2156, %v2149
        %2158 = vst.msk [vmem:[%s569] sm:$0xff] %vm585, %v2157
        %v2159 = vsel %vm2123, %v2105, %v2107
        %v2160 = vsel %vm2125, %v2159, %v2046
        %v2161 = vsel %vm2127, %v2160, %v2051
        %v2162 = vsel %vm2129, %v2161, %v2086
        %v2163 = vsel %vm2131, %v2162, %v2103
        %vm2164 = vcmask 128000
        %2165 = vst.msk [vmem:[#allocation13] sm:$0x3f] %vm2164, %v2163
        %s2166 = scalar_lea.vmem [#allocation16], %s37
        %vm2167 = vcmask 124930
        %2168 = vst.msk [vmem:[%s2166 - $0x2] sm:$0x4] %vm2167, %v2046
        %s2169 = scalar_lea.vmem [#allocation17], %s37
        %vm2170 = vcmask 125955
        %2171 = vst.msk [vmem:[%s2169 - $0x3] sm:$0x8] %vm2170, %v2051
        %s2172 = scalar_lea.vmem [#allocation19], %s37
        %vm2173 = vcmask 126980
        %2174 = vst.msk [vmem:[%s2172 - $0x4] sm:$0x10] %vm2173, %v2086
        %s2175 = scalar_lea.vmem [#allocation20], %s37
        %vm2176 = vcmask 128005
        %2177 = vst.msk [vmem:[%s2175 - $0x5] sm:$0x20] %vm2176, %v2103
        %s2178 = scalar_lea.vmem [#allocation7], %s37
        %v2179 = vld [vmem:[%s2178] sm:$0x1]
        %v2180 = vmul.f32 %v2179, 0.021
        %v2181 = vsub.f32 1.0, %v2103
        %v2182 = vmul.f32 %v2181, 2.38
        %v2184 = vrot.slane %v2086, 7
        %v2186 = vrcp.pop %v2184
        %v2187 = vmul.f32 %v2184, %v2186
        %v2188 = vsub.f32 1.0, %v2187
        %v2189 = vmul.f32 %v2186, %v2188
        %v2190 = vadd.f32 %v2186, %v2189
        %vm2191 = vweird.f32 %v2184
        %vm2192 = vweird.f32 %v2186
        %vm2193 = vmor %vm2191, %vm2192
        %v2194 = vsel %vm2193, %v2186, %v2190
        %v2195 = vand.u32 2147483647, %v2184
        %vm2196 = vcmp.eq.f32.partialorder %v2195, 8.507059e+37
        %v2197 = vand.u32 %v2184, 2147483648
        %v2198 = vor.u32 1.1754944e-38, %v2197
        %v2199 = vsel %vm2196, %v2198, %v2194
        %v2200 = vmul.f32 %v2103, %v2199
        %v2201 = vsub.f32 1.0, %v2200
        %v2202 = vmul.f32 %v2201, 2.0
        %v2203 = vadd.f32 %v2182, %v2202
        %v2204 = vsub.f32 1.0, %v2086
        %v2205 = vmul.f32 %v2204, 0.48
        %v2207 = vrot.slane %v2205, 7
        %v2209 = vadd.f32 %v2203, %v2207
        %v2210 = vmul.f32 %v2209, 5.882353
        %v2212 = vrot.slane %v2210, 5
        %v2214 = vadd.f32 %v2180, %v2212
        %s2215 = scalar_lea.vmem [#allocation14], %s37
        %vm2216 = vcmask 122880
        %2217 = vst.msk [vmem:[%s2215] sm:$0x1] %vm2216, %v2214
        %s2218 = sand.u32 %s37, 1
        %s2219 = scalar_lea.sflag [#allocation4], %s2218
        %s2220 = sand.u32 %s312, 1
        %s2221 = smul.addr %s2220, 8
        %s2222 = scalar_lea.vmem [#allocation22], %s2221
        %s2223 = sand.u32 %s37, 1
        %s2224 = scalar_lea.sflag [#allocation4], %s2223
        %s2225 = sand.u32 %s338, 1
        %s2226 = smul.addr %s2225, 8
        %s2227 = scalar_lea.vmem [#allocation23], %s2226
        // Predicated region
        $region73: #{tpu_custom_call.1} parent=43 // pred_check
          %p2228 = pneg %p191
        $region74: #{tpu_custom_call.1} parent=43 // pred_check_branch
          %2230 = sbr.rel (%p2228) target = $region76
        $region75: #{tpu_custom_call.1} parent=43 // pred_region
          %2232 = vsyncadd [#allocation4], 0
          %s2234 = sshll.u32 [#allocation13], 4
          %s2235 = int_to_ptr.vmem [resolvable:$true] %s2234
          %s2236 = sshll.u32 %s6, 4
          %s2237 = int_to_ptr.hbm [resolvable:$true] %s2236
          %2239 = dma.vmem_to_hbm [thread:$0]  %s2235, 128, %s2237, [#allocation4]
        $region76: #{tpu_custom_call.1} parent=43 // pred_fallthru
          _
        // Predicated region
        $region77: #{tpu_custom_call.1} parent=43 // pred_check
          %p2240 = pneg %p212
        $region78: #{tpu_custom_call.1} parent=43 // pred_check_branch
          %2242 = sbr.rel (%p2240) target = $region80
        $region79: #{tpu_custom_call.1} parent=43 // pred_region
          %2244 = vsyncadd [#allocation15], 0
          %s2246 = sshll.u32 [#allocation14], 4
          %s2247 = int_to_ptr.vmem [resolvable:$true] %s2246
          %s2248 = sshll.u32 %s7, 4
          %s2249 = int_to_ptr.hbm [resolvable:$true] %s2248
          %2251 = dma.vmem_to_hbm [thread:$0]  %s2247, 32, %s2249, [#allocation15]
        $region80: #{tpu_custom_call.1} parent=43 // pred_fallthru
          _
        // Predicated region
        $region81: #{tpu_custom_call.1} parent=43 // pred_check
          %p2252 = pneg %p233
        $region82: #{tpu_custom_call.1} parent=43 // pred_check_branch
          %2254 = sbr.rel (%p2252) target = $region84
        $region83: #{tpu_custom_call.1} parent=43 // pred_region
          %2256 = vsyncadd [#allocation15], 0
          %s2258 = sshll.u32 [#allocation16], 4
          %s2259 = int_to_ptr.vmem [resolvable:$true] %s2258
          %s2260 = sshll.u32 %s8, 4
          %s2261 = int_to_ptr.hbm [resolvable:$true] %s2260
          %2263 = dma.vmem_to_hbm [thread:$0]  %s2259, 32, %s2261, [#allocation15]
        $region84: #{tpu_custom_call.1} parent=43 // pred_fallthru
          _
        // Predicated region
        $region85: #{tpu_custom_call.1} parent=43 // pred_check
          %p2264 = pneg %p254
        $region86: #{tpu_custom_call.1} parent=43 // pred_check_branch
          %2266 = sbr.rel (%p2264) target = $region88
        $region87: #{tpu_custom_call.1} parent=43 // pred_region
          %2268 = vsyncadd [#allocation18], 0
          %s2270 = sshll.u32 [#allocation17], 4
          %s2271 = int_to_ptr.vmem [resolvable:$true] %s2270
          %s2272 = sshll.u32 %s9, 4
          %s2273 = int_to_ptr.hbm [resolvable:$true] %s2272
          %2275 = dma.vmem_to_hbm [thread:$0]  %s2271, 32, %s2273, [#allocation18]
        $region88: #{tpu_custom_call.1} parent=43 // pred_fallthru
          _
        // Predicated region
        $region89: #{tpu_custom_call.1} parent=43 // pred_check
          %p2276 = pneg %p275
        $region90: #{tpu_custom_call.1} parent=43 // pred_check_branch
          %2278 = sbr.rel (%p2276) target = $region92
        $region91: #{tpu_custom_call.1} parent=43 // pred_region
          %2280 = vsyncadd [#allocation18], 0
          %s2282 = sshll.u32 [#allocation19], 4
          %s2283 = int_to_ptr.vmem [resolvable:$true] %s2282
          %s2284 = sshll.u32 %s10, 4
          %s2285 = int_to_ptr.hbm [resolvable:$true] %s2284
          %2287 = dma.vmem_to_hbm [thread:$0]  %s2283, 32, %s2285, [#allocation18]
        $region92: #{tpu_custom_call.1} parent=43 // pred_fallthru
          _
        // Predicated region
        $region93: #{tpu_custom_call.1} parent=43 // pred_check
          %p2288 = pneg %p296
        $region94: #{tpu_custom_call.1} parent=43 // pred_check_branch
          %2290 = sbr.rel (%p2288) target = $region96
        $region95: #{tpu_custom_call.1} parent=43 // pred_region
          %2292 = vsyncadd [#allocation21], 0
          %s2294 = sshll.u32 [#allocation20], 4
          %s2295 = int_to_ptr.vmem [resolvable:$true] %s2294
          %s2296 = sshll.u32 %s11, 4
          %s2297 = int_to_ptr.hbm [resolvable:$true] %s2296
          %2299 = dma.vmem_to_hbm [thread:$0]  %s2295, 32, %s2297, [#allocation21]
        $region96: #{tpu_custom_call.1} parent=43 // pred_fallthru
          _
        // Predicated region
        $region97: #{tpu_custom_call.1} parent=43 // pred_check
          %p2300 = pneg %p322
        $region98: #{tpu_custom_call.1} parent=43 // pred_check_branch
          %2302 = sbr.rel (%p2300) target = $region100
        $region99: #{tpu_custom_call.1} parent=43 // pred_region
          %2304 = vsyncadd %s2219, 0
          %s2305 = smul.addr %s37, 8
          %s2306 = scalar_lea.hbm %s12, %s2305
          %s2308 = sshll.u32 %s2222, 4
          %s2309 = int_to_ptr.vmem [resolvable:$true] %s2308
          %s2310 = sshll.u32 %s2306, 4
          %s2311 = int_to_ptr.hbm [resolvable:$true] %s2310
          %2313 = dma.vmem_to_hbm [thread:$0]  %s2309, 128, %s2311, %s2219
        $region100: #{tpu_custom_call.1} parent=43 // pred_fallthru
          _
        // Predicated region
        $region101: #{tpu_custom_call.1} parent=43 // pred_check
          %p2314 = pneg %p348
        $region102: #{tpu_custom_call.1} parent=43 // pred_check_branch
          %2316 = sbr.rel (%p2314) target = $region104
        $region103: #{tpu_custom_call.1} parent=43 // pred_region
          %2318 = vsyncadd %s2224, 0
          %s2319 = smul.addr %s37, 8
          %s2320 = scalar_lea.hbm %s13, %s2319
          %s2322 = sshll.u32 %s2227, 4
          %s2323 = int_to_ptr.vmem [resolvable:$true] %s2322
          %s2324 = sshll.u32 %s2320, 4
          %s2325 = int_to_ptr.hbm [resolvable:$true] %s2324
          %2327 = dma.vmem_to_hbm [thread:$0]  %s2323, 128, %s2325, %s2224
        $region104: #{tpu_custom_call.1} parent=43 // pred_fallthru
          _
        // Predicated region
        $region105: #{tpu_custom_call.1} parent=43 // pred_check
          %p2328 = pneg %p191
        $region106: #{tpu_custom_call.1} parent=43 // pred_check_branch
          %2330 = sbr.rel (%p2328) target = $region108
        $region107: #{tpu_custom_call.1} parent=43 // pred_region
          %2332 = dma.done [#allocation4], 128
        $region108: #{tpu_custom_call.1} parent=43 // pred_fallthru
          _
        // Predicated region
        $region109: #{tpu_custom_call.1} parent=43 // pred_check
          %p2333 = pneg %p212
        $region110: #{tpu_custom_call.1} parent=43 // pred_check_branch
          %2335 = sbr.rel (%p2333) target = $region112
        $region111: #{tpu_custom_call.1} parent=43 // pred_region
          %2337 = dma.done [#allocation15], 32
        $region112: #{tpu_custom_call.1} parent=43 // pred_fallthru
          _
        // Predicated region
        $region113: #{tpu_custom_call.1} parent=43 // pred_check
          %p2338 = pneg %p233
        $region114: #{tpu_custom_call.1} parent=43 // pred_check_branch
          %2340 = sbr.rel (%p2338) target = $region116
        $region115: #{tpu_custom_call.1} parent=43 // pred_region
          %2342 = dma.done [#allocation15], 32
        $region116: #{tpu_custom_call.1} parent=43 // pred_fallthru
          _
        // Predicated region
        $region117: #{tpu_custom_call.1} parent=43 // pred_check
          %p2343 = pneg %p254
        $region118: #{tpu_custom_call.1} parent=43 // pred_check_branch
          %2345 = sbr.rel (%p2343) target = $region120
        $region119: #{tpu_custom_call.1} parent=43 // pred_region
          %2347 = dma.done [#allocation18], 32
        $region120: #{tpu_custom_call.1} parent=43 // pred_fallthru
          _
        // Predicated region
        $region121: #{tpu_custom_call.1} parent=43 // pred_check
          %p2348 = pneg %p275
        $region122: #{tpu_custom_call.1} parent=43 // pred_check_branch
          %2350 = sbr.rel (%p2348) target = $region124
        $region123: #{tpu_custom_call.1} parent=43 // pred_region
          %2352 = dma.done [#allocation18], 32
        $region124: #{tpu_custom_call.1} parent=43 // pred_fallthru
          _
        // Predicated region
        $region125: #{tpu_custom_call.1} parent=43 // pred_check
          %p2353 = pneg %p296
        $region126: #{tpu_custom_call.1} parent=43 // pred_check_branch
          %2355 = sbr.rel (%p2353) target = $region128
        $region127: #{tpu_custom_call.1} parent=43 // pred_region
          %2357 = dma.done [#allocation21], 32
        $region128: #{tpu_custom_call.1} parent=43 // pred_fallthru
          _
      $region44: #{tpu_custom_call.1} parent=5 // pred_fallthru
        _
      %p2358 = scmp.le.s32.totalorder 2, %s32
      // Predicated region
      $region129: #{tpu_custom_call.1} parent=5 // pred_check
        %p2359 = pneg %p2358
      $region130: #{tpu_custom_call.1} parent=5 // pred_check_branch
        %2361 = sbr.rel (%p2359) target = $region132
      $region131: #{tpu_custom_call.1} parent=5 // pred_region
        %s2362 = ssub.s32 %s32, 2
        // Predicated region
        $region133: #{tpu_custom_call.1} parent=131 // pred_check
          %p2363 = pneg %p328
        $region134: #{tpu_custom_call.1} parent=131 // pred_check_branch
          %2365 = sbr.rel (%p2363) target = $region136
        $region135: #{tpu_custom_call.1} parent=131 // pred_region
          %s2366 = sand.u32 %s38, 1
          %s2367 = scalar_lea.sflag [#allocation4], %s2366
          %s2368 = sand.u32 %s313, 1
          %s2369 = smul.addr %s2368, 8
          %s2370 = scalar_lea.vmem [#allocation22], %s2369
          %2372 = dma.done %s2367, 128
        $region136: #{tpu_custom_call.1} parent=131 // pred_fallthru
          _
        // Predicated region
        $region137: #{tpu_custom_call.1} parent=131 // pred_check
          %p2373 = pneg %p354
        $region138: #{tpu_custom_call.1} parent=131 // pred_check_branch
          %2375 = sbr.rel (%p2373) target = $region140
        $region139: #{tpu_custom_call.1} parent=131 // pred_region
          %s2376 = sand.u32 %s38, 1
          %s2377 = scalar_lea.sflag [#allocation4], %s2376
          %s2378 = sand.u32 %s339, 1
          %s2379 = smul.addr %s2378, 8
          %s2380 = scalar_lea.vmem [#allocation23], %s2379
          %2382 = dma.done %s2377, 128
        $region140: #{tpu_custom_call.1} parent=131 // pred_fallthru
          _
      $region132: #{tpu_custom_call.1} parent=5 // pred_fallthru
        _
    $region6: #{tpu_custom_call.1} parent=1 // loop_footer
      %s36 = sadd.s32 1, %s32
    $region7: #{tpu_custom_call.1} parent=1 // loop_footer_branch
      %31 = sbr.rel target = $region3
    $region8: #{tpu_custom_call.1} parent=1 // loop_exit
      _
    %2383 = vsyncpa [#allocation3], 1
    %s2384 = scalar_lea.sflag [#allocation3], 1
    %2385 = vsyncpa %s2384, 1
    %2386 = vsyncpa [#allocation6], 1
    %2387 = vsyncpa [#allocation9], 1
    %s2388 = scalar_lea.sflag [#allocation9], 1
    %2389 = vsyncpa %s2388, 1
    %2390 = vsyncpa [#allocation12], 1
    %s2391 = scalar_lea.sflag [#allocation12], 1
    %2392 = vsyncpa %s2391, 1
    %2393 = vsyncpa [#allocation4], 1
    %s2394 = scalar_lea.sflag [#allocation4], 1
    %2395 = vsyncpa %s2394, 1
    %2396 = vsyncpa [#allocation15], 1
    %2397 = vsyncpa [#allocation18], 1
    %2398 = vsyncpa [#allocation21], 1

</llo_original>
